<compile_context>
chip_gen: v7x
topology: tpu7x:2x2x1
jax: 0.10.0
libtpu: 0.0.40
codegen_flags: <defaults>
</compile_context>

<pallas_src>
import math
from functools import partial

import jax
import jax.numpy as jnp
from jax import lax
from jax.experimental import pallas as pl
from jax.experimental.pallas import tpu as pltpu


def _resblock_kernel(x_ref, w1_ref, b1_ref, w2_ref, b2_ref, ws_ref, bs_ref,
                     o_ref):
    """One (image, row-tile) pair per grid step.

    x_ref : (TH+6, W+2, Cp)   bf16  zero-padded input row slab
                                    (original rows r*TH-3 .. r*TH+TH+2)
    w1_ref: (3, 3*Cp, Cp)     bf16  conv1 taps, K-fused over kj
    b1_ref: (1, Cp)           f32
    w2_ref: (3, 3*Cp, Coutp)  bf16  conv2 taps, K-fused, pre-scaled 0.25/sqrt2
    b2_ref: (1, Coutp)        f32   pre-scaled 1/sqrt2
    ws_ref: (Cp, Coutp)       bf16  skip 1x1 conv, pre-scaled 0.25/sqrt2
    bs_ref: (1, Coutp)        f32   pre-scaled 1/sqrt2
    o_ref : (THo, Wo, Coutp)  bf16  output row tile (THo = TH//2, Wo = W//2)
    """
    th6, wp, cp = x_ref.shape
    th, w = th6 - 6, wp - 2
    tho, wo, coutp = o_ref.shape
    rows1 = th + 4                    # conv1 rows incl. the 2-row pool halo/side

    xt = x_ref[...]                                        # bf16, no f32 copy

    # ---------------- conv1: 3x3 SAME, K-fused over the 3 column taps --------
    c0 = xt[:, 0:w, :]
    c1 = xt[:, 1:1 + w, :]                                 # center (reused by skip)
    c2 = xt[:, 2:2 + w, :]
    xcat = jnp.concatenate([c0, c1, c2], axis=-1)          # (TH+6, W, 3Cp) bf16

    acc1 = jnp.zeros((rows1 * w, cp), jnp.float32)
    for ki in range(3):                                    # 3 matmuls, K = 3*Cp
        patch = xcat[ki:ki + rows1].reshape(rows1 * w, 3 * cp)
        acc1 = acc1 + jnp.dot(patch, w1_ref[ki],
                              preferred_element_type=jnp.float32)
    y1 = acc1 + b1_ref[...]
    y1 = jnp.where(y1 > 0, y1, 0.2 * y1)                   # leaky_relu(0.2)

    # ---------------- AvgPool2d(2) as sums (0.25 folded into w2/ws) ----------
    y1 = y1.reshape(tho + 2, 2, w, cp)
    hsum = y1[:, 0] + y1[:, 1]                             # (THo+2, W, Cp)
    hsum = hsum.reshape(tho + 2, wo, 2, cp)
    psum = hsum[:, :, 0, :] + hsum[:, :, 1, :]             # (THo+2, Wo, Cp) f32

    # Zero the pooled halo rows that fall outside the global pooled map
    # (reproduces conv2's 'SAME' zero padding at the image top/bottom).
    r = pl.program_id(1)
    top = (r > 0).astype(jnp.float32)
    bot = (r < pl.num_programs(1) - 1).astype(jnp.float32)
    psum = jnp.concatenate([psum[0:1] * top,
                            psum[1:tho + 1],
                            psum[tho + 1:tho + 2] * bot], axis=0)

    # ---------------- conv2: 3x3 SAME on pooled map, K-fused over columns ----
    # Column taps via XLU roll + VPU boundary mask (no padded scratch buffer).
    col = lax.broadcasted_iota(jnp.int32, (tho + 2, wo, cp), 1)
    left = jnp.where(col == 0, 0.0, pltpu.roll(psum, shift=1, axis=1))
    right = jnp.where(col == wo - 1, 0.0, pltpu.roll(psum, shift=wo - 1, axis=1))
    pcat = jnp.concatenate([left, psum, right], axis=-1).astype(jnp.bfloat16)

    acc2 = jnp.zeros((tho * wo, coutp), jnp.float32)
    for ki in range(3):
        patch = pcat[ki:ki + tho].reshape(tho * wo, 3 * cp)
        acc2 = acc2 + jnp.dot(patch, w2_ref[ki],
                              preferred_element_type=jnp.float32)
    a = acc2 + b2_ref[...]
    a = jnp.where(a > 0, a, 0.2 * a)        # leaky; 1/sqrt(2) already folded in

    # ---------------- skip: AvgPool2d(2) + 1x1 conv ---------------------------
    xi = c1[3:3 + th].astype(jnp.float32).reshape(tho, 2, w, cp)
    xs = xi[:, 0] + xi[:, 1]
    xs = xs.reshape(tho, wo, 2, cp)
    xs = xs[:, :, 0, :] + xs[:, :, 1, :]                   # (THo, Wo, Cp) f32
    s = jnp.dot(xs.reshape(tho * wo, cp).astype(jnp.bfloat16), ws_ref[...],
                preferred_element_type=jnp.float32) + bs_ref[...]

    # ---------------- residual merge (1/sqrt(2) already folded) ---------------
    o_ref[...] = (a + s).reshape(tho, wo, coutp).astype(o_ref.dtype)


def _round_up(x, m):
    return (x + m - 1) // m * m


def _pick_row_tile(h, requested):
    th = max(2, min(requested, h))
    while (h % th) or (th % 2):
        th -= 1
    return th


@partial(jax.jit, static_argnames=("row_tile",))
def resblock_forward(x_nchw, params, row_tile=8):
    """ResBlock forward.  x_nchw: (N, Cin, H, W) f32 -> (N, Cout, H//2, W//2) f32."""
    w1, b1, w2, b2, ws, bs = params                        # HWIO weights
    n, cin, h, w = x_nchw.shape
    cout = w2.shape[-1]
    assert h % 2 == 0 and w % 2 == 0, "AvgPool2d(2) requires even H, W"
    ho, wo = h // 2, w // 2

    lane = 128
    cp = _round_up(cin, lane)          # lane-dense K / conv1 N
    coutp = _round_up(cout, lane)      # lane-dense output N (unmasked stores)

    th = _pick_row_tile(h, row_tile)   # input rows per tile (even, divides H)
    tho = th // 2
    n_tiles = h // th
    scale = 1.0 / math.sqrt(2.0)

    # -------- wrapper glue: layout, zero-padding, constant folding only ------
    x = jnp.transpose(x_nchw.astype(jnp.bfloat16), (0, 2, 3, 1))     # NHWC bf16
    # pad: 3 rows (1 conv1 halo + 2 pool/conv2 halo), 1 col, channels to Cp
    xp = jnp.pad(x, ((0, 0), (3, 3), (1, 1), (0, cp - cin)))
    # overlapping row slabs, one per (image, row-tile) grid step
    slabs = jnp.stack([xp[:, r * th:r * th + th + 6] for r in range(n_tiles)],
                      axis=1).reshape(n * n_tiles, th + 6, w + 2, cp)

    w1p = jnp.pad(w1, ((0, 0), (0, 0), (0, cp - cin), (0, cp - cin))
                  ).reshape(3, 3 * cp, cp).astype(jnp.bfloat16)
    b1p = jnp.pad(b1, (0, cp - cin)).reshape(1, cp).astype(jnp.float32)
    # fold the avg-pool 0.25 and the residual 1/sqrt(2) into conv2 / skip
    w2p = (jnp.pad(w2, ((0, 0), (0, 0), (0, cp - cin), (0, coutp - cout)))
           * (0.25 * scale)).reshape(3, 3 * cp, coutp).astype(jnp.bfloat16)
    b2p = (jnp.pad(b2, (0, coutp - cout)) * scale
           ).reshape(1, coutp).astype(jnp.float32)
    wsp = (jnp.pad(ws.reshape(cin, cout), ((0, cp - cin), (0, coutp - cout)))
           * (0.25 * scale)).astype(jnp.bfloat16)
    bsp = (jnp.pad(bs, (0, coutp - cout)) * scale
           ).reshape(1, coutp).astype(jnp.float32)

    # per-generation VMEM budget (~3/4 of physical), fallback if query fails
    try:
        vmem_cap = pltpu.get_tpu_info().vmem_capacity_bytes
        vmem_limit = int(min(vmem_cap * 3 // 4, 112 * 1024 * 1024))
    except Exception:
        vmem_limit = 64 * 1024 * 1024

    out = pl.pallas_call(
        _resblock_kernel,
        out_shape=jax.ShapeDtypeStruct((n, ho, wo, coutp), jnp.bfloat16),
        grid=(n, n_tiles),
        in_specs=[
            pl.BlockSpec((None, th + 6, w + 2, cp),
                         lambda i, r: (i * n_tiles + r, 0, 0, 0)),
            # grid-invariant weights/biases: constant index_map -> fetched once
            pl.BlockSpec((3, 3 * cp, cp), lambda i, r: (0, 0, 0)),
            pl.BlockSpec((1, cp), lambda i, r: (0, 0)),
            pl.BlockSpec((3, 3 * cp, coutp), lambda i, r: (0, 0, 0)),
            pl.BlockSpec((1, coutp), lambda i, r: (0, 0)),
            pl.BlockSpec((cp, coutp), lambda i, r: (0, 0)),
            pl.BlockSpec((1, coutp), lambda i, r: (0, 0)),
        ],
        out_specs=pl.BlockSpec((None, tho, wo, coutp), lambda i, r: (i, r, 0, 0)),
        compiler_params=pltpu.CompilerParams(
            dimension_semantics=("parallel", "parallel"),
            vmem_limit_bytes=vmem_limit),
    )(slabs, w1p, b1p, w2p, b2p, wsp, bsp)

    out = out[..., :cout]                                  # strip channel pad
    # NCHW f32 to preserve the module's interface (downstream layers could
    # consume the NHWC bf16 kernel output directly instead).
    return jnp.transpose(out, (0, 3, 1, 2)).astype(jnp.float32)


def _reference(x_nchw, params):
    """Pure-JAX reference matching the PyTorch forward exactly (f32)."""
    w1, b1, w2, b2, ws, bs = params
    x = jnp.transpose(x_nchw, (0, 2, 3, 1)).astype(jnp.float32)
    dn = ('NHWC', 'HWIO', 'NHWC')

    def avgpool2(t):
        n, h, w, c = t.shape
        return t.reshape(n, h // 2, 2, w // 2, 2, c).mean(axis=(2, 4))

    y = lax.conv_general_dilated(x, w1, (1, 1), 'SAME', dimension_numbers=dn) + b1
    y = jnp.where(y > 0, y, 0.2 * y)
    y = avgpool2(y)
    y = lax.conv_general_dilated(y, w2, (1, 1), 'SAME', dimension_numbers=dn) + b2
    y = jnp.where(y > 0, y, 0.2 * y)
    s = avgpool2(x)
    s = lax.conv_general_dilated(s, ws, (1, 1), 'SAME', dimension_numbers=dn) + bs
    out = (y + s) / math.sqrt(2.0)
    return jnp.transpose(out, (0, 3, 1, 2))


if __name__ == "__main__":
    key = jax.random.PRNGKey(0)
    n, cin, cout, spatial = 2, 4, 8, 16
    ks = jax.random.split(key, 7)
    x = jax.random.normal(ks[0], (n, cin, spatial, spatial), jnp.float32)
    # deterministic synthetic params (HWIO layout; PyTorch would be OIHW)
    w1 = jax.random.normal(ks[1], (3, 3, cin, cin), jnp.float32) * 0.1
    b1 = jax.random.normal(ks[2], (cin,), jnp.float32) * 0.1
    w2 = jax.random.normal(ks[3], (3, 3, cin, cout), jnp.float32) * 0.1
    b2 = jax.random.normal(ks[4], (cout,), jnp.float32) * 0.1
    ws = jax.random.normal(ks[5], (1, 1, cin, cout), jnp.float32) * 0.1
    bs = jax.random.normal(ks[6], (cout,), jnp.float32) * 0.1
    params = (w1, b1, w2, b2, ws, bs)

    # row_tile=8 -> 2 row tiles per 16-row image: exercises the halo/mask path
    out = jax.block_until_ready(resblock_forward(x, params, row_tile=8))
    ref = jax.block_until_ready(_reference(x, params))

    assert out.shape == (n, cout, spatial // 2, spatial // 2), out.shape
    max_err = float(jnp.max(jnp.abs(out - ref)))
    # bf16-streamed operands + bf16 output store, f32 MXU accumulation
    assert max_err < 3e-2, max_err
    print("KERNEL_OK")
</pallas_src>

<mosaic_0001>
module attributes {stable_mosaic.version = 11 : i64} {
  func.func @_resblock_kernel(%arg0: i32, %arg1: i32, %arg2: memref<1x14x18x128xbf16, #tpu.memory_space<vmem>>, %arg3: memref<3x384x128xbf16, #tpu.memory_space<vmem>>, %arg4: memref<1x128xf32, #tpu.memory_space<vmem>>, %arg5: memref<3x384x128xbf16, #tpu.memory_space<vmem>>, %arg6: memref<1x128xf32, #tpu.memory_space<vmem>>, %arg7: memref<128x128xbf16, #tpu.memory_space<vmem>>, %arg8: memref<1x128xf32, #tpu.memory_space<vmem>>, %arg9: memref<1x4x8x128xbf16, #tpu.memory_space<vmem>>) attributes {dimension_semantics = [#tpu.dimension_semantics<parallel>, #tpu.dimension_semantics<parallel>], iteration_bounds = array<i64: 2, 2>, scalar_prefetch = 0 : i64, scratch_operands = 0 : i64, tpu.core_type = #tpu.core_type<tc>, window_params = [{transform_indices = @transform_0, window_bounds = array<i64: 1, 14, 18, 128>}, {pipeline_mode = #tpu.pipeline_mode<synchronous>, transform_indices = @transform_1, window_bounds = array<i64: 3, 384, 128>}, {pipeline_mode = #tpu.pipeline_mode<synchronous>, transform_indices = @transform_2, window_bounds = array<i64: 1, 128>}, {pipeline_mode = #tpu.pipeline_mode<synchronous>, transform_indices = @transform_3, window_bounds = array<i64: 3, 384, 128>}, {pipeline_mode = #tpu.pipeline_mode<synchronous>, transform_indices = @transform_4, window_bounds = array<i64: 1, 128>}, {pipeline_mode = #tpu.pipeline_mode<synchronous>, transform_indices = @transform_5, window_bounds = array<i64: 128, 128>}, {pipeline_mode = #tpu.pipeline_mode<synchronous>, transform_indices = @transform_6, window_bounds = array<i64: 1, 128>}, {transform_indices = @transform_7, window_bounds = array<i64: 1, 4, 8, 128>}]} {
    %c0 = arith.constant 0 : index
    %c0_0 = arith.constant 0 : index
    %c0_1 = arith.constant 0 : index
    %c0_2 = arith.constant 0 : index
    %0 = vector.load %arg2[%c0, %c0_0, %c0_1, %c0_2] : memref<1x14x18x128xbf16, #tpu.memory_space<vmem>>, vector<1x14x18x128xbf16>
    %1 = vector.shape_cast %0 : vector<1x14x18x128xbf16> to vector<14x18x128xbf16>
    %2 = vector.extract_strided_slice %1 {offsets = [0, 0, 0], sizes = [14, 16, 128], strides = [1, 1, 1]} : vector<14x18x128xbf16> to vector<14x16x128xbf16>
    %3 = vector.extract_strided_slice %1 {offsets = [0, 1, 0], sizes = [14, 16, 128], strides = [1, 1, 1]} : vector<14x18x128xbf16> to vector<14x16x128xbf16>
    %4 = vector.extract_strided_slice %1 {offsets = [0, 2, 0], sizes = [14, 16, 128], strides = [1, 1, 1]} : vector<14x18x128xbf16> to vector<14x16x128xbf16>
    %5 = tpu.concatenate %2, %3, %4 in 2 : vector<14x16x128xbf16>, vector<14x16x128xbf16>, vector<14x16x128xbf16> -> vector<14x16x384xbf16>
    %cst = arith.constant 0.000000e+00 : f32
    %6 = vector.broadcast %cst : f32 to vector<192x128xf32>
    %7 = vector.extract_strided_slice %5 {offsets = [0, 0, 0], sizes = [12, 16, 384], strides = [1, 1, 1]} : vector<14x16x384xbf16> to vector<12x16x384xbf16>
    %8 = vector.shape_cast %7 : vector<12x16x384xbf16> to vector<192x384xbf16>
    %c0_3 = arith.constant 0 : index
    %c0_4 = arith.constant 0 : index
    %c0_5 = arith.constant 0 : index
    %9 = vector.load %arg3[%c0_3, %c0_4, %c0_5] : memref<3x384x128xbf16, #tpu.memory_space<vmem>>, vector<1x384x128xbf16>
    %10 = vector.shape_cast %9 : vector<1x384x128xbf16> to vector<384x128xbf16>
    %cst_6 = arith.constant dense<0.000000e+00> : vector<192x128xf32>
    %11 = tpu.matmul %8, %10, %cst_6 {dimension_numbers = #tpu.dot_dimension_numbers<[1], [0], [0], [1], [0, 0, 1, 1], [], []>} : vector<192x384xbf16>, vector<384x128xbf16>, vector<192x128xf32> -> vector<192x128xf32>
    %12 = arith.addf %6, %11 : vector<192x128xf32>
    %13 = vector.extract_strided_slice %5 {offsets = [1, 0, 0], sizes = [12, 16, 384], strides = [1, 1, 1]} : vector<14x16x384xbf16> to vector<12x16x384xbf16>
    %14 = vector.shape_cast %13 : vector<12x16x384xbf16> to vector<192x384xbf16>
    %c1 = arith.constant 1 : index
    %c0_7 = arith.constant 0 : index
    %c0_8 = arith.constant 0 : index
    %15 = vector.load %arg3[%c1, %c0_7, %c0_8] : memref<3x384x128xbf16, #tpu.memory_space<vmem>>, vector<1x384x128xbf16>
    %16 = vector.shape_cast %15 : vector<1x384x128xbf16> to vector<384x128xbf16>
    %cst_9 = arith.constant dense<0.000000e+00> : vector<192x128xf32>
    %17 = tpu.matmul %14, %16, %cst_9 {dimension_numbers = #tpu.dot_dimension_numbers<[1], [0], [0], [1], [0, 0, 1, 1], [], []>} : vector<192x384xbf16>, vector<384x128xbf16>, vector<192x128xf32> -> vector<192x128xf32>
    %18 = arith.addf %12, %17 : vector<192x128xf32>
    %19 = vector.extract_strided_slice %5 {offsets = [2, 0, 0], sizes = [12, 16, 384], strides = [1, 1, 1]} : vector<14x16x384xbf16> to vector<12x16x384xbf16>
    %20 = vector.shape_cast %19 : vector<12x16x384xbf16> to vector<192x384xbf16>
    %c2 = arith.constant 2 : index
    %c0_10 = arith.constant 0 : index
    %c0_11 = arith.constant 0 : index
    %21 = vector.load %arg3[%c2, %c0_10, %c0_11] : memref<3x384x128xbf16, #tpu.memory_space<vmem>>, vector<1x384x128xbf16>
    %22 = vector.shape_cast %21 : vector<1x384x128xbf16> to vector<384x128xbf16>
    %cst_12 = arith.constant dense<0.000000e+00> : vector<192x128xf32>
    %23 = tpu.matmul %20, %22, %cst_12 {dimension_numbers = #tpu.dot_dimension_numbers<[1], [0], [0], [1], [0, 0, 1, 1], [], []>} : vector<192x384xbf16>, vector<384x128xbf16>, vector<192x128xf32> -> vector<192x128xf32>
    %24 = arith.addf %18, %23 : vector<192x128xf32>
    %c0_13 = arith.constant 0 : index
    %c0_14 = arith.constant 0 : index
    %25 = vector.load %arg4[%c0_13, %c0_14] : memref<1x128xf32, #tpu.memory_space<vmem>>, vector<1x128xf32>
    %26 = vector.broadcast %25 : vector<1x128xf32> to vector<192x128xf32>
    %27 = arith.addf %24, %26 : vector<192x128xf32>
    %cst_15 = arith.constant 0.000000e+00 : f32
    %28 = vector.broadcast %cst_15 : f32 to vector<192x128xf32>
    %29 = arith.cmpf ogt, %27, %28 : vector<192x128xf32>
    %cst_16 = arith.constant 2.000000e-01 : f32
    %30 = vector.broadcast %cst_16 : f32 to vector<192x128xf32>
    %31 = arith.mulf %30, %27 : vector<192x128xf32>
    %32 = arith.select %29, %27, %31 : vector<192x128xi1>, vector<192x128xf32>
    %33 = vector.shape_cast %32 : vector<192x128xf32> to vector<6x2x16x128xf32>
    %34 = vector.extract_strided_slice %33 {offsets = [0, 0, 0, 0], sizes = [6, 1, 16, 128], strides = [1, 1, 1, 1]} : vector<6x2x16x128xf32> to vector<6x1x16x128xf32>
    %35 = vector.shape_cast %34 : vector<6x1x16x128xf32> to vector<6x16x128xf32>
    %36 = vector.extract_strided_slice %33 {offsets = [0, 1, 0, 0], sizes = [6, 1, 16, 128], strides = [1, 1, 1, 1]} : vector<6x2x16x128xf32> to vector<6x1x16x128xf32>
    %37 = vector.shape_cast %36 : vector<6x1x16x128xf32> to vector<6x16x128xf32>
    %38 = arith.addf %35, %37 : vector<6x16x128xf32>
    %39 = vector.shape_cast %38 : vector<6x16x128xf32> to vector<6x8x2x128xf32>
    %40 = vector.extract_strided_slice %39 {offsets = [0, 0, 0, 0], sizes = [6, 8, 1, 128], strides = [1, 1, 1, 1]} : vector<6x8x2x128xf32> to vector<6x8x1x128xf32>
    %41 = vector.shape_cast %40 : vector<6x8x1x128xf32> to vector<6x8x128xf32>
    %42 = vector.extract_strided_slice %39 {offsets = [0, 0, 1, 0], sizes = [6, 8, 1, 128], strides = [1, 1, 1, 1]} : vector<6x8x2x128xf32> to vector<6x8x1x128xf32>
    %43 = vector.shape_cast %42 : vector<6x8x1x128xf32> to vector<6x8x128xf32>
    %44 = arith.addf %41, %43 : vector<6x8x128xf32>
    %c0_i32 = arith.constant 0 : i32
    %45 = arith.cmpi sgt, %arg1, %c0_i32 : i32
    %46 = arith.extui %45 : i1 to i32
    %47 = arith.sitofp %46 : i32 to f32
    %c1_i32 = arith.constant 1 : i32
    %48 = arith.cmpi slt, %arg1, %c1_i32 : i32
    %49 = arith.extui %48 : i1 to i32
    %50 = arith.sitofp %49 : i32 to f32
    %51 = vector.extract_strided_slice %44 {offsets = [0, 0, 0], sizes = [1, 8, 128], strides = [1, 1, 1]} : vector<6x8x128xf32> to vector<1x8x128xf32>
    %52 = vector.broadcast %47 : f32 to vector<1x8x128xf32>
    %53 = arith.mulf %51, %52 : vector<1x8x128xf32>
    %54 = vector.extract_strided_slice %44 {offsets = [1, 0, 0], sizes = [4, 8, 128], strides = [1, 1, 1]} : vector<6x8x128xf32> to vector<4x8x128xf32>
    %55 = vector.extract_strided_slice %44 {offsets = [5, 0, 0], sizes = [1, 8, 128], strides = [1, 1, 1]} : vector<6x8x128xf32> to vector<1x8x128xf32>
    %56 = vector.broadcast %50 : f32 to vector<1x8x128xf32>
    %57 = arith.mulf %55, %56 : vector<1x8x128xf32>
    %58 = tpu.concatenate %53, %54, %57 in 0 : vector<1x8x128xf32>, vector<4x8x128xf32>, vector<1x8x128xf32> -> vector<6x8x128xf32>
    %59 = tpu.iota {dimensions = array<i32: 1>} : vector<6x8x128xi32>
    %c0_i32_17 = arith.constant 0 : i32
    %60 = vector.broadcast %c0_i32_17 : i32 to vector<6x8x128xi32>
    %61 = arith.cmpi eq, %59, %60 : vector<6x8x128xi32>
    %c1_i32_18 = arith.constant 1 : i32
    %62 = tpu.dynamic_rotate %58 by %c1_i32_18 dim 1 : vector<6x8x128xf32>, i32 -> vector<6x8x128xf32>
    %cst_19 = arith.constant 0.000000e+00 : f32
    %63 = vector.broadcast %cst_19 : f32 to vector<6x8x128xf32>
    %64 = arith.select %61, %63, %62 : vector<6x8x128xi1>, vector<6x8x128xf32>
    %c7_i32 = arith.constant 7 : i32
    %65 = vector.broadcast %c7_i32 : i32 to vector<6x8x128xi32>
    %66 = arith.cmpi eq, %59, %65 : vector<6x8x128xi32>
    %c7_i32_20 = arith.constant 7 : i32
    %67 = tpu.dynamic_rotate %58 by %c7_i32_20 dim 1 : vector<6x8x128xf32>, i32 -> vector<6x8x128xf32>
    %cst_21 = arith.constant 0.000000e+00 : f32
    %68 = vector.broadcast %cst_21 : f32 to vector<6x8x128xf32>
    %69 = arith.select %66, %68, %67 : vector<6x8x128xi1>, vector<6x8x128xf32>
    %70 = tpu.concatenate %64, %58, %69 in 2 : vector<6x8x128xf32>, vector<6x8x128xf32>, vector<6x8x128xf32> -> vector<6x8x384xf32>
    %71 = arith.truncf %70 : vector<6x8x384xf32> to vector<6x8x384xbf16>
    %cst_22 = arith.constant 0.000000e+00 : f32
    %72 = vector.broadcast %cst_22 : f32 to vector<32x128xf32>
    %73 = vector.extract_strided_slice %71 {offsets = [0, 0, 0], sizes = [4, 8, 384], strides = [1, 1, 1]} : vector<6x8x384xbf16> to vector<4x8x384xbf16>
    %74 = vector.shape_cast %73 : vector<4x8x384xbf16> to vector<32x384xbf16>
    %c0_23 = arith.constant 0 : index
    %c0_24 = arith.constant 0 : index
    %c0_25 = arith.constant 0 : index
    %75 = vector.load %arg5[%c0_23, %c0_24, %c0_25] : memref<3x384x128xbf16, #tpu.memory_space<vmem>>, vector<1x384x128xbf16>
    %76 = vector.shape_cast %75 : vector<1x384x128xbf16> to vector<384x128xbf16>
    %cst_26 = arith.constant dense<0.000000e+00> : vector<32x128xf32>
    %77 = tpu.matmul %74, %76, %cst_26 {dimension_numbers = #tpu.dot_dimension_numbers<[1], [0], [0], [1], [0, 0, 1, 1], [], []>} : vector<32x384xbf16>, vector<384x128xbf16>, vector<32x128xf32> -> vector<32x128xf32>
    %78 = arith.addf %72, %77 : vector<32x128xf32>
    %79 = vector.extract_strided_slice %71 {offsets = [1, 0, 0], sizes = [4, 8, 384], strides = [1, 1, 1]} : vector<6x8x384xbf16> to vector<4x8x384xbf16>
    %80 = vector.shape_cast %79 : vector<4x8x384xbf16> to vector<32x384xbf16>
    %c1_27 = arith.constant 1 : index
    %c0_28 = arith.constant 0 : index
    %c0_29 = arith.constant 0 : index
    %81 = vector.load %arg5[%c1_27, %c0_28, %c0_29] : memref<3x384x128xbf16, #tpu.memory_space<vmem>>, vector<1x384x128xbf16>
    %82 = vector.shape_cast %81 : vector<1x384x128xbf16> to vector<384x128xbf16>
    %cst_30 = arith.constant dense<0.000000e+00> : vector<32x128xf32>
    %83 = tpu.matmul %80, %82, %cst_30 {dimension_numbers = #tpu.dot_dimension_numbers<[1], [0], [0], [1], [0, 0, 1, 1], [], []>} : vector<32x384xbf16>, vector<384x128xbf16>, vector<32x128xf32> -> vector<32x128xf32>
    %84 = arith.addf %78, %83 : vector<32x128xf32>
    %85 = vector.extract_strided_slice %71 {offsets = [2, 0, 0], sizes = [4, 8, 384], strides = [1, 1, 1]} : vector<6x8x384xbf16> to vector<4x8x384xbf16>
    %86 = vector.shape_cast %85 : vector<4x8x384xbf16> to vector<32x384xbf16>
    %c2_31 = arith.constant 2 : index
    %c0_32 = arith.constant 0 : index
    %c0_33 = arith.constant 0 : index
    %87 = vector.load %arg5[%c2_31, %c0_32, %c0_33] : memref<3x384x128xbf16, #tpu.memory_space<vmem>>, vector<1x384x128xbf16>
    %88 = vector.shape_cast %87 : vector<1x384x128xbf16> to vector<384x128xbf16>
    %cst_34 = arith.constant dense<0.000000e+00> : vector<32x128xf32>
    %89 = tpu.matmul %86, %88, %cst_34 {dimension_numbers = #tpu.dot_dimension_numbers<[1], [0], [0], [1], [0, 0, 1, 1], [], []>} : vector<32x384xbf16>, vector<384x128xbf16>, vector<32x128xf32> -> vector<32x128xf32>
    %90 = arith.addf %84, %89 : vector<32x128xf32>
    %c0_35 = arith.constant 0 : index
    %c0_36 = arith.constant 0 : index
    %91 = vector.load %arg6[%c0_35, %c0_36] : memref<1x128xf32, #tpu.memory_space<vmem>>, vector<1x128xf32>
    %92 = vector.broadcast %91 : vector<1x128xf32> to vector<32x128xf32>
    %93 = arith.addf %90, %92 : vector<32x128xf32>
    %cst_37 = arith.constant 0.000000e+00 : f32
    %94 = vector.broadcast %cst_37 : f32 to vector<32x128xf32>
    %95 = arith.cmpf ogt, %93, %94 : vector<32x128xf32>
    %cst_38 = arith.constant 2.000000e-01 : f32
    %96 = vector.broadcast %cst_38 : f32 to vector<32x128xf32>
    %97 = arith.mulf %96, %93 : vector<32x128xf32>
    %98 = arith.select %95, %93, %97 : vector<32x128xi1>, vector<32x128xf32>
    %99 = vector.extract_strided_slice %3 {offsets = [3, 0, 0], sizes = [8, 16, 128], strides = [1, 1, 1]} : vector<14x16x128xbf16> to vector<8x16x128xbf16>
    %100 = arith.extf %99 : vector<8x16x128xbf16> to vector<8x16x128xf32>
    %101 = vector.shape_cast %100 : vector<8x16x128xf32> to vector<4x2x16x128xf32>
    %102 = vector.extract_strided_slice %101 {offsets = [0, 0, 0, 0], sizes = [4, 1, 16, 128], strides = [1, 1, 1, 1]} : vector<4x2x16x128xf32> to vector<4x1x16x128xf32>
    %103 = vector.shape_cast %102 : vector<4x1x16x128xf32> to vector<4x16x128xf32>
    %104 = vector.extract_strided_slice %101 {offsets = [0, 1, 0, 0], sizes = [4, 1, 16, 128], strides = [1, 1, 1, 1]} : vector<4x2x16x128xf32> to vector<4x1x16x128xf32>
    %105 = vector.shape_cast %104 : vector<4x1x16x128xf32> to vector<4x16x128xf32>
    %106 = arith.addf %103, %105 : vector<4x16x128xf32>
    %107 = vector.shape_cast %106 : vector<4x16x128xf32> to vector<4x8x2x128xf32>
    %108 = vector.extract_strided_slice %107 {offsets = [0, 0, 0, 0], sizes = [4, 8, 1, 128], strides = [1, 1, 1, 1]} : vector<4x8x2x128xf32> to vector<4x8x1x128xf32>
    %109 = vector.shape_cast %108 : vector<4x8x1x128xf32> to vector<4x8x128xf32>
    %110 = vector.extract_strided_slice %107 {offsets = [0, 0, 1, 0], sizes = [4, 8, 1, 128], strides = [1, 1, 1, 1]} : vector<4x8x2x128xf32> to vector<4x8x1x128xf32>
    %111 = vector.shape_cast %110 : vector<4x8x1x128xf32> to vector<4x8x128xf32>
    %112 = arith.addf %109, %111 : vector<4x8x128xf32>
    %113 = vector.shape_cast %112 : vector<4x8x128xf32> to vector<32x128xf32>
    %114 = arith.truncf %113 : vector<32x128xf32> to vector<32x128xbf16>
    %c0_39 = arith.constant 0 : index
    %c0_40 = arith.constant 0 : index
    %115 = vector.load %arg7[%c0_39, %c0_40] : memref<128x128xbf16, #tpu.memory_space<vmem>>, vector<128x128xbf16>
    %cst_41 = arith.constant dense<0.000000e+00> : vector<32x128xf32>
    %116 = tpu.matmul %114, %115, %cst_41 {dimension_numbers = #tpu.dot_dimension_numbers<[1], [0], [0], [1], [0, 0, 1, 1], [], []>} : vector<32x128xbf16>, vector<128x128xbf16>, vector<32x128xf32> -> vector<32x128xf32>
    %c0_42 = arith.constant 0 : index
    %c0_43 = arith.constant 0 : index
    %117 = vector.load %arg8[%c0_42, %c0_43] : memref<1x128xf32, #tpu.memory_space<vmem>>, vector<1x128xf32>
    %118 = vector.broadcast %117 : vector<1x128xf32> to vector<32x128xf32>
    %119 = arith.addf %116, %118 : vector<32x128xf32>
    %120 = arith.addf %98, %119 : vector<32x128xf32>
    %121 = vector.shape_cast %120 : vector<32x128xf32> to vector<4x8x128xf32>
    %122 = arith.truncf %121 : vector<4x8x128xf32> to vector<4x8x128xbf16>
    %c0_44 = arith.constant 0 : index
    %c0_45 = arith.constant 0 : index
    %c0_46 = arith.constant 0 : index
    %c0_47 = arith.constant 0 : index
    %123 = vector.load %arg9[%c0_44, %c0_45, %c0_46, %c0_47] : memref<1x4x8x128xbf16, #tpu.memory_space<vmem>>, vector<1x4x8x128xbf16>
    %124 = vector.shape_cast %123 : vector<1x4x8x128xbf16> to vector<4x8x128xbf16>
    %125 = vector.shape_cast %122 : vector<4x8x128xbf16> to vector<1x4x8x128xbf16>
    tpu.vector_store %arg9[%c0_44, %c0_45, %c0_46, %c0_47], %125 {strides = array<i32>} : memref<1x4x8x128xbf16, #tpu.memory_space<vmem>>, vector<1x4x8x128xbf16>,
    return
  }
  func.func @transform_0(%arg0: i32, %arg1: i32) -> (i32, i32, i32, i32) {
    %c2_i32 = arith.constant 2 : i32
    %0 = arith.muli %arg0, %c2_i32 : i32
    %1 = arith.addi %0, %arg1 : i32
    %c0_i32 = arith.constant 0 : i32
    %c0_i32_0 = arith.constant 0 : i32
    %c0_i32_1 = arith.constant 0 : i32
    %c0_i32_2 = arith.constant 0 : i32
    return %1, %c0_i32, %c0_i32_0, %c0_i32_1 : i32, i32, i32, i32
  }
  func.func @transform_1(%arg0: i32, %arg1: i32) -> (i32, i32, i32) {
    %c0_i32 = arith.constant 0 : i32
    %c0_i32_0 = arith.constant 0 : i32
    %c0_i32_1 = arith.constant 0 : i32
    %c0_i32_2 = arith.constant 0 : i32
    return %c0_i32, %c0_i32_0, %c0_i32_1 : i32, i32, i32
  }
  func.func @transform_2(%arg0: i32, %arg1: i32) -> (i32, i32) {
    %c0_i32 = arith.constant 0 : i32
    %c0_i32_0 = arith.constant 0 : i32
    %c0_i32_1 = arith.constant 0 : i32
    return %c0_i32, %c0_i32_0 : i32, i32
  }
  func.func @transform_3(%arg0: i32, %arg1: i32) -> (i32, i32, i32) {
    %c0_i32 = arith.constant 0 : i32
    %c0_i32_0 = arith.constant 0 : i32
    %c0_i32_1 = arith.constant 0 : i32
    %c0_i32_2 = arith.constant 0 : i32
    return %c0_i32, %c0_i32_0, %c0_i32_1 : i32, i32, i32
  }
  func.func @transform_4(%arg0: i32, %arg1: i32) -> (i32, i32) {
    %c0_i32 = arith.constant 0 : i32
    %c0_i32_0 = arith.constant 0 : i32
    %c0_i32_1 = arith.constant 0 : i32
    return %c0_i32, %c0_i32_0 : i32, i32
  }
  func.func @transform_5(%arg0: i32, %arg1: i32) -> (i32, i32) {
    %c0_i32 = arith.constant 0 : i32
    %c0_i32_0 = arith.constant 0 : i32
    %c0_i32_1 = arith.constant 0 : i32
    return %c0_i32, %c0_i32_0 : i32, i32
  }
  func.func @transform_6(%arg0: i32, %arg1: i32) -> (i32, i32) {
    %c0_i32 = arith.constant 0 : i32
    %c0_i32_0 = arith.constant 0 : i32
    %c0_i32_1 = arith.constant 0 : i32
    return %c0_i32, %c0_i32_0 : i32, i32
  }
  func.func @transform_7(%arg0: i32, %arg1: i32) -> (i32, i32, i32, i32) {
    %c0_i32 = arith.constant 0 : i32
    %c0_i32_0 = arith.constant 0 : i32
    %c0_i32_1 = arith.constant 0 : i32
    return %arg0, %arg1, %c0_i32, %c0_i32_0 : i32, i32, i32, i32
  }
}

</mosaic_0001>

<llo_original>
// kernel: resblock_forward.1
$region0: #{resblock_forward.1}
  #allocation0 [shape = 'u32[]', space=smem, size = 0x4, offset = 0x4, fixed_abs, tag = 'smem constant byte address 0x4 - core index']
  #allocation1 [shape = 'u32[144,128]{1,0:T(1,128)}', space=vmem, size = 0x12000, scoped, tag = 'internal scratch']
  %s0 = inlined_call_operand.hbm [shape: bf16[4,14,18,128], index: 0, kind: input, shape index: {}]
  %s1 = inlined_call_operand.hbm [shape: bf16[3,384,128], index: 1, kind: input, shape index: {}]
  %s2 = inlined_call_operand.hbm [shape: f32[1,128], index: 2, kind: input, shape index: {}]
  %s3 = inlined_call_operand.hbm [shape: bf16[3,384,128], index: 3, kind: input, shape index: {}]
  %s4 = inlined_call_operand.hbm [shape: f32[1,128], index: 4, kind: input, shape index: {}]
  %s5 = inlined_call_operand.hbm [shape: bf16[128,128], index: 5, kind: input, shape index: {}]
  %s6 = inlined_call_operand.hbm [shape: f32[1,128], index: 6, kind: input, shape index: {}]
  %s7 = inlined_call_operand.hbm [shape: bf16[2,8,8,128], index: 7, kind: output, shape index: {}]
  %s8 = sld [smem:[#allocation0]]
  $region89: #{resblock_forward.1} parent=0
    _
  %s10 = ssub.s32 1, %s8
  %s11 = scalar_select 0, %s10, %s8
  $region1: #{resblock_forward.1} parent=0
    #allocation2 [shape = 'u8[172032]{0}', space=vmem, size = 0x2a000, scoped, tag = 'input window, operand 0']
    #allocation3 [shape = 's32[2]{0}', space=sflag, size = 0x8, scoped, tag = 'scoped memory for resblock_forward.1']
    #allocation4 [shape = 's32[2]{0}', space=sflag, size = 0x8, scoped, tag = 'scoped memory for resblock_forward.1']
    #allocation5 [shape = 'u8[294912]{0}', space=vmem, size = 0x48000, scoped, tag = 'input window, operand 1, single buffered']
    #allocation6 [shape = 's32[1]{0}', space=sflag, size = 0x4, scoped, tag = 'scoped memory for resblock_forward.1']
    #allocation7 [shape = 'u8[512]{0}', space=vmem, size = 0x400, scoped, tag = 'input window, operand 2, single buffered']
    #allocation8 [shape = 'u8[294912]{0}', space=vmem, size = 0x48000, scoped, tag = 'input window, operand 3, single buffered']
    #allocation9 [shape = 's32[1]{0}', space=sflag, size = 0x4, scoped, tag = 'scoped memory for resblock_forward.1']
    #allocation10 [shape = 'u8[512]{0}', space=vmem, size = 0x400, scoped, tag = 'input window, operand 4, single buffered']
    #allocation11 [shape = 'u8[32768]{0}', space=vmem, size = 0x8000, scoped, tag = 'input window, operand 5, single buffered']
    #allocation12 [shape = 's32[1]{0}', space=sflag, size = 0x4, scoped, tag = 'scoped memory for resblock_forward.1']
    #allocation13 [shape = 'u8[512]{0}', space=vmem, size = 0x400, scoped, tag = 'input window, operand 6, single buffered']
    #allocation14 [shape = 'u8[16384]{0}', space=vmem, size = 0x4000, scoped, tag = 'output window, operand 0']
    %12 = vsyncpa [#allocation3], 0
    %s13 = scalar_lea.sflag [#allocation3], 1
    %14 = vsyncpa %s13, 0
    %15 = vsyncpa [#allocation6], 0
    %16 = vsyncpa [#allocation9], 0
    %17 = vsyncpa [#allocation12], 0
    %18 = vsyncpa [#allocation4], 0
    %s19 = scalar_lea.sflag [#allocation4], 1
    %20 = vsyncpa %s19, 0
    loop: start=0, step=1, limit=6
    $region2: #{resblock_forward.1} parent=1 // loop_pre_header
      _
    $region3: #{resblock_forward.1} parent=1 // loop_header
      %s22 = sphi 0, %s26
      %p23 = scmp.ge.s32.totalorder %s22, 6
      %s29 = sphi 0, %s41
      %s30 = sphi 0, %s37
      %s31 = sphi 0, %s29
      %s32 = sphi 0, %s30
      %s33 = sphi 0, %s31
      %s34 = sphi 0, %s32
      %s48 = sphi 0, %s50
      %s51 = sphi 0, %s48
      %s52 = sphi 0, %s51
      %s68 = sphi 0, %s52
      %s72 = sphi 0, %s72
      %s74 = sphi 0, %s72
      %s75 = sphi 0, %s74
      %s89 = sphi 0, %s75
      %s93 = sphi 0, %s93
      %s95 = sphi 0, %s93
      %s96 = sphi 0, %s95
      %s110 = sphi 0, %s96
      %s114 = sphi 0, %s114
      %s116 = sphi 0, %s114
      %s117 = sphi 0, %s116
      %s131 = sphi 0, %s117
      %s135 = sphi 0, %s135
      %s137 = sphi 0, %s135
      %s138 = sphi 0, %s137
      %s152 = sphi 0, %s138
      %s156 = sphi 0, %s156
      %s158 = sphi 0, %s156
      %s159 = sphi 0, %s158
      %s173 = sphi 0, %s159
      %s177 = sphi 0, %s177
      %s179 = sphi 0, %s177
      %s180 = sphi 0, %s179
      %s194 = sphi 0, %s180
      %s202 = sphi 0, %s204
      %s205 = sphi 0, %s202
      %s206 = sphi 0, %s205
      %s222 = sphi 0, %s206
    $region4: #{resblock_forward.1} parent=1 // loop_header_branch
      %25 = sbr.rel (%p23) target = $region8
    $region5: #{resblock_forward.1} parent=1 // loop_body
      %s27 = ssub.s32 %s22, 1
      %s28 = ssub.s32 %s22, 2
      %s35 = sadd.s32 1, %s30
      %p36 = scmp.ge.s32.totalorder %s35, 2
      %s37 = scalar_select %p36, 0, %s35
      %s38 = sadd.s32 1, %s29
      %s39 = scalar_select %p36, %s38, %s29
      %p40 = scmp.ge.s32.totalorder %s39, 2
      %s41 = scalar_select %p40, 0, %s39
      %s42 = smul.u32 %s29, 2
      %s43 = sadd.s32 %s42, %s30
      %s44 = smul.u32 %s41, 2
      %s45 = sadd.s32 %s44, %s37
      %s46 = ssub.s32 %s43, %s45
      %p47 = scmp.eq.s32.totalorder %s46, 0
      %s49 = sadd.s32 %s48, 1
      %s50 = scalar_select %p47, %s48, %s49
      %p53 = pneg %p47
      %p54 = scmp.eq.s32.totalorder %s22, 3
      %p55 = por %p53, %p54
      %p56 = scmp.ne.s32.totalorder %s48, %s51
      %p57 = scmp.eq.s32.totalorder %s22, 0
      %p58 = por %p56, %p57
      %p59 = scmp.ne.s32.totalorder %s48, %s51
      %p60 = scmp.eq.s32.totalorder %s27, 3
      %p61 = por %p59, %p60
      %p62 = scmp.ne.s32.totalorder %s51, %s52
      %p63 = scmp.eq.s32.totalorder %s27, 0
      %p64 = por %p62, %p63
      %p65 = scmp.ne.s32.totalorder %s51, %s52
      %p66 = scmp.eq.s32.totalorder %s28, 3
      %p67 = por %p65, %p66
      %p69 = scmp.ne.s32.totalorder %s52, %s68
      %p70 = scmp.eq.s32.totalorder %s28, 0
      %p71 = por %p69, %p70
      %s73 = sadd.s32 %s72, 1
      %p76 = scmp.eq.s32.totalorder %s22, 3
      %p77 = scmp.ne.s32.totalorder %s72, %s74
      %p78 = scmp.eq.s32.totalorder %s22, 0
      %p79 = por %p77, %p78
      %p80 = scmp.ne.s32.totalorder %s72, %s74
      %p81 = scmp.eq.s32.totalorder %s27, 3
      %p82 = por %p80, %p81
      %p83 = scmp.ne.s32.totalorder %s74, %s75
      %p84 = scmp.eq.s32.totalorder %s27, 0
      %p85 = por %p83, %p84
      %p86 = scmp.ne.s32.totalorder %s74, %s75
      %p87 = scmp.eq.s32.totalorder %s28, 3
      %p88 = por %p86, %p87
      %p90 = scmp.ne.s32.totalorder %s75, %s89
      %p91 = scmp.eq.s32.totalorder %s28, 0
      %p92 = por %p90, %p91
      %s94 = sadd.s32 %s93, 1
      %p97 = scmp.eq.s32.totalorder %s22, 3
      %p98 = scmp.ne.s32.totalorder %s93, %s95
      %p99 = scmp.eq.s32.totalorder %s22, 0
      %p100 = por %p98, %p99
      %p101 = scmp.ne.s32.totalorder %s93, %s95
      %p102 = scmp.eq.s32.totalorder %s27, 3
      %p103 = por %p101, %p102
      %p104 = scmp.ne.s32.totalorder %s95, %s96
      %p105 = scmp.eq.s32.totalorder %s27, 0
      %p106 = por %p104, %p105
      %p107 = scmp.ne.s32.totalorder %s95, %s96
      %p108 = scmp.eq.s32.totalorder %s28, 3
      %p109 = por %p107, %p108
      %p111 = scmp.ne.s32.totalorder %s96, %s110
      %p112 = scmp.eq.s32.totalorder %s28, 0
      %p113 = por %p111, %p112
      %s115 = sadd.s32 %s114, 1
      %p118 = scmp.eq.s32.totalorder %s22, 3
      %p119 = scmp.ne.s32.totalorder %s114, %s116
      %p120 = scmp.eq.s32.totalorder %s22, 0
      %p121 = por %p119, %p120
      %p122 = scmp.ne.s32.totalorder %s114, %s116
      %p123 = scmp.eq.s32.totalorder %s27, 3
      %p124 = por %p122, %p123
      %p125 = scmp.ne.s32.totalorder %s116, %s117
      %p126 = scmp.eq.s32.totalorder %s27, 0
      %p127 = por %p125, %p126
      %p128 = scmp.ne.s32.totalorder %s116, %s117
      %p129 = scmp.eq.s32.totalorder %s28, 3
      %p130 = por %p128, %p129
      %p132 = scmp.ne.s32.totalorder %s117, %s131
      %p133 = scmp.eq.s32.totalorder %s28, 0
      %p134 = por %p132, %p133
      %s136 = sadd.s32 %s135, 1
      %p139 = scmp.eq.s32.totalorder %s22, 3
      %p140 = scmp.ne.s32.totalorder %s135, %s137
      %p141 = scmp.eq.s32.totalorder %s22, 0
      %p142 = por %p140, %p141
      %p143 = scmp.ne.s32.totalorder %s135, %s137
      %p144 = scmp.eq.s32.totalorder %s27, 3
      %p145 = por %p143, %p144
      %p146 = scmp.ne.s32.totalorder %s137, %s138
      %p147 = scmp.eq.s32.totalorder %s27, 0
      %p148 = por %p146, %p147
      %p149 = scmp.ne.s32.totalorder %s137, %s138
      %p150 = scmp.eq.s32.totalorder %s28, 3
      %p151 = por %p149, %p150
      %p153 = scmp.ne.s32.totalorder %s138, %s152
      %p154 = scmp.eq.s32.totalorder %s28, 0
      %p155 = por %p153, %p154
      %s157 = sadd.s32 %s156, 1
      %p160 = scmp.eq.s32.totalorder %s22, 3
      %p161 = scmp.ne.s32.totalorder %s156, %s158
      %p162 = scmp.eq.s32.totalorder %s22, 0
      %p163 = por %p161, %p162
      %p164 = scmp.ne.s32.totalorder %s156, %s158
      %p165 = scmp.eq.s32.totalorder %s27, 3
      %p166 = por %p164, %p165
      %p167 = scmp.ne.s32.totalorder %s158, %s159
      %p168 = scmp.eq.s32.totalorder %s27, 0
      %p169 = por %p167, %p168
      %p170 = scmp.ne.s32.totalorder %s158, %s159
      %p171 = scmp.eq.s32.totalorder %s28, 3
      %p172 = por %p170, %p171
      %p174 = scmp.ne.s32.totalorder %s159, %s173
      %p175 = scmp.eq.s32.totalorder %s28, 0
      %p176 = por %p174, %p175
      %s178 = sadd.s32 %s177, 1
      %p181 = scmp.eq.s32.totalorder %s22, 3
      %p182 = scmp.ne.s32.totalorder %s177, %s179
      %p183 = scmp.eq.s32.totalorder %s22, 0
      %p184 = por %p182, %p183
      %p185 = scmp.ne.s32.totalorder %s177, %s179
      %p186 = scmp.eq.s32.totalorder %s27, 3
      %p187 = por %p185, %p186
      %p188 = scmp.ne.s32.totalorder %s179, %s180
      %p189 = scmp.eq.s32.totalorder %s27, 0
      %p190 = por %p188, %p189
      %p191 = scmp.ne.s32.totalorder %s179, %s180
      %p192 = scmp.eq.s32.totalorder %s28, 3
      %p193 = por %p191, %p192
      %p195 = scmp.ne.s32.totalorder %s180, %s194
      %p196 = scmp.eq.s32.totalorder %s28, 0
      %p197 = por %p195, %p196
      %s198 = ssub.s32 %s29, %s41
      %s199 = ssub.s32 %s30, %s37
      %s200 = sor.u32 %s198, %s199
      %p201 = scmp.eq.s32.totalorder %s200, 0
      %s203 = sadd.s32 %s202, 1
      %s204 = scalar_select %p201, %s202, %s203
      %p207 = pneg %p201
      %p208 = scmp.eq.s32.totalorder %s22, 3
      %p209 = por %p207, %p208
      %p210 = scmp.ne.s32.totalorder %s202, %s205
      %p211 = scmp.eq.s32.totalorder %s22, 0
      %p212 = por %p210, %p211
      %p213 = scmp.ne.s32.totalorder %s202, %s205
      %p214 = scmp.eq.s32.totalorder %s27, 3
      %p215 = por %p213, %p214
      %p216 = scmp.ne.s32.totalorder %s205, %s206
      %p217 = scmp.eq.s32.totalorder %s27, 0
      %p218 = por %p216, %p217
      %p219 = scmp.ne.s32.totalorder %s205, %s206
      %p220 = scmp.eq.s32.totalorder %s28, 3
      %p221 = por %p219, %p220
      %p223 = scmp.ne.s32.totalorder %s206, %s222
      %p224 = scmp.eq.s32.totalorder %s28, 0
      %p225 = por %p223, %p224
      %p226 = scmp.le.s32.totalorder 1, %s22
      %p227 = scmp.lt.s32.totalorder %s22, 5
      %p228 = pnand %p226, %p227
      %p229 = pneg %p228
      // Predicated region
      $region9: #{resblock_forward.1} parent=5 // pred_check
        _
      $region10: #{resblock_forward.1} parent=5 // pred_check_branch
        %231 = sbr.rel (%p228) target = $region12
      $region11: #{resblock_forward.1} parent=5 // pred_region
        %s232 = ssub.s32 %s22, 1
        // Predicated region
        $region13: #{resblock_forward.1} parent=11 // pred_check
          %p233 = pneg %p85
        $region14: #{resblock_forward.1} parent=11 // pred_check_branch
          %235 = sbr.rel (%p233) target = $region16
        $region15: #{resblock_forward.1} parent=11 // pred_region
          %s237 = ssub.s32 9216, 9216
          %238 = vsyncadd [#allocation6], %s237
          %s239 = sshll.u32 [#allocation5], 4
          %s240 = int_to_ptr.vmem [resolvable:$true] %s239
          %245 = dma.hbm_to_vmem [thread:$0]  %s1, 9216, %s240, [#allocation6], 64, 64, 4
        $region16: #{resblock_forward.1} parent=11 // pred_fallthru
          _
        // Predicated region
        $region17: #{resblock_forward.1} parent=11 // pred_check
          %p246 = pneg %p106
        $region18: #{resblock_forward.1} parent=11 // pred_check_branch
          %248 = sbr.rel (%p246) target = $region20
        $region19: #{resblock_forward.1} parent=11 // pred_region
          %s250 = ssub.s32 16, 16
          %251 = vsyncadd [#allocation6], %s250
          %s253 = sshll.u32 [#allocation7], 4
          %s254 = int_to_ptr.vmem [resolvable:$true] %s253
          %256 = dma.hbm_to_vmem [thread:$0]  %s2, 16, %s254, [#allocation6]
        $region20: #{resblock_forward.1} parent=11 // pred_fallthru
          _
        // Predicated region
        $region21: #{resblock_forward.1} parent=11 // pred_check
          %p257 = pneg %p127
        $region22: #{resblock_forward.1} parent=11 // pred_check_branch
          %259 = sbr.rel (%p257) target = $region24
        $region23: #{resblock_forward.1} parent=11 // pred_region
          %s261 = ssub.s32 9216, 9216
          %262 = vsyncadd [#allocation9], %s261
          %s263 = sshll.u32 [#allocation8], 4
          %s264 = int_to_ptr.vmem [resolvable:$true] %s263
          %269 = dma.hbm_to_vmem [thread:$0]  %s3, 9216, %s264, [#allocation9], 64, 64, 4
        $region24: #{resblock_forward.1} parent=11 // pred_fallthru
          _
        // Predicated region
        $region25: #{resblock_forward.1} parent=11 // pred_check
          %p270 = pneg %p148
        $region26: #{resblock_forward.1} parent=11 // pred_check_branch
          %272 = sbr.rel (%p270) target = $region28
        $region27: #{resblock_forward.1} parent=11 // pred_region
          %s274 = ssub.s32 16, 16
          %275 = vsyncadd [#allocation9], %s274
          %s277 = sshll.u32 [#allocation10], 4
          %s278 = int_to_ptr.vmem [resolvable:$true] %s277
          %280 = dma.hbm_to_vmem [thread:$0]  %s4, 16, %s278, [#allocation9]
        $region28: #{resblock_forward.1} parent=11 // pred_fallthru
          _
        // Predicated region
        $region29: #{resblock_forward.1} parent=11 // pred_check
          %p281 = pneg %p169
        $region30: #{resblock_forward.1} parent=11 // pred_check_branch
          %283 = sbr.rel (%p281) target = $region32
        $region31: #{resblock_forward.1} parent=11 // pred_region
          %s285 = ssub.s32 1024, 1024
          %286 = vsyncadd [#allocation12], %s285
          %s287 = sshll.u32 [#allocation11], 4
          %s288 = int_to_ptr.vmem [resolvable:$true] %s287
          %293 = dma.hbm_to_vmem [thread:$0]  %s5, 1024, %s288, [#allocation12], 64, 64, 4
        $region32: #{resblock_forward.1} parent=11 // pred_fallthru
          _
        // Predicated region
        $region33: #{resblock_forward.1} parent=11 // pred_check
          %p294 = pneg %p190
        $region34: #{resblock_forward.1} parent=11 // pred_check_branch
          %296 = sbr.rel (%p294) target = $region36
        $region35: #{resblock_forward.1} parent=11 // pred_region
          %s298 = ssub.s32 16, 16
          %299 = vsyncadd [#allocation12], %s298
          %s301 = sshll.u32 [#allocation13], 4
          %s302 = int_to_ptr.vmem [resolvable:$true] %s301
          %304 = dma.hbm_to_vmem [thread:$0]  %s6, 16, %s302, [#allocation12]
        $region36: #{resblock_forward.1} parent=11 // pred_fallthru
          _
      $region12: #{resblock_forward.1} parent=5 // pred_fallthru
        _
      %p305 = scmp.lt.s32.totalorder %s22, 4
      // Predicated region
      $region37: #{resblock_forward.1} parent=5 // pred_check
        %p306 = pneg %p305
      $region38: #{resblock_forward.1} parent=5 // pred_check_branch
        %308 = sbr.rel (%p306) target = $region40
      $region39: #{resblock_forward.1} parent=5 // pred_region
        // Predicated region
        $region41: #{resblock_forward.1} parent=39 // pred_check
          %p309 = pneg %p58
        $region42: #{resblock_forward.1} parent=39 // pred_check_branch
          %311 = sbr.rel (%p309) target = $region44
        $region43: #{resblock_forward.1} parent=39 // pred_region
          %s312 = sand.u32 %s48, 1
          %s313 = scalar_lea.sflag [#allocation3], %s312
          %s314 = sand.u32 %s48, 1
          %s315 = smul.addr %s314, 168
          %s316 = scalar_lea.vmem [#allocation2], %s315
          %s317 = smul.u32 %s29, 2
          %s318 = sadd.s32 %s317, %s30
          %s320 = ssub.s32 2688, 2688
          %321 = vsyncadd %s313, %s320
          %s322 = smul.addr %s318, 42
          %s323 = smul.addr %s322, 64
          %s324 = scalar_lea.hbm %s0, %s323
          %s325 = sshll.u32 %s316, 4
          %s326 = int_to_ptr.vmem [resolvable:$true] %s325
          %331 = dma.hbm_to_vmem [thread:$0]  %s324, 2688, %s326, %s313, 64, 64, 4
        $region44: #{resblock_forward.1} parent=39 // pred_fallthru
          _
      $region40: #{resblock_forward.1} parent=5 // pred_fallthru
        _
      %p332 = scmp.le.s32.totalorder 1, %s22
      %p333 = scmp.lt.s32.totalorder %s22, 5
      %p334 = pnand %p332, %p333
      %p335 = pneg %p334
      // Predicated region
      $region45: #{resblock_forward.1} parent=5 // pred_check
        _
      $region46: #{resblock_forward.1} parent=5 // pred_check_branch
        %337 = sbr.rel (%p334) target = $region48
      $region47: #{resblock_forward.1} parent=5 // pred_region
        %s338 = ssub.s32 %s22, 1
        %s339 = sand.u32 %s51, 1
        %s340 = scalar_lea.sflag [#allocation3], %s339
        %s341 = sand.u32 %s51, 1
        %s342 = smul.addr %s341, 168
        %s343 = scalar_lea.vmem [#allocation2], %s342
        // Predicated region
        $region49: #{resblock_forward.1} parent=47 // pred_check
          %p344 = pneg %p64
        $region50: #{resblock_forward.1} parent=47 // pred_check_branch
          %346 = sbr.rel (%p344) target = $region52
        $region51: #{resblock_forward.1} parent=47 // pred_region
          %347 = dma.done %s340, 2688
        $region52: #{resblock_forward.1} parent=47 // pred_fallthru
          _
        // Predicated region
        $region53: #{resblock_forward.1} parent=47 // pred_check
          %p348 = pneg %p85
        $region54: #{resblock_forward.1} parent=47 // pred_check_branch
          %350 = sbr.rel (%p348) target = $region56
        $region55: #{resblock_forward.1} parent=47 // pred_region
          %351 = dma.done [#allocation6], 9216
        $region56: #{resblock_forward.1} parent=47 // pred_fallthru
          _
        // Predicated region
        $region57: #{resblock_forward.1} parent=47 // pred_check
          %p352 = pneg %p106
        $region58: #{resblock_forward.1} parent=47 // pred_check_branch
          %354 = sbr.rel (%p352) target = $region60
        $region59: #{resblock_forward.1} parent=47 // pred_region
          %355 = dma.done [#allocation6], 16
        $region60: #{resblock_forward.1} parent=47 // pred_fallthru
          _
        // Predicated region
        $region61: #{resblock_forward.1} parent=47 // pred_check
          %p356 = pneg %p127
        $region62: #{resblock_forward.1} parent=47 // pred_check_branch
          %358 = sbr.rel (%p356) target = $region64
        $region63: #{resblock_forward.1} parent=47 // pred_region
          %359 = dma.done [#allocation9], 9216
        $region64: #{resblock_forward.1} parent=47 // pred_fallthru
          _
        // Predicated region
        $region65: #{resblock_forward.1} parent=47 // pred_check
          %p360 = pneg %p148
        $region66: #{resblock_forward.1} parent=47 // pred_check_branch
          %362 = sbr.rel (%p360) target = $region68
        $region67: #{resblock_forward.1} parent=47 // pred_region
          %363 = dma.done [#allocation9], 16
        $region68: #{resblock_forward.1} parent=47 // pred_fallthru
          _
        // Predicated region
        $region69: #{resblock_forward.1} parent=47 // pred_check
          %p364 = pneg %p169
        $region70: #{resblock_forward.1} parent=47 // pred_check_branch
          %366 = sbr.rel (%p364) target = $region72
        $region71: #{resblock_forward.1} parent=47 // pred_region
          %367 = dma.done [#allocation12], 1024
        $region72: #{resblock_forward.1} parent=47 // pred_fallthru
          _
        // Predicated region
        $region73: #{resblock_forward.1} parent=47 // pred_check
          %p368 = pneg %p190
        $region74: #{resblock_forward.1} parent=47 // pred_check_branch
          %370 = sbr.rel (%p368) target = $region76
        $region75: #{resblock_forward.1} parent=47 // pred_region
          %371 = dma.done [#allocation12], 16
        $region76: #{resblock_forward.1} parent=47 // pred_fallthru
          _
        %s372 = sand.u32 %s51, 1
        %s373 = scalar_lea.sflag [#allocation3], %s372
        %s374 = sand.u32 %s51, 1
        %s375 = smul.addr %s374, 168
        %s376 = scalar_lea.vmem [#allocation2], %s375
        %p377 = pneg %p64
        %p378 = pneg %p61
        %p379 = pneg %p85
        %p380 = pneg %p82
        %p381 = pneg %p106
        %p382 = pneg %p103
        %p383 = pneg %p127
        %p384 = pneg %p124
        %p385 = pneg %p148
        %p386 = pneg %p145
        %p387 = pneg %p169
        %p388 = pneg %p166
        %p389 = pneg %p190
        %p390 = pneg %p187
        %p391 = pneg %p218
        %p392 = pneg %p215
        %s393 = sand.u32 %s205, 1
        %s394 = scalar_lea.sflag [#allocation4], %s393
        %s395 = sand.u32 %s205, 1
        %s396 = smul.addr %s395, 16
        %s397 = scalar_lea.vmem [#allocation14], %s396
        %s398 = smul.u32 %s31, 2
        %s399 = sadd.s32 %s398, %s32
        %s400 = smul.u32 4, %s32
        %v402 = vld [vmem:[%s343] sm:$0xf]
        %v403 = vld [vmem:[%s343 + $0x4] sm:$0xf]
        %v404 = vld [vmem:[%s343 + $0x8] sm:$0x1]
        %v405 = vld [vmem:[%s343 + $0xc] sm:$0xf]
        %v406 = vld [vmem:[%s343 + $0x10] sm:$0xf]
        %v407 = vld [vmem:[%s343 + $0x14] sm:$0x1]
        %v408 = vld [vmem:[%s343 + $0x18] sm:$0xf]
        %v409 = vld [vmem:[%s343 + $0x1c] sm:$0xf]
        %v410 = vld [vmem:[%s343 + $0x20] sm:$0x1]
        %v411 = vld [vmem:[%s343 + $0x24] sm:$0xf]
        %v412 = vld [vmem:[%s343 + $0x28] sm:$0xf]
        %v413 = vld [vmem:[%s343 + $0x2c] sm:$0x1]
        %v414 = vld [vmem:[%s343 + $0x30] sm:$0xf]
        %v415 = vld [vmem:[%s343 + $0x34] sm:$0xf]
        %v416 = vld [vmem:[%s343 + $0x38] sm:$0x1]
        %v417 = vld [vmem:[%s343 + $0x3c] sm:$0xf]
        %v418 = vld [vmem:[%s343 + $0x40] sm:$0xf]
        %v419 = vld [vmem:[%s343 + $0x44] sm:$0x1]
        %v420 = vld [vmem:[%s343 + $0x48] sm:$0xf]
        %v421 = vld [vmem:[%s343 + $0x4c] sm:$0xf]
        %v422 = vld [vmem:[%s343 + $0x50] sm:$0x1]
        %v423 = vld [vmem:[%s343 + $0x54] sm:$0xf]
        %v424 = vld [vmem:[%s343 + $0x58] sm:$0xf]
        %v425 = vld [vmem:[%s343 + $0x5c] sm:$0x1]
        %v426 = vld [vmem:[%s343 + $0x60] sm:$0xf]
        %v427 = vld [vmem:[%s343 + $0x64] sm:$0xf]
        %v428 = vld [vmem:[%s343 + $0x68] sm:$0x1]
        %v429 = vld [vmem:[%s343 + $0x6c] sm:$0xf]
        %v430 = vld [vmem:[%s343 + $0x70] sm:$0xf]
        %v431 = vld [vmem:[%s343 + $0x74] sm:$0x1]
        %v432 = vld [vmem:[%s343 + $0x78] sm:$0xf]
        %v433 = vld [vmem:[%s343 + $0x7c] sm:$0xf]
        %v434 = vld [vmem:[%s343 + $0x80] sm:$0x1]
        %v435 = vld [vmem:[%s343 + $0x84] sm:$0xf]
        %v436 = vld [vmem:[%s343 + $0x88] sm:$0xf]
        %v437 = vld [vmem:[%s343 + $0x8c] sm:$0x1]
        %v438 = vld [vmem:[%s343 + $0x90] sm:$0xf]
        %v439 = vld [vmem:[%s343 + $0x94] sm:$0xf]
        %v440 = vld [vmem:[%s343 + $0x98] sm:$0x1]
        %v441 = vld [vmem:[%s343 + $0x9c] sm:$0xf]
        %v442 = vld [vmem:[%s343 + $0xa0] sm:$0xf]
        %v443 = vld [vmem:[%s343 + $0xa4] sm:$0x1]
        %v472 = vunpack.c.l.b16 %v402
        %v473 = vunpack.c.l.b16 %v403
        %v474 = vunpack.c.l.b16 %v405
        %v475 = vunpack.c.l.b16 %v406
        %v476 = vunpack.c.l.b16 %v408
        %v477 = vunpack.c.l.b16 %v409
        %v478 = vunpack.c.l.b16 %v411
        %v479 = vunpack.c.l.b16 %v412
        %v480 = vunpack.c.l.b16 %v414
        %v481 = vunpack.c.l.b16 %v415
        %v482 = vunpack.c.l.b16 %v417
        %v483 = vunpack.c.l.b16 %v418
        %v484 = vunpack.c.l.b16 %v420
        %v485 = vunpack.c.l.b16 %v421
        %v486 = vunpack.c.l.b16 %v423
        %v487 = vunpack.c.l.b16 %v424
        %v488 = vunpack.c.l.b16 %v426
        %v489 = vunpack.c.l.b16 %v427
        %v490 = vunpack.c.l.b16 %v429
        %v491 = vunpack.c.l.b16 %v430
        %v492 = vunpack.c.l.b16 %v432
        %v493 = vunpack.c.l.b16 %v433
        %v494 = vunpack.c.l.b16 %v435
        %v495 = vunpack.c.l.b16 %v436
        %v496 = vunpack.c.l.b16 %v438
        %v497 = vunpack.c.l.b16 %v439
        %v498 = vunpack.c.l.b16 %v441
        %v499 = vunpack.c.l.b16 %v442
        %v500 = vpack.c.b16 %v473, %v472
        %v501 = vpack.c.b16 %v475, %v474
        %v502 = vpack.c.b16 %v477, %v476
        %v503 = vpack.c.b16 %v479, %v478
        %v504 = vpack.c.b16 %v481, %v480
        %v505 = vpack.c.b16 %v483, %v482
        %v506 = vpack.c.b16 %v485, %v484
        %v507 = vpack.c.b16 %v487, %v486
        %v508 = vpack.c.b16 %v489, %v488
        %v509 = vpack.c.b16 %v491, %v490
        %v510 = vpack.c.b16 %v493, %v492
        %v511 = vpack.c.b16 %v495, %v494
        %v512 = vpack.c.b16 %v497, %v496
        %v513 = vpack.c.b16 %v499, %v498
        %v542 = vunpack.c.l.b16 %v404
        %v543 = vunpack.c.l.b16 %v407
        %v544 = vunpack.c.l.b16 %v410
        %v545 = vunpack.c.l.b16 %v413
        %v546 = vunpack.c.l.b16 %v416
        %v547 = vunpack.c.l.b16 %v419
        %v548 = vunpack.c.l.b16 %v422
        %v549 = vunpack.c.l.b16 %v425
        %v550 = vunpack.c.l.b16 %v428
        %v551 = vunpack.c.l.b16 %v431
        %v552 = vunpack.c.l.b16 %v434
        %v553 = vunpack.c.l.b16 %v437
        %v554 = vunpack.c.l.b16 %v440
        %v555 = vunpack.c.l.b16 %v443
        %v556 = vpack.c.b16 %v542, %v542
        %v557 = vpack.c.b16 %v543, %v543
        %v558 = vpack.c.b16 %v544, %v544
        %v559 = vpack.c.b16 %v545, %v545
        %v560 = vpack.c.b16 %v546, %v546
        %v561 = vpack.c.b16 %v547, %v547
        %v562 = vpack.c.b16 %v548, %v548
        %v563 = vpack.c.b16 %v549, %v549
        %v564 = vpack.c.b16 %v550, %v550
        %v565 = vpack.c.b16 %v551, %v551
        %v566 = vpack.c.b16 %v552, %v552
        %v567 = vpack.c.b16 %v553, %v553
        %v568 = vpack.c.b16 %v554, %v554
        %v569 = vpack.c.b16 %v555, %v555
        %vm570 = vsmask.f32 7424
        %v572 = vshrl.u32 %v500, 16
        %v574 = vshll.u32 %v500, 16
        %v576 = vrot.slane %v574, 1
        %v577 = vor.u32 %v572, %v576
        %v579 = vshll.u32 %v556, 16
        %v581 = vrot.slane %v579, 1
        %v582 = vsel %vm570, %v577, %v581
        %v584 = vshrl.u32 %v501, 16
        %v586 = vshll.u32 %v501, 16
        %v588 = vrot.slane %v586, 1
        %v589 = vor.u32 %v584, %v588
        %v591 = vshll.u32 %v557, 16
        %v593 = vrot.slane %v591, 1
        %v594 = vsel %vm570, %v589, %v593
        %v596 = vshrl.u32 %v502, 16
        %v598 = vshll.u32 %v502, 16
        %v600 = vrot.slane %v598, 1
        %v601 = vor.u32 %v596, %v600
        %v603 = vshll.u32 %v558, 16
        %v605 = vrot.slane %v603, 1
        %v606 = vsel %vm570, %v601, %v605
        %v608 = vshrl.u32 %v503, 16
        %v610 = vshll.u32 %v503, 16
        %v612 = vrot.slane %v610, 1
        %v613 = vor.u32 %v608, %v612
        %v615 = vshll.u32 %v559, 16
        %v617 = vrot.slane %v615, 1
        %v618 = vsel %vm570, %v613, %v617
        %v620 = vshrl.u32 %v504, 16
        %v622 = vshll.u32 %v504, 16
        %v624 = vrot.slane %v622, 1
        %v625 = vor.u32 %v620, %v624
        %v627 = vshll.u32 %v560, 16
        %v629 = vrot.slane %v627, 1
        %v630 = vsel %vm570, %v625, %v629
        %v632 = vshrl.u32 %v505, 16
        %v634 = vshll.u32 %v505, 16
        %v636 = vrot.slane %v634, 1
        %v637 = vor.u32 %v632, %v636
        %v639 = vshll.u32 %v561, 16
        %v641 = vrot.slane %v639, 1
        %v642 = vsel %vm570, %v637, %v641
        %v644 = vshrl.u32 %v506, 16
        %v646 = vshll.u32 %v506, 16
        %v648 = vrot.slane %v646, 1
        %v649 = vor.u32 %v644, %v648
        %v651 = vshll.u32 %v562, 16
        %v653 = vrot.slane %v651, 1
        %v654 = vsel %vm570, %v649, %v653
        %v656 = vshrl.u32 %v507, 16
        %v658 = vshll.u32 %v507, 16
        %v660 = vrot.slane %v658, 1
        %v661 = vor.u32 %v656, %v660
        %v663 = vshll.u32 %v563, 16
        %v665 = vrot.slane %v663, 1
        %v666 = vsel %vm570, %v661, %v665
        %v668 = vshrl.u32 %v508, 16
        %v670 = vshll.u32 %v508, 16
        %v672 = vrot.slane %v670, 1
        %v673 = vor.u32 %v668, %v672
        %v675 = vshll.u32 %v564, 16
        %v677 = vrot.slane %v675, 1
        %v678 = vsel %vm570, %v673, %v677
        %v680 = vshrl.u32 %v509, 16
        %v682 = vshll.u32 %v509, 16
        %v684 = vrot.slane %v682, 1
        %v685 = vor.u32 %v680, %v684
        %v687 = vshll.u32 %v565, 16
        %v689 = vrot.slane %v687, 1
        %v690 = vsel %vm570, %v685, %v689
        %v692 = vshrl.u32 %v510, 16
        %v694 = vshll.u32 %v510, 16
        %v696 = vrot.slane %v694, 1
        %v697 = vor.u32 %v692, %v696
        %v699 = vshll.u32 %v566, 16
        %v701 = vrot.slane %v699, 1
        %v702 = vsel %vm570, %v697, %v701
        %v704 = vshrl.u32 %v511, 16
        %v706 = vshll.u32 %v511, 16
        %v708 = vrot.slane %v706, 1
        %v709 = vor.u32 %v704, %v708
        %v711 = vshll.u32 %v567, 16
        %v713 = vrot.slane %v711, 1
        %v714 = vsel %vm570, %v709, %v713
        %v716 = vshrl.u32 %v512, 16
        %v718 = vshll.u32 %v512, 16
        %v720 = vrot.slane %v718, 1
        %v721 = vor.u32 %v716, %v720
        %v723 = vshll.u32 %v568, 16
        %v725 = vrot.slane %v723, 1
        %v726 = vsel %vm570, %v721, %v725
        %v728 = vshrl.u32 %v513, 16
        %v730 = vshll.u32 %v513, 16
        %v732 = vrot.slane %v730, 1
        %v733 = vor.u32 %v728, %v732
        %v735 = vshll.u32 %v569, 16
        %v737 = vrot.slane %v735, 1
        %v738 = vsel %vm570, %v733, %v737
        %vm753 = vcmask 1046528
        %v754 = vrot.slane %v500, 1
        %v755 = vrot.slane %v556, 1
        %v756 = vsel %vm753, %v754, %v755
        %v757 = vrot.slane %v501, 1
        %v758 = vrot.slane %v557, 1
        %v759 = vsel %vm753, %v757, %v758
        %v760 = vrot.slane %v502, 1
        %v761 = vrot.slane %v558, 1
        %v762 = vsel %vm753, %v760, %v761
        %v763 = vrot.slane %v503, 1
        %v764 = vrot.slane %v559, 1
        %v765 = vsel %vm753, %v763, %v764
        %v766 = vrot.slane %v504, 1
        %v767 = vrot.slane %v560, 1
        %v768 = vsel %vm753, %v766, %v767
        %v769 = vrot.slane %v505, 1
        %v770 = vrot.slane %v561, 1
        %v771 = vsel %vm753, %v769, %v770
        %v772 = vrot.slane %v506, 1
        %v773 = vrot.slane %v562, 1
        %v774 = vsel %vm753, %v772, %v773
        %v775 = vrot.slane %v507, 1
        %v776 = vrot.slane %v563, 1
        %v777 = vsel %vm753, %v775, %v776
        %v778 = vrot.slane %v508, 1
        %v779 = vrot.slane %v564, 1
        %v780 = vsel %vm753, %v778, %v779
        %v781 = vrot.slane %v509, 1
        %v782 = vrot.slane %v565, 1
        %v783 = vsel %vm753, %v781, %v782
        %v784 = vrot.slane %v510, 1
        %v785 = vrot.slane %v566, 1
        %v786 = vsel %vm753, %v784, %v785
        %v787 = vrot.slane %v511, 1
        %v788 = vrot.slane %v567, 1
        %v789 = vsel %vm753, %v787, %v788
        %v790 = vrot.slane %v512, 1
        %v791 = vrot.slane %v568, 1
        %v792 = vsel %vm753, %v790, %v791
        %v793 = vrot.slane %v513, 1
        %v794 = vrot.slane %v569, 1
        %v795 = vsel %vm753, %v793, %v794
        %v810 = vld [vmem:[#allocation5] sm:$0xf]
        %v811 = vld [vmem:[#allocation5 + $0x4] sm:$0xf]
        %v812 = vld [vmem:[#allocation5 + $0x8] sm:$0xf]
        %v813 = vld [vmem:[#allocation5 + $0xc] sm:$0xf]
        %v814 = vld [vmem:[#allocation5 + $0x10] sm:$0xf]
        %v815 = vld [vmem:[#allocation5 + $0x14] sm:$0xf]
        %v816 = vld [vmem:[#allocation5 + $0x18] sm:$0xf]
        %v817 = vld [vmem:[#allocation5 + $0x1c] sm:$0xf]
        %v818 = vld [vmem:[#allocation5 + $0x20] sm:$0xf]
        %v819 = vld [vmem:[#allocation5 + $0x24] sm:$0xf]
        %v820 = vld [vmem:[#allocation5 + $0x28] sm:$0xf]
        %v821 = vld [vmem:[#allocation5 + $0x2c] sm:$0xf]
        %v822 = vld [vmem:[#allocation5 + $0x30] sm:$0xf]
        %v823 = vld [vmem:[#allocation5 + $0x34] sm:$0xf]
        %v824 = vld [vmem:[#allocation5 + $0x38] sm:$0xf]
        %v825 = vld [vmem:[#allocation5 + $0x3c] sm:$0xf]
        %v826 = vld [vmem:[#allocation5 + $0x40] sm:$0xf]
        %v827 = vld [vmem:[#allocation5 + $0x44] sm:$0xf]
        %v828 = vld [vmem:[#allocation5 + $0x48] sm:$0xf]
        %v829 = vld [vmem:[#allocation5 + $0x4c] sm:$0xf]
        %v830 = vld [vmem:[#allocation5 + $0x50] sm:$0xf]
        %v831 = vld [vmem:[#allocation5 + $0x54] sm:$0xf]
        %v832 = vld [vmem:[#allocation5 + $0x58] sm:$0xf]
        %v833 = vld [vmem:[#allocation5 + $0x5c] sm:$0xf]
        %v834 = vld [vmem:[#allocation5 + $0x60] sm:$0xf]
        %v835 = vld [vmem:[#allocation5 + $0x64] sm:$0xf]
        %v836 = vld [vmem:[#allocation5 + $0x68] sm:$0xf]
        %v837 = vld [vmem:[#allocation5 + $0x6c] sm:$0xf]
        %v838 = vld [vmem:[#allocation5 + $0x70] sm:$0xf]
        %v839 = vld [vmem:[#allocation5 + $0x74] sm:$0xf]
        %v840 = vld [vmem:[#allocation5 + $0x78] sm:$0xf]
        %v841 = vld [vmem:[#allocation5 + $0x7c] sm:$0xf]
        %v842 = vld [vmem:[#allocation5 + $0x80] sm:$0xf]
        %v843 = vld [vmem:[#allocation5 + $0x84] sm:$0xf]
        %v844 = vld [vmem:[#allocation5 + $0x88] sm:$0xf]
        %v845 = vld [vmem:[#allocation5 + $0x8c] sm:$0xf]
        %v846 = vld [vmem:[#allocation5 + $0x90] sm:$0xf]
        %v847 = vld [vmem:[#allocation5 + $0x94] sm:$0xf]
        %v848 = vld [vmem:[#allocation5 + $0x98] sm:$0xf]
        %v849 = vld [vmem:[#allocation5 + $0x9c] sm:$0xf]
        %v850 = vld [vmem:[#allocation5 + $0xa0] sm:$0xf]
        %v851 = vld [vmem:[#allocation5 + $0xa4] sm:$0xf]
        %v852 = vld [vmem:[#allocation5 + $0xa8] sm:$0xf]
        %v853 = vld [vmem:[#allocation5 + $0xac] sm:$0xf]
        %v854 = vld [vmem:[#allocation5 + $0xb0] sm:$0xf]
        %v855 = vld [vmem:[#allocation5 + $0xb4] sm:$0xf]
        %v856 = vld [vmem:[#allocation5 + $0xb8] sm:$0xf]
        %v857 = vld [vmem:[#allocation5 + $0xbc] sm:$0xf]
        %s858 = scalar_lea.vmem [#allocation5], 192
        %v859 = vld [vmem:[%s858] sm:$0xf]
        %v860 = vld [vmem:[%s858 + $0x4] sm:$0xf]
        %v861 = vld [vmem:[%s858 + $0x8] sm:$0xf]
        %v862 = vld [vmem:[%s858 + $0xc] sm:$0xf]
        %v863 = vld [vmem:[%s858 + $0x10] sm:$0xf]
        %v864 = vld [vmem:[%s858 + $0x14] sm:$0xf]
        %v865 = vld [vmem:[%s858 + $0x18] sm:$0xf]
        %v866 = vld [vmem:[%s858 + $0x1c] sm:$0xf]
        %v867 = vld [vmem:[%s858 + $0x20] sm:$0xf]
        %v868 = vld [vmem:[%s858 + $0x24] sm:$0xf]
        %v869 = vld [vmem:[%s858 + $0x28] sm:$0xf]
        %v870 = vld [vmem:[%s858 + $0x2c] sm:$0xf]
        %v871 = vld [vmem:[%s858 + $0x30] sm:$0xf]
        %v872 = vld [vmem:[%s858 + $0x34] sm:$0xf]
        %v873 = vld [vmem:[%s858 + $0x38] sm:$0xf]
        %v874 = vld [vmem:[%s858 + $0x3c] sm:$0xf]
        %v875 = vld [vmem:[%s858 + $0x40] sm:$0xf]
        %v876 = vld [vmem:[%s858 + $0x44] sm:$0xf]
        %v877 = vld [vmem:[%s858 + $0x48] sm:$0xf]
        %v878 = vld [vmem:[%s858 + $0x4c] sm:$0xf]
        %v879 = vld [vmem:[%s858 + $0x50] sm:$0xf]
        %v880 = vld [vmem:[%s858 + $0x54] sm:$0xf]
        %v881 = vld [vmem:[%s858 + $0x58] sm:$0xf]
        %v882 = vld [vmem:[%s858 + $0x5c] sm:$0xf]
        %v883 = vld [vmem:[%s858 + $0x60] sm:$0xf]
        %v884 = vld [vmem:[%s858 + $0x64] sm:$0xf]
        %v885 = vld [vmem:[%s858 + $0x68] sm:$0xf]
        %v886 = vld [vmem:[%s858 + $0x6c] sm:$0xf]
        %v887 = vld [vmem:[%s858 + $0x70] sm:$0xf]
        %v888 = vld [vmem:[%s858 + $0x74] sm:$0xf]
        %v889 = vld [vmem:[%s858 + $0x78] sm:$0xf]
        %v890 = vld [vmem:[%s858 + $0x7c] sm:$0xf]
        %v891 = vld [vmem:[%s858 + $0x80] sm:$0xf]
        %v892 = vld [vmem:[%s858 + $0x84] sm:$0xf]
        %v893 = vld [vmem:[%s858 + $0x88] sm:$0xf]
        %v894 = vld [vmem:[%s858 + $0x8c] sm:$0xf]
        %v895 = vld [vmem:[%s858 + $0x90] sm:$0xf]
        %v896 = vld [vmem:[%s858 + $0x94] sm:$0xf]
        %v897 = vld [vmem:[%s858 + $0x98] sm:$0xf]
        %v898 = vld [vmem:[%s858 + $0x9c] sm:$0xf]
        %v899 = vld [vmem:[%s858 + $0xa0] sm:$0xf]
        %v900 = vld [vmem:[%s858 + $0xa4] sm:$0xf]
        %v901 = vld [vmem:[%s858 + $0xa8] sm:$0xf]
        %v902 = vld [vmem:[%s858 + $0xac] sm:$0xf]
        %v903 = vld [vmem:[%s858 + $0xb0] sm:$0xf]
        %v904 = vld [vmem:[%s858 + $0xb4] sm:$0xf]
        %v905 = vld [vmem:[%s858 + $0xb8] sm:$0xf]
        %v906 = vld [vmem:[%s858 + $0xbc] sm:$0xf]
        %v955 = vunpack.c.l.b16 %v859
        %v956 = vunpack.c.l.b16 %v860
        %v957 = vunpack.c.l.b16 %v861
        %v958 = vunpack.c.l.b16 %v862
        %v959 = vunpack.c.l.b16 %v863
        %v960 = vunpack.c.l.b16 %v864
        %v961 = vunpack.c.l.b16 %v865
        %v962 = vunpack.c.l.b16 %v866
        %v963 = vunpack.c.l.b16 %v867
        %v964 = vunpack.c.l.b16 %v868
        %v965 = vunpack.c.l.b16 %v869
        %v966 = vunpack.c.l.b16 %v870
        %v967 = vunpack.c.l.b16 %v871
        %v968 = vunpack.c.l.b16 %v872
        %v969 = vunpack.c.l.b16 %v873
        %v970 = vunpack.c.l.b16 %v874
        %v971 = vunpack.c.l.b16 %v875
        %v972 = vunpack.c.l.b16 %v876
        %v973 = vunpack.c.l.b16 %v877
        %v974 = vunpack.c.l.b16 %v878
        %v975 = vunpack.c.l.b16 %v879
        %v976 = vunpack.c.l.b16 %v880
        %v977 = vunpack.c.l.b16 %v881
        %v978 = vunpack.c.l.b16 %v882
        %v979 = vunpack.c.l.b16 %v883
        %v980 = vunpack.c.l.b16 %v884
        %v981 = vunpack.c.l.b16 %v885
        %v982 = vunpack.c.l.b16 %v886
        %v983 = vunpack.c.l.b16 %v887
        %v984 = vunpack.c.l.b16 %v888
        %v985 = vunpack.c.l.b16 %v889
        %v986 = vunpack.c.l.b16 %v890
        %v987 = vunpack.c.l.b16 %v891
        %v988 = vunpack.c.l.b16 %v892
        %v989 = vunpack.c.l.b16 %v893
        %v990 = vunpack.c.l.b16 %v894
        %v991 = vunpack.c.l.b16 %v895
        %v992 = vunpack.c.l.b16 %v896
        %v993 = vunpack.c.l.b16 %v897
        %v994 = vunpack.c.l.b16 %v898
        %v995 = vunpack.c.l.b16 %v899
        %v996 = vunpack.c.l.b16 %v900
        %v997 = vunpack.c.l.b16 %v901
        %v998 = vunpack.c.l.b16 %v902
        %v999 = vunpack.c.l.b16 %v903
        %v1000 = vunpack.c.l.b16 %v904
        %v1001 = vunpack.c.l.b16 %v905
        %v1002 = vunpack.c.l.b16 %v906
        %v1003 = vpack.c.b16 %v956, %v955
        %v1004 = vpack.c.b16 %v958, %v957
        %v1005 = vpack.c.b16 %v960, %v959
        %v1006 = vpack.c.b16 %v962, %v961
        %v1007 = vpack.c.b16 %v964, %v963
        %v1008 = vpack.c.b16 %v966, %v965
        %v1009 = vpack.c.b16 %v968, %v967
        %v1010 = vpack.c.b16 %v970, %v969
        %v1011 = vpack.c.b16 %v972, %v971
        %v1012 = vpack.c.b16 %v974, %v973
        %v1013 = vpack.c.b16 %v976, %v975
        %v1014 = vpack.c.b16 %v978, %v977
        %v1015 = vpack.c.b16 %v980, %v979
        %v1016 = vpack.c.b16 %v982, %v981
        %v1017 = vpack.c.b16 %v984, %v983
        %v1018 = vpack.c.b16 %v986, %v985
        %v1019 = vpack.c.b16 %v988, %v987
        %v1020 = vpack.c.b16 %v990, %v989
        %v1021 = vpack.c.b16 %v992, %v991
        %v1022 = vpack.c.b16 %v994, %v993
        %v1023 = vpack.c.b16 %v996, %v995
        %v1024 = vpack.c.b16 %v998, %v997
        %v1025 = vpack.c.b16 %v1000, %v999
        %v1026 = vpack.c.b16 %v1002, %v1001
        %1051 = vmatprep.subr.bf16.mxu0 0
        %1052 = vmatpush1.bf16.msra.mxu0 %v1003
        %1053 = vmatprep.subr.bf16.mxu0 0
        %1054 = vmatpush1.bf16.msra.mxu0 %v1004
        %1055 = vmatprep.subr.bf16.mxu0 0
        %1056 = vmatpush1.bf16.msra.mxu0 %v1005
        %1057 = vmatprep.subr.bf16.mxu0 0
        %1058 = vmatpush1.bf16.msra.mxu0 %v1006
        %1059 = vmatprep.subr.bf16.mxu0 0
        %1060 = vmatpush1.bf16.msra.mxu0 %v1007
        %1061 = vmatprep.subr.bf16.mxu0 0
        %1062 = vmatpush1.bf16.msra.mxu0 %v1008
        %1063 = vmatprep.subr.bf16.mxu0 0
        %1064 = vmatpush1.bf16.msra.mxu0 %v1009
        %1065 = vmatprep.subr.bf16.mxu0 0
        %1066 = vmatpush1.bf16.msra.mxu0 %v1010
        %1067 = vmatprep.subr.bf16.mxu0 0
        %1068 = vmatpush1.bf16.msra.mxu0 %v1011
        %1069 = vmatprep.subr.bf16.mxu0 0
        %1070 = vmatpush1.bf16.msra.mxu0 %v1012
        %1071 = vmatprep.subr.bf16.mxu0 0
        %1072 = vmatpush1.bf16.msra.mxu0 %v1013
        %1073 = vmatprep.subr.bf16.mxu0 0
        %1074 = vmatpush1.bf16.msra.mxu0 %v1014
        %1075 = vmatprep.subr.bf16.mxu0 0
        %1076 = vmatpush1.bf16.msra.mxu0 %v1015
        %1077 = vmatprep.subr.bf16.mxu0 0
        %1078 = vmatpush1.bf16.msra.mxu0 %v1016
        %1079 = vmatprep.subr.bf16.mxu0 0
        %1080 = vmatpush1.bf16.msra.mxu0 %v1017
        %1081 = vmatprep.subr.bf16.mxu0 0
        %1082 = vmatpush1.bf16.msra.mxu0 %v1018
        %1083 = vmatprep.mubr.bf16.mxu0 %v594
        %1084 = vmatmul.mubr.bf16.gmra.mrb[0].mxu0 %v501
        %v1085 = vpop.f32.mrb[0].mxu0
        %v1086 = vadd.f32 0.0, %v1085
        %v1087 = vpop.f32.mrb[0].mxu0
        %v1088 = vpop.f32.mrb[0].mxu0
        %v1089 = vadd.f32 0.0, %v1088
        %v1090 = vpop.f32.mrb[0].mxu0
        %1091 = vmatprep.mubr.bf16.mxu0 %v606
        %1092 = vmatmul.mubr.bf16.gmra.mrb[0].mxu0 %v502
        %v1093 = vpop.f32.mrb[0].mxu0
        %v1094 = vadd.f32 0.0, %v1093
        %v1095 = vpop.f32.mrb[0].mxu0
        %v1096 = vpop.f32.mrb[0].mxu0
        %v1097 = vadd.f32 0.0, %v1096
        %v1098 = vpop.f32.mrb[0].mxu0
        %1099 = vmatprep.mubr.bf16.mxu0 %v618
        %1100 = vmatmul.mubr.bf16.gmra.mrb[0].mxu0 %v503
        %v1101 = vpop.f32.mrb[0].mxu0
        %v1102 = vadd.f32 0.0, %v1101
        %v1103 = vpop.f32.mrb[0].mxu0
        %v1104 = vpop.f32.mrb[0].mxu0
        %v1105 = vadd.f32 0.0, %v1104
        %v1106 = vpop.f32.mrb[0].mxu0
        %1107 = vmatprep.mubr.bf16.mxu0 %v630
        %1108 = vmatmul.mubr.bf16.gmra.mrb[0].mxu0 %v504
        %v1109 = vpop.f32.mrb[0].mxu0
        %v1110 = vadd.f32 0.0, %v1109
        %v1111 = vpop.f32.mrb[0].mxu0
        %v1112 = vpop.f32.mrb[0].mxu0
        %v1113 = vadd.f32 0.0, %v1112
        %v1114 = vpop.f32.mrb[0].mxu0
        %1115 = vmatprep.mubr.bf16.mxu0 %v642
        %1116 = vmatmul.mubr.bf16.gmra.mrb[0].mxu0 %v505
        %v1117 = vpop.f32.mrb[0].mxu0
        %v1118 = vadd.f32 0.0, %v1117
        %v1119 = vpop.f32.mrb[0].mxu0
        %v1120 = vpop.f32.mrb[0].mxu0
        %v1121 = vadd.f32 0.0, %v1120
        %v1122 = vpop.f32.mrb[0].mxu0
        %1123 = vmatprep.mubr.bf16.mxu0 %v654
        %1124 = vmatmul.mubr.bf16.gmra.mrb[0].mxu0 %v506
        %v1125 = vpop.f32.mrb[0].mxu0
        %v1126 = vadd.f32 0.0, %v1125
        %v1127 = vpop.f32.mrb[0].mxu0
        %v1128 = vpop.f32.mrb[0].mxu0
        %v1129 = vadd.f32 0.0, %v1128
        %v1130 = vpop.f32.mrb[0].mxu0
        %1131 = vmatprep.mubr.bf16.mxu0 %v666
        %1132 = vmatmul.mubr.bf16.gmra.mrb[0].mxu0 %v507
        %v1133 = vpop.f32.mrb[0].mxu0
        %v1134 = vadd.f32 0.0, %v1133
        %v1135 = vpop.f32.mrb[0].mxu0
        %v1136 = vpop.f32.mrb[0].mxu0
        %v1137 = vadd.f32 0.0, %v1136
        %v1138 = vpop.f32.mrb[0].mxu0
        %1139 = vmatprep.mubr.bf16.mxu0 %v678
        %1140 = vmatmul.mubr.bf16.gmra.mrb[0].mxu0 %v508
        %v1141 = vpop.f32.mrb[0].mxu0
        %v1142 = vadd.f32 0.0, %v1141
        %v1143 = vpop.f32.mrb[0].mxu0
        %v1144 = vpop.f32.mrb[0].mxu0
        %v1145 = vadd.f32 0.0, %v1144
        %v1146 = vpop.f32.mrb[0].mxu0
        %1147 = vmatprep.mubr.bf16.mxu0 %v690
        %1148 = vmatmul.mubr.bf16.gmra.mrb[0].mxu0 %v509
        %v1149 = vpop.f32.mrb[0].mxu0
        %v1150 = vadd.f32 0.0, %v1149
        %v1151 = vpop.f32.mrb[0].mxu0
        %v1152 = vpop.f32.mrb[0].mxu0
        %v1153 = vadd.f32 0.0, %v1152
        %v1154 = vpop.f32.mrb[0].mxu0
        %1155 = vmatprep.mubr.bf16.mxu0 %v702
        %1156 = vmatmul.mubr.bf16.gmra.mrb[0].mxu0 %v510
        %v1157 = vpop.f32.mrb[0].mxu0
        %v1158 = vadd.f32 0.0, %v1157
        %v1159 = vpop.f32.mrb[0].mxu0
        %v1160 = vpop.f32.mrb[0].mxu0
        %v1161 = vadd.f32 0.0, %v1160
        %v1162 = vpop.f32.mrb[0].mxu0
        %1163 = vmatprep.mubr.bf16.mxu0 %v714
        %1164 = vmatmul.mubr.bf16.gmra.mrb[0].mxu0 %v511
        %v1165 = vpop.f32.mrb[0].mxu0
        %v1166 = vadd.f32 0.0, %v1165
        %v1167 = vpop.f32.mrb[0].mxu0
        %v1168 = vpop.f32.mrb[0].mxu0
        %v1169 = vadd.f32 0.0, %v1168
        %v1170 = vpop.f32.mrb[0].mxu0
        %1171 = vmatprep.mubr.bf16.mxu0 %v726
        %1172 = vmatmul.mubr.bf16.gmra.mrb[0].mxu0 %v512
        %v1173 = vpop.f32.mrb[0].mxu0
        %v1174 = vadd.f32 0.0, %v1173
        %v1175 = vpop.f32.mrb[0].mxu0
        %v1176 = vpop.f32.mrb[0].mxu0
        %v1177 = vadd.f32 0.0, %v1176
        %v1178 = vpop.f32.mrb[0].mxu0
        %1179 = vdwg.mxu0
        %1180 = vmatprep.subr.bf16.mxu0 0
        %1181 = vmatpush1.bf16.msra.mxu0 %v1019
        %1182 = vmatprep.subr.bf16.mxu0 0
        %1183 = vmatpush1.bf16.msra.mxu0 %v1020
        %1184 = vmatprep.subr.bf16.mxu0 0
        %1185 = vmatpush1.bf16.msra.mxu0 %v1021
        %1186 = vmatprep.subr.bf16.mxu0 0
        %1187 = vmatpush1.bf16.msra.mxu0 %v1022
        %1188 = vmatprep.subr.bf16.mxu0 0
        %1189 = vmatpush1.bf16.msra.mxu0 %v1023
        %1190 = vmatprep.subr.bf16.mxu0 0
        %1191 = vmatpush1.bf16.msra.mxu0 %v1024
        %1192 = vmatprep.subr.bf16.mxu0 0
        %1193 = vmatpush1.bf16.msra.mxu0 %v1025
        %1194 = vmatprep.subr.bf16.mxu0 0
        %1195 = vmatpush1.bf16.msra.mxu0 %v1026
        %1196 = vmatprep.subr.bf16.mxu0 0
        %1197 = vmatpush1.bf16.msra.mxu0 0
        %1198 = vmatprep.subr.bf16.mxu0 0
        %1199 = vmatpush1.bf16.msra.mxu0 0
        %1200 = vmatprep.subr.bf16.mxu0 0
        %1201 = vmatpush1.bf16.msra.mxu0 0
        %1202 = vmatprep.subr.bf16.mxu0 0
        %1203 = vmatpush1.bf16.msra.mxu0 0
        %1204 = vmatprep.subr.bf16.mxu0 0
        %1205 = vmatpush1.bf16.msra.mxu0 0
        %1206 = vmatprep.subr.bf16.mxu0 0
        %1207 = vmatpush1.bf16.msra.mxu0 0
        %1208 = vmatprep.subr.bf16.mxu0 0
        %1209 = vmatpush1.bf16.msra.mxu0 0
        %1210 = vmatprep.subr.bf16.mxu0 0
        %1211 = vmatpush1.bf16.msra.mxu0 0
        %1212 = vmatprep.mubr.bf16.mxu0 0
        %1213 = vmatmul.mubr.bf16.gmra.mrb[0].mxu0 %v759
        %v1214 = vpop.f32.mrb[0].mxu0
        %v1215 = vadd.f32 %v1086, %v1214
        %v1216 = vpop.f32.mrb[0].mxu0
        %v1217 = vpop.f32.mrb[0].mxu0
        %v1218 = vadd.f32 %v1089, %v1217
        %v1219 = vpop.f32.mrb[0].mxu0
        %1220 = vmatprep.mubr.bf16.mxu0 0
        %1221 = vmatmul.mubr.bf16.gmra.mrb[0].mxu0 %v762
        %v1222 = vpop.f32.mrb[0].mxu0
        %v1223 = vadd.f32 %v1094, %v1222
        %v1224 = vpop.f32.mrb[0].mxu0
        %v1225 = vpop.f32.mrb[0].mxu0
        %v1226 = vadd.f32 %v1097, %v1225
        %v1227 = vpop.f32.mrb[0].mxu0
        %1228 = vmatprep.mubr.bf16.mxu0 0
        %1229 = vmatmul.mubr.bf16.gmra.mrb[0].mxu0 %v765
        %v1230 = vpop.f32.mrb[0].mxu0
        %v1231 = vadd.f32 %v1102, %v1230
        %v1232 = vpop.f32.mrb[0].mxu0
        %v1233 = vpop.f32.mrb[0].mxu0
        %v1234 = vadd.f32 %v1105, %v1233
        %v1235 = vpop.f32.mrb[0].mxu0
        %1236 = vmatprep.mubr.bf16.mxu0 0
        %1237 = vmatmul.mubr.bf16.gmra.mrb[0].mxu0 %v768
        %v1238 = vpop.f32.mrb[0].mxu0
        %v1239 = vadd.f32 %v1110, %v1238
        %v1240 = vpop.f32.mrb[0].mxu0
        %v1241 = vpop.f32.mrb[0].mxu0
        %v1242 = vadd.f32 %v1113, %v1241
        %v1243 = vpop.f32.mrb[0].mxu0
        %1244 = vmatprep.mubr.bf16.mxu0 0
        %1245 = vmatmul.mubr.bf16.gmra.mrb[0].mxu0 %v771
        %v1246 = vpop.f32.mrb[0].mxu0
        %v1247 = vadd.f32 %v1118, %v1246
        %v1248 = vpop.f32.mrb[0].mxu0
        %v1249 = vpop.f32.mrb[0].mxu0
        %v1250 = vadd.f32 %v1121, %v1249
        %v1251 = vpop.f32.mrb[0].mxu0
        %1252 = vmatprep.mubr.bf16.mxu0 0
        %1253 = vmatmul.mubr.bf16.gmra.mrb[0].mxu0 %v774
        %v1254 = vpop.f32.mrb[0].mxu0
        %v1255 = vadd.f32 %v1126, %v1254
        %v1256 = vpop.f32.mrb[0].mxu0
        %v1257 = vpop.f32.mrb[0].mxu0
        %v1258 = vadd.f32 %v1129, %v1257
        %v1259 = vpop.f32.mrb[0].mxu0
        %1260 = vmatprep.mubr.bf16.mxu0 0
        %1261 = vmatmul.mubr.bf16.gmra.mrb[0].mxu0 %v777
        %v1262 = vpop.f32.mrb[0].mxu0
        %v1263 = vadd.f32 %v1134, %v1262
        %v1264 = vpop.f32.mrb[0].mxu0
        %v1265 = vpop.f32.mrb[0].mxu0
        %v1266 = vadd.f32 %v1137, %v1265
        %v1267 = vpop.f32.mrb[0].mxu0
        %1268 = vmatprep.mubr.bf16.mxu0 0
        %1269 = vmatmul.mubr.bf16.gmra.mrb[0].mxu0 %v780
        %v1270 = vpop.f32.mrb[0].mxu0
        %v1271 = vadd.f32 %v1142, %v1270
        %v1272 = vpop.f32.mrb[0].mxu0
        %v1273 = vpop.f32.mrb[0].mxu0
        %v1274 = vadd.f32 %v1145, %v1273
        %v1275 = vpop.f32.mrb[0].mxu0
        %1276 = vmatprep.mubr.bf16.mxu0 0
        %1277 = vmatmul.mubr.bf16.gmra.mrb[0].mxu0 %v783
        %v1278 = vpop.f32.mrb[0].mxu0
        %v1279 = vadd.f32 %v1150, %v1278
        %v1280 = vpop.f32.mrb[0].mxu0
        %v1281 = vpop.f32.mrb[0].mxu0
        %v1282 = vadd.f32 %v1153, %v1281
        %v1283 = vpop.f32.mrb[0].mxu0
        %1284 = vmatprep.mubr.bf16.mxu0 0
        %1285 = vmatmul.mubr.bf16.gmra.mrb[0].mxu0 %v786
        %v1286 = vpop.f32.mrb[0].mxu0
        %v1287 = vadd.f32 %v1158, %v1286
        %v1288 = vpop.f32.mrb[0].mxu0
        %v1289 = vpop.f32.mrb[0].mxu0
        %v1290 = vadd.f32 %v1161, %v1289
        %v1291 = vpop.f32.mrb[0].mxu0
        %1292 = vmatprep.mubr.bf16.mxu0 0
        %1293 = vmatmul.mubr.bf16.gmra.mrb[0].mxu0 %v789
        %v1294 = vpop.f32.mrb[0].mxu0
        %v1295 = vadd.f32 %v1166, %v1294
        %v1296 = vpop.f32.mrb[0].mxu0
        %v1297 = vpop.f32.mrb[0].mxu0
        %v1298 = vadd.f32 %v1169, %v1297
        %v1299 = vpop.f32.mrb[0].mxu0
        %1300 = vmatprep.mubr.bf16.mxu0 0
        %1301 = vmatmul.mubr.bf16.gmra.mrb[0].mxu0 %v792
        %v1302 = vpop.f32.mrb[0].mxu0
        %v1303 = vadd.f32 %v1174, %v1302
        %v1304 = vpop.f32.mrb[0].mxu0
        %v1305 = vpop.f32.mrb[0].mxu0
        %v1306 = vadd.f32 %v1177, %v1305
        %v1307 = vpop.f32.mrb[0].mxu0
        %1308 = vdwg.mxu0
        %v1357 = vunpack.c.l.b16 %v810
        %v1358 = vunpack.c.l.b16 %v811
        %v1359 = vunpack.c.l.b16 %v812
        %v1360 = vunpack.c.l.b16 %v813
        %v1361 = vunpack.c.l.b16 %v814
        %v1362 = vunpack.c.l.b16 %v815
        %v1363 = vunpack.c.l.b16 %v816
        %v1364 = vunpack.c.l.b16 %v817
        %v1365 = vunpack.c.l.b16 %v818
        %v1366 = vunpack.c.l.b16 %v819
        %v1367 = vunpack.c.l.b16 %v820
        %v1368 = vunpack.c.l.b16 %v821
        %v1369 = vunpack.c.l.b16 %v822
        %v1370 = vunpack.c.l.b16 %v823
        %v1371 = vunpack.c.l.b16 %v824
        %v1372 = vunpack.c.l.b16 %v825
        %v1373 = vunpack.c.l.b16 %v826
        %v1374 = vunpack.c.l.b16 %v827
        %v1375 = vunpack.c.l.b16 %v828
        %v1376 = vunpack.c.l.b16 %v829
        %v1377 = vunpack.c.l.b16 %v830
        %v1378 = vunpack.c.l.b16 %v831
        %v1379 = vunpack.c.l.b16 %v832
        %v1380 = vunpack.c.l.b16 %v833
        %v1381 = vunpack.c.l.b16 %v834
        %v1382 = vunpack.c.l.b16 %v835
        %v1383 = vunpack.c.l.b16 %v836
        %v1384 = vunpack.c.l.b16 %v837
        %v1385 = vunpack.c.l.b16 %v838
        %v1386 = vunpack.c.l.b16 %v839
        %v1387 = vunpack.c.l.b16 %v840
        %v1388 = vunpack.c.l.b16 %v841
        %v1389 = vunpack.c.l.b16 %v842
        %v1390 = vunpack.c.l.b16 %v843
        %v1391 = vunpack.c.l.b16 %v844
        %v1392 = vunpack.c.l.b16 %v845
        %v1393 = vunpack.c.l.b16 %v846
        %v1394 = vunpack.c.l.b16 %v847
        %v1395 = vunpack.c.l.b16 %v848
        %v1396 = vunpack.c.l.b16 %v849
        %v1397 = vunpack.c.l.b16 %v850
        %v1398 = vunpack.c.l.b16 %v851
        %v1399 = vunpack.c.l.b16 %v852
        %v1400 = vunpack.c.l.b16 %v853
        %v1401 = vunpack.c.l.b16 %v854
        %v1402 = vunpack.c.l.b16 %v855
        %v1403 = vunpack.c.l.b16 %v856
        %v1404 = vunpack.c.l.b16 %v857
        %v1405 = vpack.c.b16 %v1358, %v1357
        %v1406 = vpack.c.b16 %v1360, %v1359
        %v1407 = vpack.c.b16 %v1362, %v1361
        %v1408 = vpack.c.b16 %v1364, %v1363
        %v1409 = vpack.c.b16 %v1366, %v1365
        %v1410 = vpack.c.b16 %v1368, %v1367
        %v1411 = vpack.c.b16 %v1370, %v1369
        %v1412 = vpack.c.b16 %v1372, %v1371
        %v1413 = vpack.c.b16 %v1374, %v1373
        %v1414 = vpack.c.b16 %v1376, %v1375
        %v1415 = vpack.c.b16 %v1378, %v1377
        %v1416 = vpack.c.b16 %v1380, %v1379
        %v1417 = vpack.c.b16 %v1382, %v1381
        %v1418 = vpack.c.b16 %v1384, %v1383
        %v1419 = vpack.c.b16 %v1386, %v1385
        %v1420 = vpack.c.b16 %v1388, %v1387
        %v1421 = vpack.c.b16 %v1390, %v1389
        %v1422 = vpack.c.b16 %v1392, %v1391
        %v1423 = vpack.c.b16 %v1394, %v1393
        %v1424 = vpack.c.b16 %v1396, %v1395
        %v1425 = vpack.c.b16 %v1398, %v1397
        %v1426 = vpack.c.b16 %v1400, %v1399
        %v1427 = vpack.c.b16 %v1402, %v1401
        %v1428 = vpack.c.b16 %v1404, %v1403
        %1453 = vmatprep.subr.bf16.mxu0 0
        %1454 = vmatpush1.bf16.msra.mxu0 %v1405
        %1455 = vmatprep.subr.bf16.mxu0 0
        %1456 = vmatpush1.bf16.msra.mxu0 %v1406
        %1457 = vmatprep.subr.bf16.mxu0 0
        %1458 = vmatpush1.bf16.msra.mxu0 %v1407
        %1459 = vmatprep.subr.bf16.mxu0 0
        %1460 = vmatpush1.bf16.msra.mxu0 %v1408
        %1461 = vmatprep.subr.bf16.mxu0 0
        %1462 = vmatpush1.bf16.msra.mxu0 %v1409
        %1463 = vmatprep.subr.bf16.mxu0 0
        %1464 = vmatpush1.bf16.msra.mxu0 %v1410
        %1465 = vmatprep.subr.bf16.mxu0 0
        %1466 = vmatpush1.bf16.msra.mxu0 %v1411
        %1467 = vmatprep.subr.bf16.mxu0 0
        %1468 = vmatpush1.bf16.msra.mxu0 %v1412
        %1469 = vmatprep.subr.bf16.mxu0 0
        %1470 = vmatpush1.bf16.msra.mxu0 %v1413
        %1471 = vmatprep.subr.bf16.mxu0 0
        %1472 = vmatpush1.bf16.msra.mxu0 %v1414
        %1473 = vmatprep.subr.bf16.mxu0 0
        %1474 = vmatpush1.bf16.msra.mxu0 %v1415
        %1475 = vmatprep.subr.bf16.mxu0 0
        %1476 = vmatpush1.bf16.msra.mxu0 %v1416
        %1477 = vmatprep.subr.bf16.mxu0 0
        %1478 = vmatpush1.bf16.msra.mxu0 %v1417
        %1479 = vmatprep.subr.bf16.mxu0 0
        %1480 = vmatpush1.bf16.msra.mxu0 %v1418
        %1481 = vmatprep.subr.bf16.mxu0 0
        %1482 = vmatpush1.bf16.msra.mxu0 %v1419
        %1483 = vmatprep.subr.bf16.mxu0 0
        %1484 = vmatpush1.bf16.msra.mxu0 %v1420
        %1485 = vmatprep.mubr.bf16.mxu0 %v582
        %1486 = vmatmul.mubr.bf16.gmra.mrb[0].mxu0 %v500
        %v1487 = vpop.f32.mrb[0].mxu0
        %v1488 = vadd.f32 %v1215, %v1487
        %v1489 = vpop.f32.mrb[0].mxu0
        %v1490 = vpop.f32.mrb[0].mxu0
        %v1491 = vadd.f32 %v1218, %v1490
        %v1492 = vpop.f32.mrb[0].mxu0
        %1493 = vmatprep.mubr.bf16.mxu0 %v594
        %1494 = vmatmul.mubr.bf16.gmra.mrb[0].mxu0 %v501
        %v1495 = vpop.f32.mrb[0].mxu0
        %v1496 = vadd.f32 %v1223, %v1495
        %v1497 = vpop.f32.mrb[0].mxu0
        %v1498 = vpop.f32.mrb[0].mxu0
        %v1499 = vadd.f32 %v1226, %v1498
        %v1500 = vpop.f32.mrb[0].mxu0
        %1501 = vmatprep.mubr.bf16.mxu0 %v606
        %1502 = vmatmul.mubr.bf16.gmra.mrb[0].mxu0 %v502
        %v1503 = vpop.f32.mrb[0].mxu0
        %v1504 = vadd.f32 %v1231, %v1503
        %v1505 = vpop.f32.mrb[0].mxu0
        %v1506 = vpop.f32.mrb[0].mxu0
        %v1507 = vadd.f32 %v1234, %v1506
        %v1508 = vpop.f32.mrb[0].mxu0
        %1509 = vmatprep.mubr.bf16.mxu0 %v618
        %1510 = vmatmul.mubr.bf16.gmra.mrb[0].mxu0 %v503
        %v1511 = vpop.f32.mrb[0].mxu0
        %v1512 = vadd.f32 %v1239, %v1511
        %v1513 = vpop.f32.mrb[0].mxu0
        %v1514 = vpop.f32.mrb[0].mxu0
        %v1515 = vadd.f32 %v1242, %v1514
        %v1516 = vpop.f32.mrb[0].mxu0
        %1517 = vmatprep.mubr.bf16.mxu0 %v630
        %1518 = vmatmul.mubr.bf16.gmra.mrb[0].mxu0 %v504
        %v1519 = vpop.f32.mrb[0].mxu0
        %v1520 = vadd.f32 %v1247, %v1519
        %v1521 = vpop.f32.mrb[0].mxu0
        %v1522 = vpop.f32.mrb[0].mxu0
        %v1523 = vadd.f32 %v1250, %v1522
        %v1524 = vpop.f32.mrb[0].mxu0
        %1525 = vmatprep.mubr.bf16.mxu0 %v642
        %1526 = vmatmul.mubr.bf16.gmra.mrb[0].mxu0 %v505
        %v1527 = vpop.f32.mrb[0].mxu0
        %v1528 = vadd.f32 %v1255, %v1527
        %v1529 = vpop.f32.mrb[0].mxu0
        %v1530 = vpop.f32.mrb[0].mxu0
        %v1531 = vadd.f32 %v1258, %v1530
        %v1532 = vpop.f32.mrb[0].mxu0
        %1533 = vmatprep.mubr.bf16.mxu0 %v654
        %1534 = vmatmul.mubr.bf16.gmra.mrb[0].mxu0 %v506
        %v1535 = vpop.f32.mrb[0].mxu0
        %v1536 = vadd.f32 %v1263, %v1535
        %v1537 = vpop.f32.mrb[0].mxu0
        %v1538 = vpop.f32.mrb[0].mxu0
        %v1539 = vadd.f32 %v1266, %v1538
        %v1540 = vpop.f32.mrb[0].mxu0
        %1541 = vmatprep.mubr.bf16.mxu0 %v666
        %1542 = vmatmul.mubr.bf16.gmra.mrb[0].mxu0 %v507
        %v1543 = vpop.f32.mrb[0].mxu0
        %v1544 = vadd.f32 %v1271, %v1543
        %v1545 = vpop.f32.mrb[0].mxu0
        %v1546 = vpop.f32.mrb[0].mxu0
        %v1547 = vadd.f32 %v1274, %v1546
        %v1548 = vpop.f32.mrb[0].mxu0
        %1549 = vmatprep.mubr.bf16.mxu0 %v678
        %1550 = vmatmul.mubr.bf16.gmra.mrb[0].mxu0 %v508
        %v1551 = vpop.f32.mrb[0].mxu0
        %v1552 = vadd.f32 %v1279, %v1551
        %v1553 = vpop.f32.mrb[0].mxu0
        %v1554 = vpop.f32.mrb[0].mxu0
        %v1555 = vadd.f32 %v1282, %v1554
        %v1556 = vpop.f32.mrb[0].mxu0
        %1557 = vmatprep.mubr.bf16.mxu0 %v690
        %1558 = vmatmul.mubr.bf16.gmra.mrb[0].mxu0 %v509
        %v1559 = vpop.f32.mrb[0].mxu0
        %v1560 = vadd.f32 %v1287, %v1559
        %v1561 = vpop.f32.mrb[0].mxu0
        %v1562 = vpop.f32.mrb[0].mxu0
        %v1563 = vadd.f32 %v1290, %v1562
        %v1564 = vpop.f32.mrb[0].mxu0
        %1565 = vmatprep.mubr.bf16.mxu0 %v702
        %1566 = vmatmul.mubr.bf16.gmra.mrb[0].mxu0 %v510
        %v1567 = vpop.f32.mrb[0].mxu0
        %v1568 = vadd.f32 %v1295, %v1567
        %v1569 = vpop.f32.mrb[0].mxu0
        %v1570 = vpop.f32.mrb[0].mxu0
        %v1571 = vadd.f32 %v1298, %v1570
        %v1572 = vpop.f32.mrb[0].mxu0
        %1573 = vmatprep.mubr.bf16.mxu0 %v714
        %1574 = vmatmul.mubr.bf16.gmra.mrb[0].mxu0 %v511
        %v1575 = vpop.f32.mrb[0].mxu0
        %v1576 = vadd.f32 %v1303, %v1575
        %v1577 = vpop.f32.mrb[0].mxu0
        %v1578 = vpop.f32.mrb[0].mxu0
        %v1579 = vadd.f32 %v1306, %v1578
        %v1580 = vpop.f32.mrb[0].mxu0
        %1581 = vdwg.mxu0
        %1582 = vmatprep.subr.bf16.mxu0 0
        %1583 = vmatpush1.bf16.msra.mxu0 %v1421
        %1584 = vmatprep.subr.bf16.mxu0 0
        %1585 = vmatpush1.bf16.msra.mxu0 %v1422
        %1586 = vmatprep.subr.bf16.mxu0 0
        %1587 = vmatpush1.bf16.msra.mxu0 %v1423
        %1588 = vmatprep.subr.bf16.mxu0 0
        %1589 = vmatpush1.bf16.msra.mxu0 %v1424
        %1590 = vmatprep.subr.bf16.mxu0 0
        %1591 = vmatpush1.bf16.msra.mxu0 %v1425
        %1592 = vmatprep.subr.bf16.mxu0 0
        %1593 = vmatpush1.bf16.msra.mxu0 %v1426
        %1594 = vmatprep.subr.bf16.mxu0 0
        %1595 = vmatpush1.bf16.msra.mxu0 %v1427
        %1596 = vmatprep.subr.bf16.mxu0 0
        %1597 = vmatpush1.bf16.msra.mxu0 %v1428
        %1598 = vmatprep.subr.bf16.mxu0 0
        %1599 = vmatpush1.bf16.msra.mxu0 0
        %1600 = vmatprep.subr.bf16.mxu0 0
        %1601 = vmatpush1.bf16.msra.mxu0 0
        %1602 = vmatprep.subr.bf16.mxu0 0
        %1603 = vmatpush1.bf16.msra.mxu0 0
        %1604 = vmatprep.subr.bf16.mxu0 0
        %1605 = vmatpush1.bf16.msra.mxu0 0
        %1606 = vmatprep.subr.bf16.mxu0 0
        %1607 = vmatpush1.bf16.msra.mxu0 0
        %1608 = vmatprep.subr.bf16.mxu0 0
        %1609 = vmatpush1.bf16.msra.mxu0 0
        %1610 = vmatprep.subr.bf16.mxu0 0
        %1611 = vmatpush1.bf16.msra.mxu0 0
        %1612 = vmatprep.subr.bf16.mxu0 0
        %1613 = vmatpush1.bf16.msra.mxu0 0
        %1614 = vmatprep.mubr.bf16.mxu0 0
        %1615 = vmatmul.mubr.bf16.gmra.mrb[0].mxu0 %v756
        %v1616 = vpop.f32.mrb[0].mxu0
        %v1617 = vadd.f32 %v1488, %v1616
        %v1618 = vpop.f32.mrb[0].mxu0
        %v1619 = vpop.f32.mrb[0].mxu0
        %v1620 = vadd.f32 %v1491, %v1619
        %v1621 = vpop.f32.mrb[0].mxu0
        %1622 = vmatprep.mubr.bf16.mxu0 0
        %1623 = vmatmul.mubr.bf16.gmra.mrb[0].mxu0 %v759
        %v1624 = vpop.f32.mrb[0].mxu0
        %v1625 = vadd.f32 %v1496, %v1624
        %v1626 = vpop.f32.mrb[0].mxu0
        %v1627 = vpop.f32.mrb[0].mxu0
        %v1628 = vadd.f32 %v1499, %v1627
        %v1629 = vpop.f32.mrb[0].mxu0
        %1630 = vmatprep.mubr.bf16.mxu0 0
        %1631 = vmatmul.mubr.bf16.gmra.mrb[0].mxu0 %v762
        %v1632 = vpop.f32.mrb[0].mxu0
        %v1633 = vadd.f32 %v1504, %v1632
        %v1634 = vpop.f32.mrb[0].mxu0
        %v1635 = vpop.f32.mrb[0].mxu0
        %v1636 = vadd.f32 %v1507, %v1635
        %v1637 = vpop.f32.mrb[0].mxu0
        %1638 = vmatprep.mubr.bf16.mxu0 0
        %1639 = vmatmul.mubr.bf16.gmra.mrb[0].mxu0 %v765
        %v1640 = vpop.f32.mrb[0].mxu0
        %v1641 = vadd.f32 %v1512, %v1640
        %v1642 = vpop.f32.mrb[0].mxu0
        %v1643 = vpop.f32.mrb[0].mxu0
        %v1644 = vadd.f32 %v1515, %v1643
        %v1645 = vpop.f32.mrb[0].mxu0
        %1646 = vmatprep.mubr.bf16.mxu0 0
        %1647 = vmatmul.mubr.bf16.gmra.mrb[0].mxu0 %v768
        %v1648 = vpop.f32.mrb[0].mxu0
        %v1649 = vadd.f32 %v1520, %v1648
        %v1650 = vpop.f32.mrb[0].mxu0
        %v1651 = vpop.f32.mrb[0].mxu0
        %v1652 = vadd.f32 %v1523, %v1651
        %v1653 = vpop.f32.mrb[0].mxu0
        %1654 = vmatprep.mubr.bf16.mxu0 0
        %1655 = vmatmul.mubr.bf16.gmra.mrb[0].mxu0 %v771
        %v1656 = vpop.f32.mrb[0].mxu0
        %v1657 = vadd.f32 %v1528, %v1656
        %v1658 = vpop.f32.mrb[0].mxu0
        %v1659 = vpop.f32.mrb[0].mxu0
        %v1660 = vadd.f32 %v1531, %v1659
        %v1661 = vpop.f32.mrb[0].mxu0
        %1662 = vmatprep.mubr.bf16.mxu0 0
        %1663 = vmatmul.mubr.bf16.gmra.mrb[0].mxu0 %v774
        %v1664 = vpop.f32.mrb[0].mxu0
        %v1665 = vadd.f32 %v1536, %v1664
        %v1666 = vpop.f32.mrb[0].mxu0
        %v1667 = vpop.f32.mrb[0].mxu0
        %v1668 = vadd.f32 %v1539, %v1667
        %v1669 = vpop.f32.mrb[0].mxu0
        %1670 = vmatprep.mubr.bf16.mxu0 0
        %1671 = vmatmul.mubr.bf16.gmra.mrb[0].mxu0 %v777
        %v1672 = vpop.f32.mrb[0].mxu0
        %v1673 = vadd.f32 %v1544, %v1672
        %v1674 = vpop.f32.mrb[0].mxu0
        %v1675 = vpop.f32.mrb[0].mxu0
        %v1676 = vadd.f32 %v1547, %v1675
        %v1677 = vpop.f32.mrb[0].mxu0
        %1678 = vmatprep.mubr.bf16.mxu0 0
        %1679 = vmatmul.mubr.bf16.gmra.mrb[0].mxu0 %v780
        %v1680 = vpop.f32.mrb[0].mxu0
        %v1681 = vadd.f32 %v1552, %v1680
        %v1682 = vpop.f32.mrb[0].mxu0
        %v1683 = vpop.f32.mrb[0].mxu0
        %v1684 = vadd.f32 %v1555, %v1683
        %v1685 = vpop.f32.mrb[0].mxu0
        %1686 = vmatprep.mubr.bf16.mxu0 0
        %1687 = vmatmul.mubr.bf16.gmra.mrb[0].mxu0 %v783
        %v1688 = vpop.f32.mrb[0].mxu0
        %v1689 = vadd.f32 %v1560, %v1688
        %v1690 = vpop.f32.mrb[0].mxu0
        %v1691 = vpop.f32.mrb[0].mxu0
        %v1692 = vadd.f32 %v1563, %v1691
        %v1693 = vpop.f32.mrb[0].mxu0
        %1694 = vmatprep.mubr.bf16.mxu0 0
        %1695 = vmatmul.mubr.bf16.gmra.mrb[0].mxu0 %v786
        %v1696 = vpop.f32.mrb[0].mxu0
        %v1697 = vadd.f32 %v1568, %v1696
        %v1698 = vpop.f32.mrb[0].mxu0
        %v1699 = vpop.f32.mrb[0].mxu0
        %v1700 = vadd.f32 %v1571, %v1699
        %v1701 = vpop.f32.mrb[0].mxu0
        %1702 = vmatprep.mubr.bf16.mxu0 0
        %1703 = vmatmul.mubr.bf16.gmra.mrb[0].mxu0 %v789
        %v1704 = vpop.f32.mrb[0].mxu0
        %v1705 = vadd.f32 %v1576, %v1704
        %v1706 = vpop.f32.mrb[0].mxu0
        %v1707 = vpop.f32.mrb[0].mxu0
        %v1708 = vadd.f32 %v1579, %v1707
        %v1709 = vpop.f32.mrb[0].mxu0
        %1710 = vdwg.mxu0
        %s1711 = scalar_lea.vmem [#allocation5], 384
        %v1712 = vld [vmem:[%s1711] sm:$0xf]
        %v1713 = vld [vmem:[%s1711 + $0x4] sm:$0xf]
        %v1714 = vld [vmem:[%s1711 + $0x8] sm:$0xf]
        %v1715 = vld [vmem:[%s1711 + $0xc] sm:$0xf]
        %v1716 = vld [vmem:[%s1711 + $0x10] sm:$0xf]
        %v1717 = vld [vmem:[%s1711 + $0x14] sm:$0xf]
        %v1718 = vld [vmem:[%s1711 + $0x18] sm:$0xf]
        %v1719 = vld [vmem:[%s1711 + $0x1c] sm:$0xf]
        %v1720 = vld [vmem:[%s1711 + $0x20] sm:$0xf]
        %v1721 = vld [vmem:[%s1711 + $0x24] sm:$0xf]
        %v1722 = vld [vmem:[%s1711 + $0x28] sm:$0xf]
        %v1723 = vld [vmem:[%s1711 + $0x2c] sm:$0xf]
        %v1724 = vld [vmem:[%s1711 + $0x30] sm:$0xf]
        %v1725 = vld [vmem:[%s1711 + $0x34] sm:$0xf]
        %v1726 = vld [vmem:[%s1711 + $0x38] sm:$0xf]
        %v1727 = vld [vmem:[%s1711 + $0x3c] sm:$0xf]
        %v1728 = vld [vmem:[%s1711 + $0x40] sm:$0xf]
        %v1729 = vld [vmem:[%s1711 + $0x44] sm:$0xf]
        %v1730 = vld [vmem:[%s1711 + $0x48] sm:$0xf]
        %v1731 = vld [vmem:[%s1711 + $0x4c] sm:$0xf]
        %v1732 = vld [vmem:[%s1711 + $0x50] sm:$0xf]
        %v1733 = vld [vmem:[%s1711 + $0x54] sm:$0xf]
        %v1734 = vld [vmem:[%s1711 + $0x58] sm:$0xf]
        %v1735 = vld [vmem:[%s1711 + $0x5c] sm:$0xf]
        %v1736 = vld [vmem:[%s1711 + $0x60] sm:$0xf]
        %v1737 = vld [vmem:[%s1711 + $0x64] sm:$0xf]
        %v1738 = vld [vmem:[%s1711 + $0x68] sm:$0xf]
        %v1739 = vld [vmem:[%s1711 + $0x6c] sm:$0xf]
        %v1740 = vld [vmem:[%s1711 + $0x70] sm:$0xf]
        %v1741 = vld [vmem:[%s1711 + $0x74] sm:$0xf]
        %v1742 = vld [vmem:[%s1711 + $0x78] sm:$0xf]
        %v1743 = vld [vmem:[%s1711 + $0x7c] sm:$0xf]
        %v1744 = vld [vmem:[%s1711 + $0x80] sm:$0xf]
        %v1745 = vld [vmem:[%s1711 + $0x84] sm:$0xf]
        %v1746 = vld [vmem:[%s1711 + $0x88] sm:$0xf]
        %v1747 = vld [vmem:[%s1711 + $0x8c] sm:$0xf]
        %v1748 = vld [vmem:[%s1711 + $0x90] sm:$0xf]
        %v1749 = vld [vmem:[%s1711 + $0x94] sm:$0xf]
        %v1750 = vld [vmem:[%s1711 + $0x98] sm:$0xf]
        %v1751 = vld [vmem:[%s1711 + $0x9c] sm:$0xf]
        %v1752 = vld [vmem:[%s1711 + $0xa0] sm:$0xf]
        %v1753 = vld [vmem:[%s1711 + $0xa4] sm:$0xf]
        %v1754 = vld [vmem:[%s1711 + $0xa8] sm:$0xf]
        %v1755 = vld [vmem:[%s1711 + $0xac] sm:$0xf]
        %v1756 = vld [vmem:[%s1711 + $0xb0] sm:$0xf]
        %v1757 = vld [vmem:[%s1711 + $0xb4] sm:$0xf]
        %v1758 = vld [vmem:[%s1711 + $0xb8] sm:$0xf]
        %v1759 = vld [vmem:[%s1711 + $0xbc] sm:$0xf]
        %v1808 = vunpack.c.l.b16 %v1712
        %v1809 = vunpack.c.l.b16 %v1713
        %v1810 = vunpack.c.l.b16 %v1714
        %v1811 = vunpack.c.l.b16 %v1715
        %v1812 = vunpack.c.l.b16 %v1716
        %v1813 = vunpack.c.l.b16 %v1717
        %v1814 = vunpack.c.l.b16 %v1718
        %v1815 = vunpack.c.l.b16 %v1719
        %v1816 = vunpack.c.l.b16 %v1720
        %v1817 = vunpack.c.l.b16 %v1721
        %v1818 = vunpack.c.l.b16 %v1722
        %v1819 = vunpack.c.l.b16 %v1723
        %v1820 = vunpack.c.l.b16 %v1724
        %v1821 = vunpack.c.l.b16 %v1725
        %v1822 = vunpack.c.l.b16 %v1726
        %v1823 = vunpack.c.l.b16 %v1727
        %v1824 = vunpack.c.l.b16 %v1728
        %v1825 = vunpack.c.l.b16 %v1729
        %v1826 = vunpack.c.l.b16 %v1730
        %v1827 = vunpack.c.l.b16 %v1731
        %v1828 = vunpack.c.l.b16 %v1732
        %v1829 = vunpack.c.l.b16 %v1733
        %v1830 = vunpack.c.l.b16 %v1734
        %v1831 = vunpack.c.l.b16 %v1735
        %v1832 = vunpack.c.l.b16 %v1736
        %v1833 = vunpack.c.l.b16 %v1737
        %v1834 = vunpack.c.l.b16 %v1738
        %v1835 = vunpack.c.l.b16 %v1739
        %v1836 = vunpack.c.l.b16 %v1740
        %v1837 = vunpack.c.l.b16 %v1741
        %v1838 = vunpack.c.l.b16 %v1742
        %v1839 = vunpack.c.l.b16 %v1743
        %v1840 = vunpack.c.l.b16 %v1744
        %v1841 = vunpack.c.l.b16 %v1745
        %v1842 = vunpack.c.l.b16 %v1746
        %v1843 = vunpack.c.l.b16 %v1747
        %v1844 = vunpack.c.l.b16 %v1748
        %v1845 = vunpack.c.l.b16 %v1749
        %v1846 = vunpack.c.l.b16 %v1750
        %v1847 = vunpack.c.l.b16 %v1751
        %v1848 = vunpack.c.l.b16 %v1752
        %v1849 = vunpack.c.l.b16 %v1753
        %v1850 = vunpack.c.l.b16 %v1754
        %v1851 = vunpack.c.l.b16 %v1755
        %v1852 = vunpack.c.l.b16 %v1756
        %v1853 = vunpack.c.l.b16 %v1757
        %v1854 = vunpack.c.l.b16 %v1758
        %v1855 = vunpack.c.l.b16 %v1759
        %v1856 = vpack.c.b16 %v1809, %v1808
        %v1857 = vpack.c.b16 %v1811, %v1810
        %v1858 = vpack.c.b16 %v1813, %v1812
        %v1859 = vpack.c.b16 %v1815, %v1814
        %v1860 = vpack.c.b16 %v1817, %v1816
        %v1861 = vpack.c.b16 %v1819, %v1818
        %v1862 = vpack.c.b16 %v1821, %v1820
        %v1863 = vpack.c.b16 %v1823, %v1822
        %v1864 = vpack.c.b16 %v1825, %v1824
        %v1865 = vpack.c.b16 %v1827, %v1826
        %v1866 = vpack.c.b16 %v1829, %v1828
        %v1867 = vpack.c.b16 %v1831, %v1830
        %v1868 = vpack.c.b16 %v1833, %v1832
        %v1869 = vpack.c.b16 %v1835, %v1834
        %v1870 = vpack.c.b16 %v1837, %v1836
        %v1871 = vpack.c.b16 %v1839, %v1838
        %v1872 = vpack.c.b16 %v1841, %v1840
        %v1873 = vpack.c.b16 %v1843, %v1842
        %v1874 = vpack.c.b16 %v1845, %v1844
        %v1875 = vpack.c.b16 %v1847, %v1846
        %v1876 = vpack.c.b16 %v1849, %v1848
        %v1877 = vpack.c.b16 %v1851, %v1850
        %v1878 = vpack.c.b16 %v1853, %v1852
        %v1879 = vpack.c.b16 %v1855, %v1854
        %1904 = vmatprep.subr.bf16.mxu0 0
        %1905 = vmatpush1.bf16.msra.mxu0 %v1856
        %1906 = vmatprep.subr.bf16.mxu0 0
        %1907 = vmatpush1.bf16.msra.mxu0 %v1857
        %1908 = vmatprep.subr.bf16.mxu0 0
        %1909 = vmatpush1.bf16.msra.mxu0 %v1858
        %1910 = vmatprep.subr.bf16.mxu0 0
        %1911 = vmatpush1.bf16.msra.mxu0 %v1859
        %1912 = vmatprep.subr.bf16.mxu0 0
        %1913 = vmatpush1.bf16.msra.mxu0 %v1860
        %1914 = vmatprep.subr.bf16.mxu0 0
        %1915 = vmatpush1.bf16.msra.mxu0 %v1861
        %1916 = vmatprep.subr.bf16.mxu0 0
        %1917 = vmatpush1.bf16.msra.mxu0 %v1862
        %1918 = vmatprep.subr.bf16.mxu0 0
        %1919 = vmatpush1.bf16.msra.mxu0 %v1863
        %1920 = vmatprep.subr.bf16.mxu0 0
        %1921 = vmatpush1.bf16.msra.mxu0 %v1864
        %1922 = vmatprep.subr.bf16.mxu0 0
        %1923 = vmatpush1.bf16.msra.mxu0 %v1865
        %1924 = vmatprep.subr.bf16.mxu0 0
        %1925 = vmatpush1.bf16.msra.mxu0 %v1866
        %1926 = vmatprep.subr.bf16.mxu0 0
        %1927 = vmatpush1.bf16.msra.mxu0 %v1867
        %1928 = vmatprep.subr.bf16.mxu0 0
        %1929 = vmatpush1.bf16.msra.mxu0 %v1868
        %1930 = vmatprep.subr.bf16.mxu0 0
        %1931 = vmatpush1.bf16.msra.mxu0 %v1869
        %1932 = vmatprep.subr.bf16.mxu0 0
        %1933 = vmatpush1.bf16.msra.mxu0 %v1870
        %1934 = vmatprep.subr.bf16.mxu0 0
        %1935 = vmatpush1.bf16.msra.mxu0 %v1871
        %1936 = vmatprep.mubr.bf16.mxu0 %v606
        %1937 = vmatmul.mubr.bf16.gmra.mrb[0].mxu0 %v502
        %v1938 = vpop.f32.mrb[0].mxu0
        %v1939 = vadd.f32 0.0, %v1938
        %v1940 = vpop.f32.mrb[0].mxu0
        %v1941 = vpop.f32.mrb[0].mxu0
        %v1942 = vadd.f32 0.0, %v1941
        %v1943 = vpop.f32.mrb[0].mxu0
        %1944 = vmatprep.mubr.bf16.mxu0 %v618
        %1945 = vmatmul.mubr.bf16.gmra.mrb[0].mxu0 %v503
        %v1946 = vpop.f32.mrb[0].mxu0
        %v1947 = vadd.f32 0.0, %v1946
        %v1948 = vpop.f32.mrb[0].mxu0
        %v1949 = vpop.f32.mrb[0].mxu0
        %v1950 = vadd.f32 0.0, %v1949
        %v1951 = vpop.f32.mrb[0].mxu0
        %1952 = vmatprep.mubr.bf16.mxu0 %v630
        %1953 = vmatmul.mubr.bf16.gmra.mrb[0].mxu0 %v504
        %v1954 = vpop.f32.mrb[0].mxu0
        %v1955 = vadd.f32 0.0, %v1954
        %v1956 = vpop.f32.mrb[0].mxu0
        %v1957 = vpop.f32.mrb[0].mxu0
        %v1958 = vadd.f32 0.0, %v1957
        %v1959 = vpop.f32.mrb[0].mxu0
        %1960 = vmatprep.mubr.bf16.mxu0 %v642
        %1961 = vmatmul.mubr.bf16.gmra.mrb[0].mxu0 %v505
        %v1962 = vpop.f32.mrb[0].mxu0
        %v1963 = vadd.f32 0.0, %v1962
        %v1964 = vpop.f32.mrb[0].mxu0
        %v1965 = vpop.f32.mrb[0].mxu0
        %v1966 = vadd.f32 0.0, %v1965
        %v1967 = vpop.f32.mrb[0].mxu0
        %1968 = vmatprep.mubr.bf16.mxu0 %v654
        %1969 = vmatmul.mubr.bf16.gmra.mrb[0].mxu0 %v506
        %v1970 = vpop.f32.mrb[0].mxu0
        %v1971 = vadd.f32 0.0, %v1970
        %v1972 = vpop.f32.mrb[0].mxu0
        %v1973 = vpop.f32.mrb[0].mxu0
        %v1974 = vadd.f32 0.0, %v1973
        %v1975 = vpop.f32.mrb[0].mxu0
        %1976 = vmatprep.mubr.bf16.mxu0 %v666
        %1977 = vmatmul.mubr.bf16.gmra.mrb[0].mxu0 %v507
        %v1978 = vpop.f32.mrb[0].mxu0
        %v1979 = vadd.f32 0.0, %v1978
        %v1980 = vpop.f32.mrb[0].mxu0
        %v1981 = vpop.f32.mrb[0].mxu0
        %v1982 = vadd.f32 0.0, %v1981
        %v1983 = vpop.f32.mrb[0].mxu0
        %1984 = vmatprep.mubr.bf16.mxu0 %v678
        %1985 = vmatmul.mubr.bf16.gmra.mrb[0].mxu0 %v508
        %v1986 = vpop.f32.mrb[0].mxu0
        %v1987 = vadd.f32 0.0, %v1986
        %v1988 = vpop.f32.mrb[0].mxu0
        %v1989 = vpop.f32.mrb[0].mxu0
        %v1990 = vadd.f32 0.0, %v1989
        %v1991 = vpop.f32.mrb[0].mxu0
        %1992 = vmatprep.mubr.bf16.mxu0 %v690
        %1993 = vmatmul.mubr.bf16.gmra.mrb[0].mxu0 %v509
        %v1994 = vpop.f32.mrb[0].mxu0
        %v1995 = vadd.f32 0.0, %v1994
        %v1996 = vpop.f32.mrb[0].mxu0
        %v1997 = vpop.f32.mrb[0].mxu0
        %v1998 = vadd.f32 0.0, %v1997
        %v1999 = vpop.f32.mrb[0].mxu0
        %2000 = vmatprep.mubr.bf16.mxu0 %v702
        %2001 = vmatmul.mubr.bf16.gmra.mrb[0].mxu0 %v510
        %v2002 = vpop.f32.mrb[0].mxu0
        %v2003 = vadd.f32 0.0, %v2002
        %v2004 = vpop.f32.mrb[0].mxu0
        %v2005 = vpop.f32.mrb[0].mxu0
        %v2006 = vadd.f32 0.0, %v2005
        %v2007 = vpop.f32.mrb[0].mxu0
        %2008 = vmatprep.mubr.bf16.mxu0 %v714
        %2009 = vmatmul.mubr.bf16.gmra.mrb[0].mxu0 %v511
        %v2010 = vpop.f32.mrb[0].mxu0
        %v2011 = vadd.f32 0.0, %v2010
        %v2012 = vpop.f32.mrb[0].mxu0
        %v2013 = vpop.f32.mrb[0].mxu0
        %v2014 = vadd.f32 0.0, %v2013
        %v2015 = vpop.f32.mrb[0].mxu0
        %2016 = vmatprep.mubr.bf16.mxu0 %v726
        %2017 = vmatmul.mubr.bf16.gmra.mrb[0].mxu0 %v512
        %v2018 = vpop.f32.mrb[0].mxu0
        %v2019 = vadd.f32 0.0, %v2018
        %v2020 = vpop.f32.mrb[0].mxu0
        %v2021 = vpop.f32.mrb[0].mxu0
        %v2022 = vadd.f32 0.0, %v2021
        %v2023 = vpop.f32.mrb[0].mxu0
        %2024 = vmatprep.mubr.bf16.mxu0 %v738
        %2025 = vmatmul.mubr.bf16.gmra.mrb[0].mxu0 %v513
        %v2026 = vpop.f32.mrb[0].mxu0
        %v2027 = vadd.f32 0.0, %v2026
        %v2028 = vpop.f32.mrb[0].mxu0
        %v2029 = vpop.f32.mrb[0].mxu0
        %v2030 = vadd.f32 0.0, %v2029
        %v2031 = vpop.f32.mrb[0].mxu0
        %2032 = vdwg.mxu0
        %2033 = vmatprep.subr.bf16.mxu0 0
        %2034 = vmatpush1.bf16.msra.mxu0 %v1872
        %2035 = vmatprep.subr.bf16.mxu0 0
        %2036 = vmatpush1.bf16.msra.mxu0 %v1873
        %2037 = vmatprep.subr.bf16.mxu0 0
        %2038 = vmatpush1.bf16.msra.mxu0 %v1874
        %2039 = vmatprep.subr.bf16.mxu0 0
        %2040 = vmatpush1.bf16.msra.mxu0 %v1875
        %2041 = vmatprep.subr.bf16.mxu0 0
        %2042 = vmatpush1.bf16.msra.mxu0 %v1876
        %2043 = vmatprep.subr.bf16.mxu0 0
        %2044 = vmatpush1.bf16.msra.mxu0 %v1877
        %2045 = vmatprep.subr.bf16.mxu0 0
        %2046 = vmatpush1.bf16.msra.mxu0 %v1878
        %2047 = vmatprep.subr.bf16.mxu0 0
        %2048 = vmatpush1.bf16.msra.mxu0 %v1879
        %2049 = vmatprep.subr.bf16.mxu0 0
        %2050 = vmatpush1.bf16.msra.mxu0 0
        %2051 = vmatprep.subr.bf16.mxu0 0
        %2052 = vmatpush1.bf16.msra.mxu0 0
        %2053 = vmatprep.subr.bf16.mxu0 0
        %2054 = vmatpush1.bf16.msra.mxu0 0
        %2055 = vmatprep.subr.bf16.mxu0 0
        %2056 = vmatpush1.bf16.msra.mxu0 0
        %2057 = vmatprep.subr.bf16.mxu0 0
        %2058 = vmatpush1.bf16.msra.mxu0 0
        %2059 = vmatprep.subr.bf16.mxu0 0
        %2060 = vmatpush1.bf16.msra.mxu0 0
        %2061 = vmatprep.subr.bf16.mxu0 0
        %2062 = vmatpush1.bf16.msra.mxu0 0
        %2063 = vmatprep.subr.bf16.mxu0 0
        %2064 = vmatpush1.bf16.msra.mxu0 0
        %2065 = vmatprep.mubr.bf16.mxu0 0
        %2066 = vmatmul.mubr.bf16.gmra.mrb[0].mxu0 %v762
        %v2067 = vpop.f32.mrb[0].mxu0
        %v2068 = vadd.f32 %v1939, %v2067
        %v2069 = vpop.f32.mrb[0].mxu0
        %v2070 = vpop.f32.mrb[0].mxu0
        %v2071 = vadd.f32 %v1942, %v2070
        %v2072 = vpop.f32.mrb[0].mxu0
        %2073 = vmatprep.mubr.bf16.mxu0 0
        %2074 = vmatmul.mubr.bf16.gmra.mrb[0].mxu0 %v765
        %v2075 = vpop.f32.mrb[0].mxu0
        %v2076 = vadd.f32 %v1947, %v2075
        %v2077 = vpop.f32.mrb[0].mxu0
        %v2078 = vpop.f32.mrb[0].mxu0
        %v2079 = vadd.f32 %v1950, %v2078
        %v2080 = vpop.f32.mrb[0].mxu0
        %2081 = vmatprep.mubr.bf16.mxu0 0
        %2082 = vmatmul.mubr.bf16.gmra.mrb[0].mxu0 %v768
        %v2083 = vpop.f32.mrb[0].mxu0
        %v2084 = vadd.f32 %v1955, %v2083
        %v2085 = vpop.f32.mrb[0].mxu0
        %v2086 = vpop.f32.mrb[0].mxu0
        %v2087 = vadd.f32 %v1958, %v2086
        %v2088 = vpop.f32.mrb[0].mxu0
        %2089 = vmatprep.mubr.bf16.mxu0 0
        %2090 = vmatmul.mubr.bf16.gmra.mrb[0].mxu0 %v771
        %v2091 = vpop.f32.mrb[0].mxu0
        %v2092 = vadd.f32 %v1963, %v2091
        %v2093 = vpop.f32.mrb[0].mxu0
        %v2094 = vpop.f32.mrb[0].mxu0
        %v2095 = vadd.f32 %v1966, %v2094
        %v2096 = vpop.f32.mrb[0].mxu0
        %2097 = vmatprep.mubr.bf16.mxu0 0
        %2098 = vmatmul.mubr.bf16.gmra.mrb[0].mxu0 %v774
        %v2099 = vpop.f32.mrb[0].mxu0
        %v2100 = vadd.f32 %v1971, %v2099
        %v2101 = vpop.f32.mrb[0].mxu0
        %v2102 = vpop.f32.mrb[0].mxu0
        %v2103 = vadd.f32 %v1974, %v2102
        %v2104 = vpop.f32.mrb[0].mxu0
        %2105 = vmatprep.mubr.bf16.mxu0 0
        %2106 = vmatmul.mubr.bf16.gmra.mrb[0].mxu0 %v777
        %v2107 = vpop.f32.mrb[0].mxu0
        %v2108 = vadd.f32 %v1979, %v2107
        %v2109 = vpop.f32.mrb[0].mxu0
        %v2110 = vpop.f32.mrb[0].mxu0
        %v2111 = vadd.f32 %v1982, %v2110
        %v2112 = vpop.f32.mrb[0].mxu0
        %2113 = vmatprep.mubr.bf16.mxu0 0
        %2114 = vmatmul.mubr.bf16.gmra.mrb[0].mxu0 %v780
        %v2115 = vpop.f32.mrb[0].mxu0
        %v2116 = vadd.f32 %v1987, %v2115
        %v2117 = vpop.f32.mrb[0].mxu0
        %v2118 = vpop.f32.mrb[0].mxu0
        %v2119 = vadd.f32 %v1990, %v2118
        %v2120 = vpop.f32.mrb[0].mxu0
        %2121 = vmatprep.mubr.bf16.mxu0 0
        %2122 = vmatmul.mubr.bf16.gmra.mrb[0].mxu0 %v783
        %v2123 = vpop.f32.mrb[0].mxu0
        %v2124 = vadd.f32 %v1995, %v2123
        %v2125 = vpop.f32.mrb[0].mxu0
        %v2126 = vpop.f32.mrb[0].mxu0
        %v2127 = vadd.f32 %v1998, %v2126
        %v2128 = vpop.f32.mrb[0].mxu0
        %2129 = vmatprep.mubr.bf16.mxu0 0
        %2130 = vmatmul.mubr.bf16.gmra.mrb[0].mxu0 %v786
        %v2131 = vpop.f32.mrb[0].mxu0
        %v2132 = vadd.f32 %v2003, %v2131
        %v2133 = vpop.f32.mrb[0].mxu0
        %v2134 = vpop.f32.mrb[0].mxu0
        %v2135 = vadd.f32 %v2006, %v2134
        %v2136 = vpop.f32.mrb[0].mxu0
        %2137 = vmatprep.mubr.bf16.mxu0 0
        %2138 = vmatmul.mubr.bf16.gmra.mrb[0].mxu0 %v789
        %v2139 = vpop.f32.mrb[0].mxu0
        %v2140 = vadd.f32 %v2011, %v2139
        %v2141 = vpop.f32.mrb[0].mxu0
        %v2142 = vpop.f32.mrb[0].mxu0
        %v2143 = vadd.f32 %v2014, %v2142
        %v2144 = vpop.f32.mrb[0].mxu0
        %2145 = vmatprep.mubr.bf16.mxu0 0
        %2146 = vmatmul.mubr.bf16.gmra.mrb[0].mxu0 %v792
        %v2147 = vpop.f32.mrb[0].mxu0
        %v2148 = vadd.f32 %v2019, %v2147
        %v2149 = vpop.f32.mrb[0].mxu0
        %v2150 = vpop.f32.mrb[0].mxu0
        %v2151 = vadd.f32 %v2022, %v2150
        %v2152 = vpop.f32.mrb[0].mxu0
        %2153 = vmatprep.mubr.bf16.mxu0 0
        %2154 = vmatmul.mubr.bf16.gmra.mrb[0].mxu0 %v795
        %v2155 = vpop.f32.mrb[0].mxu0
        %v2156 = vadd.f32 %v2027, %v2155
        %v2157 = vpop.f32.mrb[0].mxu0
        %v2158 = vpop.f32.mrb[0].mxu0
        %v2159 = vadd.f32 %v2030, %v2158
        %v2160 = vpop.f32.mrb[0].mxu0
        %2161 = vdwg.mxu0
        %v2162 = vadd.f32 %v1617, %v2068
        %v2163 = vadd.f32 %v1620, %v2071
        %v2164 = vadd.f32 %v1625, %v2076
        %v2165 = vadd.f32 %v1628, %v2079
        %v2166 = vadd.f32 %v1633, %v2084
        %v2167 = vadd.f32 %v1636, %v2087
        %v2168 = vadd.f32 %v1641, %v2092
        %v2169 = vadd.f32 %v1644, %v2095
        %v2170 = vadd.f32 %v1649, %v2100
        %v2171 = vadd.f32 %v1652, %v2103
        %v2172 = vadd.f32 %v1657, %v2108
        %v2173 = vadd.f32 %v1660, %v2111
        %v2174 = vadd.f32 %v1665, %v2116
        %v2175 = vadd.f32 %v1668, %v2119
        %v2176 = vadd.f32 %v1673, %v2124
        %v2177 = vadd.f32 %v1676, %v2127
        %v2178 = vadd.f32 %v1681, %v2132
        %v2179 = vadd.f32 %v1684, %v2135
        %v2180 = vadd.f32 %v1689, %v2140
        %v2181 = vadd.f32 %v1692, %v2143
        %v2182 = vadd.f32 %v1697, %v2148
        %v2183 = vadd.f32 %v1700, %v2151
        %v2184 = vadd.f32 %v1705, %v2156
        %v2185 = vadd.f32 %v1708, %v2159
        %v2186 = vld [vmem:[#allocation7] sm:$0x1]
        %v2188 = vlaneseq
        %v2189 = vshrl.u32 %v2188, 7
        %v2190 = vsub.s32 0, %v2189
        %v2191 = vrot.slane %v2186, %v2190
        %v2193 = vadd.f32 %v2162, %v2191
        %v2194 = vadd.f32 %v2163, %v2191
        %v2195 = vadd.f32 %v2164, %v2191
        %v2196 = vadd.f32 %v2165, %v2191
        %v2197 = vadd.f32 %v2166, %v2191
        %v2198 = vadd.f32 %v2167, %v2191
        %v2199 = vadd.f32 %v2168, %v2191
        %v2200 = vadd.f32 %v2169, %v2191
        %v2201 = vadd.f32 %v2170, %v2191
        %v2202 = vadd.f32 %v2171, %v2191
        %v2203 = vadd.f32 %v2172, %v2191
        %v2204 = vadd.f32 %v2173, %v2191
        %v2205 = vadd.f32 %v2174, %v2191
        %v2206 = vadd.f32 %v2175, %v2191
        %v2207 = vadd.f32 %v2176, %v2191
        %v2208 = vadd.f32 %v2177, %v2191
        %v2209 = vadd.f32 %v2178, %v2191
        %v2210 = vadd.f32 %v2179, %v2191
        %v2211 = vadd.f32 %v2180, %v2191
        %v2212 = vadd.f32 %v2181, %v2191
        %v2213 = vadd.f32 %v2182, %v2191
        %v2214 = vadd.f32 %v2183, %v2191
        %v2215 = vadd.f32 %v2184, %v2191
        %v2216 = vadd.f32 %v2185, %v2191
        %vm2217 = vcmp.gt.f32.partialorder %v2193, 0.0
        %vm2218 = vcmp.gt.f32.partialorder %v2194, 0.0
        %vm2219 = vcmp.gt.f32.partialorder %v2195, 0.0
        %vm2220 = vcmp.gt.f32.partialorder %v2196, 0.0
        %vm2221 = vcmp.gt.f32.partialorder %v2197, 0.0
        %vm2222 = vcmp.gt.f32.partialorder %v2198, 0.0
        %vm2223 = vcmp.gt.f32.partialorder %v2199, 0.0
        %vm2224 = vcmp.gt.f32.partialorder %v2200, 0.0
        %vm2225 = vcmp.gt.f32.partialorder %v2201, 0.0
        %vm2226 = vcmp.gt.f32.partialorder %v2202, 0.0
        %vm2227 = vcmp.gt.f32.partialorder %v2203, 0.0
        %vm2228 = vcmp.gt.f32.partialorder %v2204, 0.0
        %vm2229 = vcmp.gt.f32.partialorder %v2205, 0.0
        %vm2230 = vcmp.gt.f32.partialorder %v2206, 0.0
        %vm2231 = vcmp.gt.f32.partialorder %v2207, 0.0
        %vm2232 = vcmp.gt.f32.partialorder %v2208, 0.0
        %vm2233 = vcmp.gt.f32.partialorder %v2209, 0.0
        %vm2234 = vcmp.gt.f32.partialorder %v2210, 0.0
        %vm2235 = vcmp.gt.f32.partialorder %v2211, 0.0
        %vm2236 = vcmp.gt.f32.partialorder %v2212, 0.0
        %vm2237 = vcmp.gt.f32.partialorder %v2213, 0.0
        %vm2238 = vcmp.gt.f32.partialorder %v2214, 0.0
        %vm2239 = vcmp.gt.f32.partialorder %v2215, 0.0
        %vm2240 = vcmp.gt.f32.partialorder %v2216, 0.0
        %v2241 = vmul.f32 %v2193, 0.2
        %v2242 = vmul.f32 %v2194, 0.2
        %v2243 = vmul.f32 %v2195, 0.2
        %v2244 = vmul.f32 %v2196, 0.2
        %v2245 = vmul.f32 %v2197, 0.2
        %v2246 = vmul.f32 %v2198, 0.2
        %v2247 = vmul.f32 %v2199, 0.2
        %v2248 = vmul.f32 %v2200, 0.2
        %v2249 = vmul.f32 %v2201, 0.2
        %v2250 = vmul.f32 %v2202, 0.2
        %v2251 = vmul.f32 %v2203, 0.2
        %v2252 = vmul.f32 %v2204, 0.2
        %v2253 = vmul.f32 %v2205, 0.2
        %v2254 = vmul.f32 %v2206, 0.2
        %v2255 = vmul.f32 %v2207, 0.2
        %v2256 = vmul.f32 %v2208, 0.2
        %v2257 = vmul.f32 %v2209, 0.2
        %v2258 = vmul.f32 %v2210, 0.2
        %v2259 = vmul.f32 %v2211, 0.2
        %v2260 = vmul.f32 %v2212, 0.2
        %v2261 = vmul.f32 %v2213, 0.2
        %v2262 = vmul.f32 %v2214, 0.2
        %v2263 = vmul.f32 %v2215, 0.2
        %v2264 = vmul.f32 %v2216, 0.2
        %v2265 = vsel %vm2217, %v2193, %v2241
        %v2266 = vsel %vm2218, %v2194, %v2242
        %v2267 = vsel %vm2219, %v2195, %v2243
        %v2268 = vsel %vm2220, %v2196, %v2244
        %v2269 = vsel %vm2221, %v2197, %v2245
        %v2270 = vsel %vm2222, %v2198, %v2246
        %v2271 = vsel %vm2223, %v2199, %v2247
        %v2272 = vsel %vm2224, %v2200, %v2248
        %v2273 = vsel %vm2225, %v2201, %v2249
        %v2274 = vsel %vm2226, %v2202, %v2250
        %v2275 = vsel %vm2227, %v2203, %v2251
        %v2276 = vsel %vm2228, %v2204, %v2252
        %v2277 = vsel %vm2229, %v2205, %v2253
        %v2278 = vsel %vm2230, %v2206, %v2254
        %v2279 = vsel %vm2231, %v2207, %v2255
        %v2280 = vsel %vm2232, %v2208, %v2256
        %v2281 = vsel %vm2233, %v2209, %v2257
        %v2282 = vsel %vm2234, %v2210, %v2258
        %v2283 = vsel %vm2235, %v2211, %v2259
        %v2284 = vsel %vm2236, %v2212, %v2260
        %v2285 = vsel %vm2237, %v2213, %v2261
        %v2286 = vsel %vm2238, %v2214, %v2262
        %v2287 = vsel %vm2239, %v2215, %v2263
        %v2288 = vsel %vm2240, %v2216, %v2264
        %v2289 = vadd.f32 %v2265, %v2267
        %v2290 = vadd.f32 %v2266, %v2268
        %v2291 = vadd.f32 %v2269, %v2271
        %v2292 = vadd.f32 %v2270, %v2272
        %v2293 = vadd.f32 %v2273, %v2275
        %v2294 = vadd.f32 %v2274, %v2276
        %v2295 = vadd.f32 %v2277, %v2279
        %v2296 = vadd.f32 %v2278, %v2280
        %v2297 = vadd.f32 %v2281, %v2283
        %v2298 = vadd.f32 %v2282, %v2284
        %v2299 = vadd.f32 %v2285, %v2287
        %v2300 = vadd.f32 %v2286, %v2288
        %v2313 = vcombine.high %v2289, %v2289
        %v2315 = vunpack.c.l.s4 1983009808
        %v2316 = vunpack.c.0.s8 %v2315
        %v2317 = vlaneseq
        %v2318 = vshrl.u32 %v2317, 7
        %v2319 = vsub.s32 %v2316, %v2318
        %v2320 = vrot.slane %v2289, %v2319
        %v2322 = vunpack.c.l.s4 1983009808
        %v2323 = vunpack.c.0.s8 %v2322
        %v2324 = vlaneseq
        %v2325 = vshrl.u32 %v2324, 7
        %v2326 = vsub.s32 %v2323, %v2325
        %v2327 = vrot.slane %v2313, %v2326
        %v2328 = vcombine.high %v2320, %v2320
        %v2329 = vcombine.high %v2327, %v2327
        %v2330 = vcombine.high %v2290, %v2290
        %v2332 = vunpack.c.l.s4 1983009808
        %v2333 = vunpack.c.0.s8 %v2332
        %v2334 = vlaneseq
        %v2335 = vshrl.u32 %v2334, 7
        %v2336 = vsub.s32 %v2333, %v2335
        %v2337 = vrot.slane %v2290, %v2336
        %v2339 = vunpack.c.l.s4 1983009808
        %v2340 = vunpack.c.0.s8 %v2339
        %v2341 = vlaneseq
        %v2342 = vshrl.u32 %v2341, 7
        %v2343 = vsub.s32 %v2340, %v2342
        %v2344 = vrot.slane %v2330, %v2343
        %v2345 = vcombine.high %v2337, %v2337
        %v2346 = vcombine.high %v2344, %v2344
        %v2347 = vcombine.high %v2291, %v2291
        %v2349 = vunpack.c.l.s4 1983009808
        %v2350 = vunpack.c.0.s8 %v2349
        %v2351 = vlaneseq
        %v2352 = vshrl.u32 %v2351, 7
        %v2353 = vsub.s32 %v2350, %v2352
        %v2354 = vrot.slane %v2291, %v2353
        %v2356 = vunpack.c.l.s4 1983009808
        %v2357 = vunpack.c.0.s8 %v2356
        %v2358 = vlaneseq
        %v2359 = vshrl.u32 %v2358, 7
        %v2360 = vsub.s32 %v2357, %v2359
        %v2361 = vrot.slane %v2347, %v2360
        %v2362 = vcombine.high %v2354, %v2354
        %v2363 = vcombine.high %v2361, %v2361
        %v2364 = vcombine.high %v2292, %v2292
        %v2366 = vunpack.c.l.s4 1983009808
        %v2367 = vunpack.c.0.s8 %v2366
        %v2368 = vlaneseq
        %v2369 = vshrl.u32 %v2368, 7
        %v2370 = vsub.s32 %v2367, %v2369
        %v2371 = vrot.slane %v2292, %v2370
        %v2373 = vunpack.c.l.s4 1983009808
        %v2374 = vunpack.c.0.s8 %v2373
        %v2375 = vlaneseq
        %v2376 = vshrl.u32 %v2375, 7
        %v2377 = vsub.s32 %v2374, %v2376
        %v2378 = vrot.slane %v2364, %v2377
        %v2379 = vcombine.high %v2371, %v2371
        %v2380 = vcombine.high %v2378, %v2378
        %v2381 = vcombine.high %v2293, %v2293
        %v2383 = vunpack.c.l.s4 1983009808
        %v2384 = vunpack.c.0.s8 %v2383
        %v2385 = vlaneseq
        %v2386 = vshrl.u32 %v2385, 7
        %v2387 = vsub.s32 %v2384, %v2386
        %v2388 = vrot.slane %v2293, %v2387
        %v2390 = vunpack.c.l.s4 1983009808
        %v2391 = vunpack.c.0.s8 %v2390
        %v2392 = vlaneseq
        %v2393 = vshrl.u32 %v2392, 7
        %v2394 = vsub.s32 %v2391, %v2393
        %v2395 = vrot.slane %v2381, %v2394
        %v2396 = vcombine.high %v2388, %v2388
        %v2397 = vcombine.high %v2395, %v2395
        %v2398 = vcombine.high %v2294, %v2294
        %v2400 = vunpack.c.l.s4 1983009808
        %v2401 = vunpack.c.0.s8 %v2400
        %v2402 = vlaneseq
        %v2403 = vshrl.u32 %v2402, 7
        %v2404 = vsub.s32 %v2401, %v2403
        %v2405 = vrot.slane %v2294, %v2404
        %v2407 = vunpack.c.l.s4 1983009808
        %v2408 = vunpack.c.0.s8 %v2407
        %v2409 = vlaneseq
        %v2410 = vshrl.u32 %v2409, 7
        %v2411 = vsub.s32 %v2408, %v2410
        %v2412 = vrot.slane %v2398, %v2411
        %v2413 = vcombine.high %v2405, %v2405
        %v2414 = vcombine.high %v2412, %v2412
        %v2415 = vcombine.high %v2295, %v2295
        %v2417 = vunpack.c.l.s4 1983009808
        %v2418 = vunpack.c.0.s8 %v2417
        %v2419 = vlaneseq
        %v2420 = vshrl.u32 %v2419, 7
        %v2421 = vsub.s32 %v2418, %v2420
        %v2422 = vrot.slane %v2295, %v2421
        %v2424 = vunpack.c.l.s4 1983009808
        %v2425 = vunpack.c.0.s8 %v2424
        %v2426 = vlaneseq
        %v2427 = vshrl.u32 %v2426, 7
        %v2428 = vsub.s32 %v2425, %v2427
        %v2429 = vrot.slane %v2415, %v2428
        %v2430 = vcombine.high %v2422, %v2422
        %v2431 = vcombine.high %v2429, %v2429
        %v2432 = vcombine.high %v2296, %v2296
        %v2434 = vunpack.c.l.s4 1983009808
        %v2435 = vunpack.c.0.s8 %v2434
        %v2436 = vlaneseq
        %v2437 = vshrl.u32 %v2436, 7
        %v2438 = vsub.s32 %v2435, %v2437
        %v2439 = vrot.slane %v2296, %v2438
        %v2441 = vunpack.c.l.s4 1983009808
        %v2442 = vunpack.c.0.s8 %v2441
        %v2443 = vlaneseq
        %v2444 = vshrl.u32 %v2443, 7
        %v2445 = vsub.s32 %v2442, %v2444
        %v2446 = vrot.slane %v2432, %v2445
        %v2447 = vcombine.high %v2439, %v2439
        %v2448 = vcombine.high %v2446, %v2446
        %v2449 = vcombine.high %v2297, %v2297
        %v2451 = vunpack.c.l.s4 1983009808
        %v2452 = vunpack.c.0.s8 %v2451
        %v2453 = vlaneseq
        %v2454 = vshrl.u32 %v2453, 7
        %v2455 = vsub.s32 %v2452, %v2454
        %v2456 = vrot.slane %v2297, %v2455
        %v2458 = vunpack.c.l.s4 1983009808
        %v2459 = vunpack.c.0.s8 %v2458
        %v2460 = vlaneseq
        %v2461 = vshrl.u32 %v2460, 7
        %v2462 = vsub.s32 %v2459, %v2461
        %v2463 = vrot.slane %v2449, %v2462
        %v2464 = vcombine.high %v2456, %v2456
        %v2465 = vcombine.high %v2463, %v2463
        %v2466 = vcombine.high %v2298, %v2298
        %v2468 = vunpack.c.l.s4 1983009808
        %v2469 = vunpack.c.0.s8 %v2468
        %v2470 = vlaneseq
        %v2471 = vshrl.u32 %v2470, 7
        %v2472 = vsub.s32 %v2469, %v2471
        %v2473 = vrot.slane %v2298, %v2472
        %v2475 = vunpack.c.l.s4 1983009808
        %v2476 = vunpack.c.0.s8 %v2475
        %v2477 = vlaneseq
        %v2478 = vshrl.u32 %v2477, 7
        %v2479 = vsub.s32 %v2476, %v2478
        %v2480 = vrot.slane %v2466, %v2479
        %v2481 = vcombine.high %v2473, %v2473
        %v2482 = vcombine.high %v2480, %v2480
        %v2483 = vcombine.high %v2299, %v2299
        %v2485 = vunpack.c.l.s4 1983009808
        %v2486 = vunpack.c.0.s8 %v2485
        %v2487 = vlaneseq
        %v2488 = vshrl.u32 %v2487, 7
        %v2489 = vsub.s32 %v2486, %v2488
        %v2490 = vrot.slane %v2299, %v2489
        %v2492 = vunpack.c.l.s4 1983009808
        %v2493 = vunpack.c.0.s8 %v2492
        %v2494 = vlaneseq
        %v2495 = vshrl.u32 %v2494, 7
        %v2496 = vsub.s32 %v2493, %v2495
        %v2497 = vrot.slane %v2483, %v2496
        %v2498 = vcombine.high %v2490, %v2490
        %v2499 = vcombine.high %v2497, %v2497
        %v2500 = vcombine.high %v2300, %v2300
        %v2502 = vunpack.c.l.s4 1983009808
        %v2503 = vunpack.c.0.s8 %v2502
        %v2504 = vlaneseq
        %v2505 = vshrl.u32 %v2504, 7
        %v2506 = vsub.s32 %v2503, %v2505
        %v2507 = vrot.slane %v2300, %v2506
        %v2509 = vunpack.c.l.s4 1983009808
        %v2510 = vunpack.c.0.s8 %v2509
        %v2511 = vlaneseq
        %v2512 = vshrl.u32 %v2511, 7
        %v2513 = vsub.s32 %v2510, %v2512
        %v2514 = vrot.slane %v2500, %v2513
        %v2515 = vcombine.high %v2507, %v2507
        %v2516 = vcombine.high %v2514, %v2514
        %v2565 = vrot.slane %v2320, 7
        %v2566 = vrot.slane %v2565, 2
        %v2567 = vrot.slane %v2328, 7
        %v2568 = vrot.slane %v2567, 2
        %v2569 = vrot.slane %v2327, 7
        %v2570 = vrot.slane %v2569, 2
        %v2571 = vrot.slane %v2329, 7
        %v2572 = vrot.slane %v2571, 2
        %v2573 = vrot.slane %v2337, 7
        %v2574 = vrot.slane %v2573, 2
        %v2575 = vrot.slane %v2345, 7
        %v2576 = vrot.slane %v2575, 2
        %v2577 = vrot.slane %v2344, 7
        %v2578 = vrot.slane %v2577, 2
        %v2579 = vrot.slane %v2346, 7
        %v2580 = vrot.slane %v2579, 2
        %v2581 = vrot.slane %v2354, 7
        %v2582 = vrot.slane %v2581, 2
        %v2583 = vrot.slane %v2362, 7
        %v2584 = vrot.slane %v2583, 2
        %v2585 = vrot.slane %v2361, 7
        %v2586 = vrot.slane %v2585, 2
        %v2587 = vrot.slane %v2363, 7
        %v2588 = vrot.slane %v2587, 2
        %v2589 = vrot.slane %v2371, 7
        %v2590 = vrot.slane %v2589, 2
        %v2591 = vrot.slane %v2379, 7
        %v2592 = vrot.slane %v2591, 2
        %v2593 = vrot.slane %v2378, 7
        %v2594 = vrot.slane %v2593, 2
        %v2595 = vrot.slane %v2380, 7
        %v2596 = vrot.slane %v2595, 2
        %v2597 = vrot.slane %v2388, 7
        %v2598 = vrot.slane %v2597, 2
        %v2599 = vrot.slane %v2396, 7
        %v2600 = vrot.slane %v2599, 2
        %v2601 = vrot.slane %v2395, 7
        %v2602 = vrot.slane %v2601, 2
        %v2603 = vrot.slane %v2397, 7
        %v2604 = vrot.slane %v2603, 2
        %v2605 = vrot.slane %v2405, 7
        %v2606 = vrot.slane %v2605, 2
        %v2607 = vrot.slane %v2413, 7
        %v2608 = vrot.slane %v2607, 2
        %v2609 = vrot.slane %v2412, 7
        %v2610 = vrot.slane %v2609, 2
        %v2611 = vrot.slane %v2414, 7
        %v2612 = vrot.slane %v2611, 2
        %v2613 = vrot.slane %v2422, 7
        %v2614 = vrot.slane %v2613, 2
        %v2615 = vrot.slane %v2430, 7
        %v2616 = vrot.slane %v2615, 2
        %v2617 = vrot.slane %v2429, 7
        %v2618 = vrot.slane %v2617, 2
        %v2619 = vrot.slane %v2431, 7
        %v2620 = vrot.slane %v2619, 2
        %v2621 = vrot.slane %v2439, 7
        %v2622 = vrot.slane %v2621, 2
        %v2623 = vrot.slane %v2447, 7
        %v2624 = vrot.slane %v2623, 2
        %v2625 = vrot.slane %v2446, 7
        %v2626 = vrot.slane %v2625, 2
        %v2627 = vrot.slane %v2448, 7
        %v2628 = vrot.slane %v2627, 2
        %v2629 = vrot.slane %v2456, 7
        %v2630 = vrot.slane %v2629, 2
        %v2631 = vrot.slane %v2464, 7
        %v2632 = vrot.slane %v2631, 2
        %v2633 = vrot.slane %v2463, 7
        %v2634 = vrot.slane %v2633, 2
        %v2635 = vrot.slane %v2465, 7
        %v2636 = vrot.slane %v2635, 2
        %v2637 = vrot.slane %v2473, 7
        %v2638 = vrot.slane %v2637, 2
        %v2639 = vrot.slane %v2481, 7
        %v2640 = vrot.slane %v2639, 2
        %v2641 = vrot.slane %v2480, 7
        %v2642 = vrot.slane %v2641, 2
        %v2643 = vrot.slane %v2482, 7
        %v2644 = vrot.slane %v2643, 2
        %v2645 = vrot.slane %v2490, 7
        %v2646 = vrot.slane %v2645, 2
        %v2647 = vrot.slane %v2498, 7
        %v2648 = vrot.slane %v2647, 2
        %v2649 = vrot.slane %v2497, 7
        %v2650 = vrot.slane %v2649, 2
        %v2651 = vrot.slane %v2499, 7
        %v2652 = vrot.slane %v2651, 2
        %v2653 = vrot.slane %v2507, 7
        %v2654 = vrot.slane %v2653, 2
        %v2655 = vrot.slane %v2515, 7
        %v2656 = vrot.slane %v2655, 2
        %v2657 = vrot.slane %v2514, 7
        %v2658 = vrot.slane %v2657, 2
        %v2659 = vrot.slane %v2516, 7
        %v2660 = vrot.slane %v2659, 2
        %v2709 = vadd.f32 %v2320, %v2566
        %v2710 = vadd.f32 %v2328, %v2568
        %v2711 = vadd.f32 %v2327, %v2570
        %v2712 = vadd.f32 %v2329, %v2572
        %v2713 = vadd.f32 %v2337, %v2574
        %v2714 = vadd.f32 %v2345, %v2576
        %v2715 = vadd.f32 %v2344, %v2578
        %v2716 = vadd.f32 %v2346, %v2580
        %v2717 = vadd.f32 %v2354, %v2582
        %v2718 = vadd.f32 %v2362, %v2584
        %v2719 = vadd.f32 %v2361, %v2586
        %v2720 = vadd.f32 %v2363, %v2588
        %v2721 = vadd.f32 %v2371, %v2590
        %v2722 = vadd.f32 %v2379, %v2592
        %v2723 = vadd.f32 %v2378, %v2594
        %v2724 = vadd.f32 %v2380, %v2596
        %v2725 = vadd.f32 %v2388, %v2598
        %v2726 = vadd.f32 %v2396, %v2600
        %v2727 = vadd.f32 %v2395, %v2602
        %v2728 = vadd.f32 %v2397, %v2604
        %v2729 = vadd.f32 %v2405, %v2606
        %v2730 = vadd.f32 %v2413, %v2608
        %v2731 = vadd.f32 %v2412, %v2610
        %v2732 = vadd.f32 %v2414, %v2612
        %v2733 = vadd.f32 %v2422, %v2614
        %v2734 = vadd.f32 %v2430, %v2616
        %v2735 = vadd.f32 %v2429, %v2618
        %v2736 = vadd.f32 %v2431, %v2620
        %v2737 = vadd.f32 %v2439, %v2622
        %v2738 = vadd.f32 %v2447, %v2624
        %v2739 = vadd.f32 %v2446, %v2626
        %v2740 = vadd.f32 %v2448, %v2628
        %v2741 = vadd.f32 %v2456, %v2630
        %v2742 = vadd.f32 %v2464, %v2632
        %v2743 = vadd.f32 %v2463, %v2634
        %v2744 = vadd.f32 %v2465, %v2636
        %v2745 = vadd.f32 %v2473, %v2638
        %v2746 = vadd.f32 %v2481, %v2640
        %v2747 = vadd.f32 %v2480, %v2642
        %v2748 = vadd.f32 %v2482, %v2644
        %v2749 = vadd.f32 %v2490, %v2646
        %v2750 = vadd.f32 %v2498, %v2648
        %v2751 = vadd.f32 %v2497, %v2650
        %v2752 = vadd.f32 %v2499, %v2652
        %v2753 = vadd.f32 %v2507, %v2654
        %v2754 = vadd.f32 %v2515, %v2656
        %v2755 = vadd.f32 %v2514, %v2658
        %v2756 = vadd.f32 %v2516, %v2660
        %p2757 = scmp.gt.s32.totalorder %s32, 0
        %s2758 = scalar_select %p2757, 1, 0
        %s2759 = scvt.s32.f32 %s2758
        %p2760 = scmp.lt.s32.totalorder %s32, 1
        %s2761 = scalar_select %p2760, 1, 0
        %s2762 = scvt.s32.f32 %s2761
        %v2763 = vstv %s2759
        %v2764 = vmul.f32 %v2709, %v2763
        %v2765 = vmul.f32 %v2710, %v2763
        %v2766 = vmul.f32 %v2711, %v2763
        %v2767 = vmul.f32 %v2712, %v2763
        %v2768 = vmul.f32 %v2713, %v2763
        %v2769 = vmul.f32 %v2714, %v2763
        %v2770 = vmul.f32 %v2715, %v2763
        %v2771 = vmul.f32 %v2716, %v2763
        %v2772 = vstv %s2762
        %v2773 = vmul.f32 %v2749, %v2772
        %v2774 = vmul.f32 %v2750, %v2772
        %v2775 = vmul.f32 %v2751, %v2772
        %v2776 = vmul.f32 %v2752, %v2772
        %v2777 = vmul.f32 %v2753, %v2772
        %v2778 = vmul.f32 %v2754, %v2772
        %v2779 = vmul.f32 %v2755, %v2772
        %v2780 = vmul.f32 %v2756, %v2772
        %v2781 = vlaneseq
        %v2782 = vshrl.u32 %v2781, 7
        %vm2783 = vcmp.eq.s32.totalorder %v2782, 0
        %v2832 = vlaneseq
        %v2833 = vshrl.u32 %v2832, 7
        %v2834 = vsub.s32 0, %v2833
        %v2835 = vrot.slane %v2764, %v2834
        %v2836 = vlaneseq
        %v2837 = vshrl.u32 %v2836, 7
        %v2838 = vsub.s32 0, %v2837
        %v2839 = vrot.slane %v2765, %v2838
        %v2840 = vlaneseq
        %v2841 = vshrl.u32 %v2840, 7
        %v2842 = vsub.s32 0, %v2841
        %v2843 = vrot.slane %v2766, %v2842
        %v2844 = vlaneseq
        %v2845 = vshrl.u32 %v2844, 7
        %v2846 = vsub.s32 0, %v2845
        %v2847 = vrot.slane %v2767, %v2846
        %v2848 = vlaneseq
        %v2849 = vshrl.u32 %v2848, 7
        %v2850 = vsub.s32 0, %v2849
        %v2851 = vrot.slane %v2768, %v2850
        %v2852 = vlaneseq
        %v2853 = vshrl.u32 %v2852, 7
        %v2854 = vsub.s32 0, %v2853
        %v2855 = vrot.slane %v2769, %v2854
        %v2856 = vlaneseq
        %v2857 = vshrl.u32 %v2856, 7
        %v2858 = vsub.s32 0, %v2857
        %v2859 = vrot.slane %v2770, %v2858
        %v2860 = vlaneseq
        %v2861 = vshrl.u32 %v2860, 7
        %v2862 = vsub.s32 0, %v2861
        %v2863 = vrot.slane %v2771, %v2862
        %v2864 = vlaneseq
        %v2865 = vshrl.u32 %v2864, 7
        %v2866 = vsub.s32 0, %v2865
        %v2867 = vrot.slane %v2717, %v2866
        %v2868 = vlaneseq
        %v2869 = vshrl.u32 %v2868, 7
        %v2870 = vsub.s32 0, %v2869
        %v2871 = vrot.slane %v2718, %v2870
        %v2872 = vlaneseq
        %v2873 = vshrl.u32 %v2872, 7
        %v2874 = vsub.s32 0, %v2873
        %v2875 = vrot.slane %v2719, %v2874
        %v2876 = vlaneseq
        %v2877 = vshrl.u32 %v2876, 7
        %v2878 = vsub.s32 0, %v2877
        %v2879 = vrot.slane %v2720, %v2878
        %v2880 = vlaneseq
        %v2881 = vshrl.u32 %v2880, 7
        %v2882 = vsub.s32 0, %v2881
        %v2883 = vrot.slane %v2721, %v2882
        %v2884 = vlaneseq
        %v2885 = vshrl.u32 %v2884, 7
        %v2886 = vsub.s32 0, %v2885
        %v2887 = vrot.slane %v2722, %v2886
        %v2888 = vlaneseq
        %v2889 = vshrl.u32 %v2888, 7
        %v2890 = vsub.s32 0, %v2889
        %v2891 = vrot.slane %v2723, %v2890
        %v2892 = vlaneseq
        %v2893 = vshrl.u32 %v2892, 7
        %v2894 = vsub.s32 0, %v2893
        %v2895 = vrot.slane %v2724, %v2894
        %v2896 = vlaneseq
        %v2897 = vshrl.u32 %v2896, 7
        %v2898 = vsub.s32 0, %v2897
        %v2899 = vrot.slane %v2725, %v2898
        %v2900 = vlaneseq
        %v2901 = vshrl.u32 %v2900, 7
        %v2902 = vsub.s32 0, %v2901
        %v2903 = vrot.slane %v2726, %v2902
        %v2904 = vlaneseq
        %v2905 = vshrl.u32 %v2904, 7
        %v2906 = vsub.s32 0, %v2905
        %v2907 = vrot.slane %v2727, %v2906
        %v2908 = vlaneseq
        %v2909 = vshrl.u32 %v2908, 7
        %v2910 = vsub.s32 0, %v2909
        %v2911 = vrot.slane %v2728, %v2910
        %v2912 = vlaneseq
        %v2913 = vshrl.u32 %v2912, 7
        %v2914 = vsub.s32 0, %v2913
        %v2915 = vrot.slane %v2729, %v2914
        %v2916 = vlaneseq
        %v2917 = vshrl.u32 %v2916, 7
        %v2918 = vsub.s32 0, %v2917
        %v2919 = vrot.slane %v2730, %v2918
        %v2920 = vlaneseq
        %v2921 = vshrl.u32 %v2920, 7
        %v2922 = vsub.s32 0, %v2921
        %v2923 = vrot.slane %v2731, %v2922
        %v2924 = vlaneseq
        %v2925 = vshrl.u32 %v2924, 7
        %v2926 = vsub.s32 0, %v2925
        %v2927 = vrot.slane %v2732, %v2926
        %v2928 = vlaneseq
        %v2929 = vshrl.u32 %v2928, 7
        %v2930 = vsub.s32 0, %v2929
        %v2931 = vrot.slane %v2733, %v2930
        %v2932 = vlaneseq
        %v2933 = vshrl.u32 %v2932, 7
        %v2934 = vsub.s32 0, %v2933
        %v2935 = vrot.slane %v2734, %v2934
        %v2936 = vlaneseq
        %v2937 = vshrl.u32 %v2936, 7
        %v2938 = vsub.s32 0, %v2937
        %v2939 = vrot.slane %v2735, %v2938
        %v2940 = vlaneseq
        %v2941 = vshrl.u32 %v2940, 7
        %v2942 = vsub.s32 0, %v2941
        %v2943 = vrot.slane %v2736, %v2942
        %v2944 = vlaneseq
        %v2945 = vshrl.u32 %v2944, 7
        %v2946 = vsub.s32 0, %v2945
        %v2947 = vrot.slane %v2737, %v2946
        %v2948 = vlaneseq
        %v2949 = vshrl.u32 %v2948, 7
        %v2950 = vsub.s32 0, %v2949
        %v2951 = vrot.slane %v2738, %v2950
        %v2952 = vlaneseq
        %v2953 = vshrl.u32 %v2952, 7
        %v2954 = vsub.s32 0, %v2953
        %v2955 = vrot.slane %v2739, %v2954
        %v2956 = vlaneseq
        %v2957 = vshrl.u32 %v2956, 7
        %v2958 = vsub.s32 0, %v2957
        %v2959 = vrot.slane %v2740, %v2958
        %v2960 = vlaneseq
        %v2961 = vshrl.u32 %v2960, 7
        %v2962 = vsub.s32 0, %v2961
        %v2963 = vrot.slane %v2741, %v2962
        %v2964 = vlaneseq
        %v2965 = vshrl.u32 %v2964, 7
        %v2966 = vsub.s32 0, %v2965
        %v2967 = vrot.slane %v2742, %v2966
        %v2968 = vlaneseq
        %v2969 = vshrl.u32 %v2968, 7
        %v2970 = vsub.s32 0, %v2969
        %v2971 = vrot.slane %v2743, %v2970
        %v2972 = vlaneseq
        %v2973 = vshrl.u32 %v2972, 7
        %v2974 = vsub.s32 0, %v2973
        %v2975 = vrot.slane %v2744, %v2974
        %v2976 = vlaneseq
        %v2977 = vshrl.u32 %v2976, 7
        %v2978 = vsub.s32 0, %v2977
        %v2979 = vrot.slane %v2745, %v2978
        %v2980 = vlaneseq
        %v2981 = vshrl.u32 %v2980, 7
        %v2982 = vsub.s32 0, %v2981
        %v2983 = vrot.slane %v2746, %v2982
        %v2984 = vlaneseq
        %v2985 = vshrl.u32 %v2984, 7
        %v2986 = vsub.s32 0, %v2985
        %v2987 = vrot.slane %v2747, %v2986
        %v2988 = vlaneseq
        %v2989 = vshrl.u32 %v2988, 7
        %v2990 = vsub.s32 0, %v2989
        %v2991 = vrot.slane %v2748, %v2990
        %v2992 = vlaneseq
        %v2993 = vshrl.u32 %v2992, 7
        %v2994 = vsub.s32 0, %v2993
        %v2995 = vrot.slane %v2773, %v2994
        %v2996 = vlaneseq
        %v2997 = vshrl.u32 %v2996, 7
        %v2998 = vsub.s32 0, %v2997
        %v2999 = vrot.slane %v2774, %v2998
        %v3000 = vlaneseq
        %v3001 = vshrl.u32 %v3000, 7
        %v3002 = vsub.s32 0, %v3001
        %v3003 = vrot.slane %v2775, %v3002
        %v3004 = vlaneseq
        %v3005 = vshrl.u32 %v3004, 7
        %v3006 = vsub.s32 0, %v3005
        %v3007 = vrot.slane %v2776, %v3006
        %v3008 = vlaneseq
        %v3009 = vshrl.u32 %v3008, 7
        %v3010 = vsub.s32 0, %v3009
        %v3011 = vrot.slane %v2777, %v3010
        %v3012 = vlaneseq
        %v3013 = vshrl.u32 %v3012, 7
        %v3014 = vsub.s32 0, %v3013
        %v3015 = vrot.slane %v2778, %v3014
        %v3016 = vlaneseq
        %v3017 = vshrl.u32 %v3016, 7
        %v3018 = vsub.s32 0, %v3017
        %v3019 = vrot.slane %v2779, %v3018
        %v3020 = vlaneseq
        %v3021 = vshrl.u32 %v3020, 7
        %v3022 = vsub.s32 0, %v3021
        %v3023 = vrot.slane %v2780, %v3022
        %vm3024 = vcmask 1041409
        %v3025 = vsel %vm3024, %v2839, %v2835
        %vm3026 = vcmask 1042434
        %v3027 = vsel %vm3026, %v2843, %v3025
        %vm3028 = vcmask 1043459
        %v3029 = vsel %vm3028, %v2847, %v3027
        %vm3030 = vcmask 1044484
        %v3031 = vsel %vm3030, %v2851, %v3029
        %vm3032 = vcmask 1045509
        %v3033 = vsel %vm3032, %v2855, %v3031
        %vm3034 = vcmask 1046534
        %v3035 = vsel %vm3034, %v2859, %v3033
        %vm3036 = vcmask 1047559
        %v3037 = vsel %vm3036, %v2863, %v3035
        %v3038 = vsel %vm3024, %v2871, %v2867
        %v3039 = vsel %vm3026, %v2875, %v3038
        %v3040 = vsel %vm3028, %v2879, %v3039
        %v3041 = vsel %vm3030, %v2883, %v3040
        %v3042 = vsel %vm3032, %v2887, %v3041
        %v3043 = vsel %vm3034, %v2891, %v3042
        %v3044 = vsel %vm3036, %v2895, %v3043
        %v3045 = vsel %vm3024, %v2903, %v2899
        %v3046 = vsel %vm3026, %v2907, %v3045
        %v3047 = vsel %vm3028, %v2911, %v3046
        %v3048 = vsel %vm3030, %v2915, %v3047
        %v3049 = vsel %vm3032, %v2919, %v3048
        %v3050 = vsel %vm3034, %v2923, %v3049
        %v3051 = vsel %vm3036, %v2927, %v3050
        %v3052 = vsel %vm3024, %v2935, %v2931
        %v3053 = vsel %vm3026, %v2939, %v3052
        %v3054 = vsel %vm3028, %v2943, %v3053
        %v3055 = vsel %vm3030, %v2947, %v3054
        %v3056 = vsel %vm3032, %v2951, %v3055
        %v3057 = vsel %vm3034, %v2955, %v3056
        %v3058 = vsel %vm3036, %v2959, %v3057
        %v3059 = vsel %vm3024, %v2967, %v2963
        %v3060 = vsel %vm3026, %v2971, %v3059
        %v3061 = vsel %vm3028, %v2975, %v3060
        %v3062 = vsel %vm3030, %v2979, %v3061
        %v3063 = vsel %vm3032, %v2983, %v3062
        %v3064 = vsel %vm3034, %v2987, %v3063
        %v3065 = vsel %vm3036, %v2991, %v3064
        %v3066 = vsel %vm3024, %v2999, %v2995
        %v3067 = vsel %vm3026, %v3003, %v3066
        %v3068 = vsel %vm3028, %v3007, %v3067
        %v3069 = vsel %vm3030, %v3011, %v3068
        %v3070 = vsel %vm3032, %v3015, %v3069
        %v3071 = vsel %vm3034, %v3019, %v3070
        %v3072 = vsel %vm3036, %v3023, %v3071
        %v3079 = vrot.slane %v3037, 7
        %v3080 = vrot.slane %v3044, 7
        %v3081 = vrot.slane %v3051, 7
        %v3082 = vrot.slane %v3058, 7
        %v3083 = vrot.slane %v3065, 7
        %v3084 = vrot.slane %v3072, 7
        %v3085 = vsel %vm2783, 0.0, %v3079
        %v3086 = vsel %vm2783, 0.0, %v3080
        %v3087 = vsel %vm2783, 0.0, %v3081
        %v3088 = vsel %vm2783, 0.0, %v3082
        %v3089 = vsel %vm2783, 0.0, %v3083
        %v3090 = vsel %vm2783, 0.0, %v3084
        %vm3091 = vcmp.eq.s32.totalorder %v2782, 7
        %v3092 = vrot.slane %v3037, 1
        %v3093 = vrot.slane %v3044, 1
        %v3094 = vrot.slane %v3051, 1
        %v3095 = vrot.slane %v3058, 1
        %v3096 = vrot.slane %v3065, 1
        %v3097 = vrot.slane %v3072, 1
        %v3098 = vsel %vm3091, 0.0, %v3092
        %v3099 = vsel %vm3091, 0.0, %v3093
        %v3100 = vsel %vm3091, 0.0, %v3094
        %v3101 = vsel %vm3091, 0.0, %v3095
        %v3102 = vsel %vm3091, 0.0, %v3096
        %v3103 = vsel %vm3091, 0.0, %v3097
        %v3104 = vpack.c.bf16 %v3085, %v3085
        %v3105 = vpack.c.bf16 %v3037, %v3037
        %v3106 = vpack.c.bf16 %v3098, %v3098
        %v3107 = vpack.c.bf16 %v3086, %v3086
        %v3108 = vpack.c.bf16 %v3044, %v3044
        %v3109 = vpack.c.bf16 %v3099, %v3099
        %v3110 = vpack.c.bf16 %v3087, %v3087
        %v3111 = vpack.c.bf16 %v3051, %v3051
        %v3112 = vpack.c.bf16 %v3100, %v3100
        %v3113 = vpack.c.bf16 %v3088, %v3088
        %v3114 = vpack.c.bf16 %v3058, %v3058
        %v3115 = vpack.c.bf16 %v3101, %v3101
        %v3116 = vpack.c.bf16 %v3089, %v3089
        %v3117 = vpack.c.bf16 %v3065, %v3065
        %v3118 = vpack.c.bf16 %v3102, %v3102
        %v3119 = vpack.c.bf16 %v3090, %v3090
        %v3120 = vpack.c.bf16 %v3072, %v3072
        %v3121 = vpack.c.bf16 %v3103, %v3103
        %v3134 = vunpack.c.l.b16 %v3104
        %v3135 = vunpack.c.l.b16 %v3105
        %v3136 = vunpack.c.l.b16 %v3106
        %v3137 = vunpack.c.l.b16 %v3107
        %v3138 = vunpack.c.l.b16 %v3108
        %v3139 = vunpack.c.l.b16 %v3109
        %v3140 = vunpack.c.l.b16 %v3110
        %v3141 = vunpack.c.l.b16 %v3111
        %v3142 = vunpack.c.l.b16 %v3112
        %v3143 = vunpack.c.l.b16 %v3113
        %v3144 = vunpack.c.l.b16 %v3114
        %v3145 = vunpack.c.l.b16 %v3115
        %v3146 = vld [vmem:[#allocation8] sm:$0xf]
        %v3147 = vld [vmem:[#allocation8 + $0x4] sm:$0xf]
        %v3148 = vld [vmem:[#allocation8 + $0x8] sm:$0xf]
        %v3149 = vld [vmem:[#allocation8 + $0xc] sm:$0xf]
        %v3150 = vld [vmem:[#allocation8 + $0x10] sm:$0xf]
        %v3151 = vld [vmem:[#allocation8 + $0x14] sm:$0xf]
        %v3152 = vld [vmem:[#allocation8 + $0x18] sm:$0xf]
        %v3153 = vld [vmem:[#allocation8 + $0x1c] sm:$0xf]
        %v3154 = vld [vmem:[#allocation8 + $0x20] sm:$0xf]
        %v3155 = vld [vmem:[#allocation8 + $0x24] sm:$0xf]
        %v3156 = vld [vmem:[#allocation8 + $0x28] sm:$0xf]
        %v3157 = vld [vmem:[#allocation8 + $0x2c] sm:$0xf]
        %v3158 = vld [vmem:[#allocation8 + $0x30] sm:$0xf]
        %v3159 = vld [vmem:[#allocation8 + $0x34] sm:$0xf]
        %v3160 = vld [vmem:[#allocation8 + $0x38] sm:$0xf]
        %v3161 = vld [vmem:[#allocation8 + $0x3c] sm:$0xf]
        %v3162 = vld [vmem:[#allocation8 + $0x40] sm:$0xf]
        %v3163 = vld [vmem:[#allocation8 + $0x44] sm:$0xf]
        %v3164 = vld [vmem:[#allocation8 + $0x48] sm:$0xf]
        %v3165 = vld [vmem:[#allocation8 + $0x4c] sm:$0xf]
        %v3166 = vld [vmem:[#allocation8 + $0x50] sm:$0xf]
        %v3167 = vld [vmem:[#allocation8 + $0x54] sm:$0xf]
        %v3168 = vld [vmem:[#allocation8 + $0x58] sm:$0xf]
        %v3169 = vld [vmem:[#allocation8 + $0x5c] sm:$0xf]
        %v3170 = vld [vmem:[#allocation8 + $0x60] sm:$0xf]
        %v3171 = vld [vmem:[#allocation8 + $0x64] sm:$0xf]
        %v3172 = vld [vmem:[#allocation8 + $0x68] sm:$0xf]
        %v3173 = vld [vmem:[#allocation8 + $0x6c] sm:$0xf]
        %v3174 = vld [vmem:[#allocation8 + $0x70] sm:$0xf]
        %v3175 = vld [vmem:[#allocation8 + $0x74] sm:$0xf]
        %v3176 = vld [vmem:[#allocation8 + $0x78] sm:$0xf]
        %v3177 = vld [vmem:[#allocation8 + $0x7c] sm:$0xf]
        %v3178 = vld [vmem:[#allocation8 + $0x80] sm:$0xf]
        %v3179 = vld [vmem:[#allocation8 + $0x84] sm:$0xf]
        %v3180 = vld [vmem:[#allocation8 + $0x88] sm:$0xf]
        %v3181 = vld [vmem:[#allocation8 + $0x8c] sm:$0xf]
        %v3182 = vld [vmem:[#allocation8 + $0x90] sm:$0xf]
        %v3183 = vld [vmem:[#allocation8 + $0x94] sm:$0xf]
        %v3184 = vld [vmem:[#allocation8 + $0x98] sm:$0xf]
        %v3185 = vld [vmem:[#allocation8 + $0x9c] sm:$0xf]
        %v3186 = vld [vmem:[#allocation8 + $0xa0] sm:$0xf]
        %v3187 = vld [vmem:[#allocation8 + $0xa4] sm:$0xf]
        %v3188 = vld [vmem:[#allocation8 + $0xa8] sm:$0xf]
        %v3189 = vld [vmem:[#allocation8 + $0xac] sm:$0xf]
        %v3190 = vld [vmem:[#allocation8 + $0xb0] sm:$0xf]
        %v3191 = vld [vmem:[#allocation8 + $0xb4] sm:$0xf]
        %v3192 = vld [vmem:[#allocation8 + $0xb8] sm:$0xf]
        %v3193 = vld [vmem:[#allocation8 + $0xbc] sm:$0xf]
        %v3197 = vunpack.c.l.b16 %v3116
        %v3198 = vunpack.c.l.b16 %v3117
        %v3199 = vunpack.c.l.b16 %v3118
        %s3200 = scalar_lea.vmem [#allocation8], 192
        %v3201 = vld [vmem:[%s3200] sm:$0xf]
        %v3202 = vld [vmem:[%s3200 + $0x4] sm:$0xf]
        %v3203 = vld [vmem:[%s3200 + $0x8] sm:$0xf]
        %v3204 = vld [vmem:[%s3200 + $0xc] sm:$0xf]
        %v3205 = vld [vmem:[%s3200 + $0x10] sm:$0xf]
        %v3206 = vld [vmem:[%s3200 + $0x14] sm:$0xf]
        %v3207 = vld [vmem:[%s3200 + $0x18] sm:$0xf]
        %v3208 = vld [vmem:[%s3200 + $0x1c] sm:$0xf]
        %v3209 = vld [vmem:[%s3200 + $0x20] sm:$0xf]
        %v3210 = vld [vmem:[%s3200 + $0x24] sm:$0xf]
        %v3211 = vld [vmem:[%s3200 + $0x28] sm:$0xf]
        %v3212 = vld [vmem:[%s3200 + $0x2c] sm:$0xf]
        %v3213 = vld [vmem:[%s3200 + $0x30] sm:$0xf]
        %v3214 = vld [vmem:[%s3200 + $0x34] sm:$0xf]
        %v3215 = vld [vmem:[%s3200 + $0x38] sm:$0xf]
        %v3216 = vld [vmem:[%s3200 + $0x3c] sm:$0xf]
        %v3217 = vld [vmem:[%s3200 + $0x40] sm:$0xf]
        %v3218 = vld [vmem:[%s3200 + $0x44] sm:$0xf]
        %v3219 = vld [vmem:[%s3200 + $0x48] sm:$0xf]
        %v3220 = vld [vmem:[%s3200 + $0x4c] sm:$0xf]
        %v3221 = vld [vmem:[%s3200 + $0x50] sm:$0xf]
        %v3222 = vld [vmem:[%s3200 + $0x54] sm:$0xf]
        %v3223 = vld [vmem:[%s3200 + $0x58] sm:$0xf]
        %v3224 = vld [vmem:[%s3200 + $0x5c] sm:$0xf]
        %v3225 = vld [vmem:[%s3200 + $0x60] sm:$0xf]
        %v3226 = vld [vmem:[%s3200 + $0x64] sm:$0xf]
        %v3227 = vld [vmem:[%s3200 + $0x68] sm:$0xf]
        %v3228 = vld [vmem:[%s3200 + $0x6c] sm:$0xf]
        %v3229 = vld [vmem:[%s3200 + $0x70] sm:$0xf]
        %v3230 = vld [vmem:[%s3200 + $0x74] sm:$0xf]
        %v3231 = vld [vmem:[%s3200 + $0x78] sm:$0xf]
        %v3232 = vld [vmem:[%s3200 + $0x7c] sm:$0xf]
        %v3233 = vld [vmem:[%s3200 + $0x80] sm:$0xf]
        %v3234 = vld [vmem:[%s3200 + $0x84] sm:$0xf]
        %v3235 = vld [vmem:[%s3200 + $0x88] sm:$0xf]
        %v3236 = vld [vmem:[%s3200 + $0x8c] sm:$0xf]
        %v3237 = vld [vmem:[%s3200 + $0x90] sm:$0xf]
        %v3238 = vld [vmem:[%s3200 + $0x94] sm:$0xf]
        %v3239 = vld [vmem:[%s3200 + $0x98] sm:$0xf]
        %v3240 = vld [vmem:[%s3200 + $0x9c] sm:$0xf]
        %v3241 = vld [vmem:[%s3200 + $0xa0] sm:$0xf]
        %v3242 = vld [vmem:[%s3200 + $0xa4] sm:$0xf]
        %v3243 = vld [vmem:[%s3200 + $0xa8] sm:$0xf]
        %v3244 = vld [vmem:[%s3200 + $0xac] sm:$0xf]
        %v3245 = vld [vmem:[%s3200 + $0xb0] sm:$0xf]
        %v3246 = vld [vmem:[%s3200 + $0xb4] sm:$0xf]
        %v3247 = vld [vmem:[%s3200 + $0xb8] sm:$0xf]
        %v3248 = vld [vmem:[%s3200 + $0xbc] sm:$0xf]
        %v3249 = vpack.c.b16 %v3140, %v3137
        %v3250 = vpack.c.b16 %v3141, %v3138
        %v3251 = vpack.c.b16 %v3142, %v3139
        %v3252 = vpack.c.b16 %v3197, %v3143
        %v3253 = vpack.c.b16 %v3198, %v3144
        %v3254 = vpack.c.b16 %v3199, %v3145
        %v3309 = vunpack.c.l.b16 %v3201
        %v3310 = vunpack.c.l.b16 %v3202
        %v3311 = vunpack.c.l.b16 %v3203
        %v3312 = vunpack.c.l.b16 %v3204
        %v3313 = vunpack.c.l.b16 %v3205
        %v3314 = vunpack.c.l.b16 %v3206
        %v3315 = vunpack.c.l.b16 %v3207
        %v3316 = vunpack.c.l.b16 %v3208
        %v3317 = vunpack.c.l.b16 %v3209
        %v3318 = vunpack.c.l.b16 %v3210
        %v3319 = vunpack.c.l.b16 %v3211
        %v3320 = vunpack.c.l.b16 %v3212
        %v3321 = vunpack.c.l.b16 %v3213
        %v3322 = vunpack.c.l.b16 %v3214
        %v3323 = vunpack.c.l.b16 %v3215
        %v3324 = vunpack.c.l.b16 %v3216
        %v3325 = vunpack.c.l.b16 %v3217
        %v3326 = vunpack.c.l.b16 %v3218
        %v3327 = vunpack.c.l.b16 %v3219
        %v3328 = vunpack.c.l.b16 %v3220
        %v3329 = vunpack.c.l.b16 %v3221
        %v3330 = vunpack.c.l.b16 %v3222
        %v3331 = vunpack.c.l.b16 %v3223
        %v3332 = vunpack.c.l.b16 %v3224
        %v3333 = vunpack.c.l.b16 %v3225
        %v3334 = vunpack.c.l.b16 %v3226
        %v3335 = vunpack.c.l.b16 %v3227
        %v3336 = vunpack.c.l.b16 %v3228
        %v3337 = vunpack.c.l.b16 %v3229
        %v3338 = vunpack.c.l.b16 %v3230
        %v3339 = vunpack.c.l.b16 %v3231
        %v3340 = vunpack.c.l.b16 %v3232
        %v3341 = vunpack.c.l.b16 %v3233
        %v3342 = vunpack.c.l.b16 %v3234
        %v3343 = vunpack.c.l.b16 %v3235
        %v3344 = vunpack.c.l.b16 %v3236
        %v3345 = vunpack.c.l.b16 %v3237
        %v3346 = vunpack.c.l.b16 %v3238
        %v3347 = vunpack.c.l.b16 %v3239
        %v3348 = vunpack.c.l.b16 %v3240
        %v3349 = vunpack.c.l.b16 %v3241
        %v3350 = vunpack.c.l.b16 %v3242
        %v3351 = vunpack.c.l.b16 %v3243
        %v3352 = vunpack.c.l.b16 %v3244
        %v3353 = vunpack.c.l.b16 %v3245
        %v3354 = vunpack.c.l.b16 %v3246
        %v3355 = vunpack.c.l.b16 %v3247
        %v3356 = vunpack.c.l.b16 %v3248
        %v3357 = vpack.c.b16 %v3310, %v3309
        %v3358 = vpack.c.b16 %v3312, %v3311
        %v3359 = vpack.c.b16 %v3314, %v3313
        %v3360 = vpack.c.b16 %v3316, %v3315
        %v3361 = vpack.c.b16 %v3318, %v3317
        %v3362 = vpack.c.b16 %v3320, %v3319
        %v3363 = vpack.c.b16 %v3322, %v3321
        %v3364 = vpack.c.b16 %v3324, %v3323
        %v3365 = vpack.c.b16 %v3326, %v3325
        %v3366 = vpack.c.b16 %v3328, %v3327
        %v3367 = vpack.c.b16 %v3330, %v3329
        %v3368 = vpack.c.b16 %v3332, %v3331
        %v3369 = vpack.c.b16 %v3334, %v3333
        %v3370 = vpack.c.b16 %v3336, %v3335
        %v3371 = vpack.c.b16 %v3338, %v3337
        %v3372 = vpack.c.b16 %v3340, %v3339
        %v3373 = vpack.c.b16 %v3342, %v3341
        %v3374 = vpack.c.b16 %v3344, %v3343
        %v3375 = vpack.c.b16 %v3346, %v3345
        %v3376 = vpack.c.b16 %v3348, %v3347
        %v3377 = vpack.c.b16 %v3350, %v3349
        %v3378 = vpack.c.b16 %v3352, %v3351
        %v3379 = vpack.c.b16 %v3354, %v3353
        %v3380 = vpack.c.b16 %v3356, %v3355
        %3405 = vmatprep.subr.bf16.mxu0 0
        %3406 = vmatpush1.bf16.msra.mxu0 %v3357
        %3407 = vmatprep.subr.bf16.mxu0 0
        %3408 = vmatpush1.bf16.msra.mxu0 %v3358
        %3409 = vmatprep.subr.bf16.mxu0 0
        %3410 = vmatpush1.bf16.msra.mxu0 %v3359
        %3411 = vmatprep.subr.bf16.mxu0 0
        %3412 = vmatpush1.bf16.msra.mxu0 %v3360
        %3413 = vmatprep.subr.bf16.mxu0 0
        %3414 = vmatpush1.bf16.msra.mxu0 %v3361
        %3415 = vmatprep.subr.bf16.mxu0 0
        %3416 = vmatpush1.bf16.msra.mxu0 %v3362
        %3417 = vmatprep.subr.bf16.mxu0 0
        %3418 = vmatpush1.bf16.msra.mxu0 %v3363
        %3419 = vmatprep.subr.bf16.mxu0 0
        %3420 = vmatpush1.bf16.msra.mxu0 %v3364
        %3421 = vmatprep.subr.bf16.mxu0 0
        %3422 = vmatpush1.bf16.msra.mxu0 %v3365
        %3423 = vmatprep.subr.bf16.mxu0 0
        %3424 = vmatpush1.bf16.msra.mxu0 %v3366
        %3425 = vmatprep.subr.bf16.mxu0 0
        %3426 = vmatpush1.bf16.msra.mxu0 %v3367
        %3427 = vmatprep.subr.bf16.mxu0 0
        %3428 = vmatpush1.bf16.msra.mxu0 %v3368
        %3429 = vmatprep.subr.bf16.mxu0 0
        %3430 = vmatpush1.bf16.msra.mxu0 %v3369
        %3431 = vmatprep.subr.bf16.mxu0 0
        %3432 = vmatpush1.bf16.msra.mxu0 %v3370
        %3433 = vmatprep.subr.bf16.mxu0 0
        %3434 = vmatpush1.bf16.msra.mxu0 %v3371
        %3435 = vmatprep.subr.bf16.mxu0 0
        %3436 = vmatpush1.bf16.msra.mxu0 %v3372
        %3437 = vmatprep.mubr.bf16.mxu0 %v3250
        %3438 = vmatmul.mubr.bf16.gmra.mrb[0].mxu0 %v3249
        %v3439 = vpop.f32.mrb[0].mxu0
        %v3440 = vadd.f32 0.0, %v3439
        %v3441 = vpop.f32.mrb[0].mxu0
        %v3442 = vpop.f32.mrb[0].mxu0
        %v3443 = vadd.f32 0.0, %v3442
        %v3444 = vpop.f32.mrb[0].mxu0
        %3445 = vmatprep.mubr.bf16.mxu0 %v3253
        %3446 = vmatmul.mubr.bf16.gmra.mrb[0].mxu0 %v3252
        %v3447 = vpop.f32.mrb[0].mxu0
        %v3448 = vadd.f32 0.0, %v3447
        %v3449 = vpop.f32.mrb[0].mxu0
        %v3450 = vpop.f32.mrb[0].mxu0
        %v3451 = vadd.f32 0.0, %v3450
        %v3452 = vpop.f32.mrb[0].mxu0
        %3453 = vdwg.mxu0
        %3454 = vmatprep.subr.bf16.mxu0 0
        %3455 = vmatpush1.bf16.msra.mxu0 %v3373
        %3456 = vmatprep.subr.bf16.mxu0 0
        %3457 = vmatpush1.bf16.msra.mxu0 %v3374
        %3458 = vmatprep.subr.bf16.mxu0 0
        %3459 = vmatpush1.bf16.msra.mxu0 %v3375
        %3460 = vmatprep.subr.bf16.mxu0 0
        %3461 = vmatpush1.bf16.msra.mxu0 %v3376
        %3462 = vmatprep.subr.bf16.mxu0 0
        %3463 = vmatpush1.bf16.msra.mxu0 %v3377
        %3464 = vmatprep.subr.bf16.mxu0 0
        %3465 = vmatpush1.bf16.msra.mxu0 %v3378
        %3466 = vmatprep.subr.bf16.mxu0 0
        %3467 = vmatpush1.bf16.msra.mxu0 %v3379
        %3468 = vmatprep.subr.bf16.mxu0 0
        %3469 = vmatpush1.bf16.msra.mxu0 %v3380
        %3470 = vmatprep.subr.bf16.mxu0 0
        %3471 = vmatpush1.bf16.msra.mxu0 0
        %3472 = vmatprep.subr.bf16.mxu0 0
        %3473 = vmatpush1.bf16.msra.mxu0 0
        %3474 = vmatprep.subr.bf16.mxu0 0
        %3475 = vmatpush1.bf16.msra.mxu0 0
        %3476 = vmatprep.subr.bf16.mxu0 0
        %3477 = vmatpush1.bf16.msra.mxu0 0
        %3478 = vmatprep.subr.bf16.mxu0 0
        %3479 = vmatpush1.bf16.msra.mxu0 0
        %3480 = vmatprep.subr.bf16.mxu0 0
        %3481 = vmatpush1.bf16.msra.mxu0 0
        %3482 = vmatprep.subr.bf16.mxu0 0
        %3483 = vmatpush1.bf16.msra.mxu0 0
        %3484 = vmatprep.subr.bf16.mxu0 0
        %3485 = vmatpush1.bf16.msra.mxu0 0
        %3486 = vmatprep.mubr.bf16.mxu0 0
        %3487 = vmatmul.mubr.bf16.gmra.mrb[0].mxu0 %v3251
        %v3488 = vpop.f32.mrb[0].mxu0
        %v3489 = vadd.f32 %v3440, %v3488
        %v3490 = vpop.f32.mrb[0].mxu0
        %v3491 = vpop.f32.mrb[0].mxu0
        %v3492 = vadd.f32 %v3443, %v3491
        %v3493 = vpop.f32.mrb[0].mxu0
        %3494 = vmatprep.mubr.bf16.mxu0 0
        %3495 = vmatmul.mubr.bf16.gmra.mrb[0].mxu0 %v3254
        %v3496 = vpop.f32.mrb[0].mxu0
        %v3497 = vadd.f32 %v3448, %v3496
        %v3498 = vpop.f32.mrb[0].mxu0
        %v3499 = vpop.f32.mrb[0].mxu0
        %v3500 = vadd.f32 %v3451, %v3499
        %v3501 = vpop.f32.mrb[0].mxu0
        %3502 = vdwg.mxu0
        %v3503 = vpack.c.b16 %v3137, %v3134
        %v3504 = vpack.c.b16 %v3138, %v3135
        %v3505 = vpack.c.b16 %v3139, %v3136
        %v3506 = vpack.c.b16 %v3143, %v3140
        %v3507 = vpack.c.b16 %v3144, %v3141
        %v3508 = vpack.c.b16 %v3145, %v3142
        %v3563 = vunpack.c.l.b16 %v3146
        %v3564 = vunpack.c.l.b16 %v3147
        %v3565 = vunpack.c.l.b16 %v3148
        %v3566 = vunpack.c.l.b16 %v3149
        %v3567 = vunpack.c.l.b16 %v3150
        %v3568 = vunpack.c.l.b16 %v3151
        %v3569 = vunpack.c.l.b16 %v3152
        %v3570 = vunpack.c.l.b16 %v3153
        %v3571 = vunpack.c.l.b16 %v3154
        %v3572 = vunpack.c.l.b16 %v3155
        %v3573 = vunpack.c.l.b16 %v3156
        %v3574 = vunpack.c.l.b16 %v3157
        %v3575 = vunpack.c.l.b16 %v3158
        %v3576 = vunpack.c.l.b16 %v3159
        %v3577 = vunpack.c.l.b16 %v3160
        %v3578 = vunpack.c.l.b16 %v3161
        %v3579 = vunpack.c.l.b16 %v3162
        %v3580 = vunpack.c.l.b16 %v3163
        %v3581 = vunpack.c.l.b16 %v3164
        %v3582 = vunpack.c.l.b16 %v3165
        %v3583 = vunpack.c.l.b16 %v3166
        %v3584 = vunpack.c.l.b16 %v3167
        %v3585 = vunpack.c.l.b16 %v3168
        %v3586 = vunpack.c.l.b16 %v3169
        %v3587 = vunpack.c.l.b16 %v3170
        %v3588 = vunpack.c.l.b16 %v3171
        %v3589 = vunpack.c.l.b16 %v3172
        %v3590 = vunpack.c.l.b16 %v3173
        %v3591 = vunpack.c.l.b16 %v3174
        %v3592 = vunpack.c.l.b16 %v3175
        %v3593 = vunpack.c.l.b16 %v3176
        %v3594 = vunpack.c.l.b16 %v3177
        %v3595 = vunpack.c.l.b16 %v3178
        %v3596 = vunpack.c.l.b16 %v3179
        %v3597 = vunpack.c.l.b16 %v3180
        %v3598 = vunpack.c.l.b16 %v3181
        %v3599 = vunpack.c.l.b16 %v3182
        %v3600 = vunpack.c.l.b16 %v3183
        %v3601 = vunpack.c.l.b16 %v3184
        %v3602 = vunpack.c.l.b16 %v3185
        %v3603 = vunpack.c.l.b16 %v3186
        %v3604 = vunpack.c.l.b16 %v3187
        %v3605 = vunpack.c.l.b16 %v3188
        %v3606 = vunpack.c.l.b16 %v3189
        %v3607 = vunpack.c.l.b16 %v3190
        %v3608 = vunpack.c.l.b16 %v3191
        %v3609 = vunpack.c.l.b16 %v3192
        %v3610 = vunpack.c.l.b16 %v3193
        %v3611 = vpack.c.b16 %v3564, %v3563
        %v3612 = vpack.c.b16 %v3566, %v3565
        %v3613 = vpack.c.b16 %v3568, %v3567
        %v3614 = vpack.c.b16 %v3570, %v3569
        %v3615 = vpack.c.b16 %v3572, %v3571
        %v3616 = vpack.c.b16 %v3574, %v3573
        %v3617 = vpack.c.b16 %v3576, %v3575
        %v3618 = vpack.c.b16 %v3578, %v3577
        %v3619 = vpack.c.b16 %v3580, %v3579
        %v3620 = vpack.c.b16 %v3582, %v3581
        %v3621 = vpack.c.b16 %v3584, %v3583
        %v3622 = vpack.c.b16 %v3586, %v3585
        %v3623 = vpack.c.b16 %v3588, %v3587
        %v3624 = vpack.c.b16 %v3590, %v3589
        %v3625 = vpack.c.b16 %v3592, %v3591
        %v3626 = vpack.c.b16 %v3594, %v3593
        %v3627 = vpack.c.b16 %v3596, %v3595
        %v3628 = vpack.c.b16 %v3598, %v3597
        %v3629 = vpack.c.b16 %v3600, %v3599
        %v3630 = vpack.c.b16 %v3602, %v3601
        %v3631 = vpack.c.b16 %v3604, %v3603
        %v3632 = vpack.c.b16 %v3606, %v3605
        %v3633 = vpack.c.b16 %v3608, %v3607
        %v3634 = vpack.c.b16 %v3610, %v3609
        %3659 = vmatprep.subr.bf16.mxu0 0
        %3660 = vmatpush1.bf16.msra.mxu0 %v3611
        %3661 = vmatprep.subr.bf16.mxu0 0
        %3662 = vmatpush1.bf16.msra.mxu0 %v3612
        %3663 = vmatprep.subr.bf16.mxu0 0
        %3664 = vmatpush1.bf16.msra.mxu0 %v3613
        %3665 = vmatprep.subr.bf16.mxu0 0
        %3666 = vmatpush1.bf16.msra.mxu0 %v3614
        %3667 = vmatprep.subr.bf16.mxu0 0
        %3668 = vmatpush1.bf16.msra.mxu0 %v3615
        %3669 = vmatprep.subr.bf16.mxu0 0
        %3670 = vmatpush1.bf16.msra.mxu0 %v3616
        %3671 = vmatprep.subr.bf16.mxu0 0
        %3672 = vmatpush1.bf16.msra.mxu0 %v3617
        %3673 = vmatprep.subr.bf16.mxu0 0
        %3674 = vmatpush1.bf16.msra.mxu0 %v3618
        %3675 = vmatprep.subr.bf16.mxu0 0
        %3676 = vmatpush1.bf16.msra.mxu0 %v3619
        %3677 = vmatprep.subr.bf16.mxu0 0
        %3678 = vmatpush1.bf16.msra.mxu0 %v3620
        %3679 = vmatprep.subr.bf16.mxu0 0
        %3680 = vmatpush1.bf16.msra.mxu0 %v3621
        %3681 = vmatprep.subr.bf16.mxu0 0
        %3682 = vmatpush1.bf16.msra.mxu0 %v3622
        %3683 = vmatprep.subr.bf16.mxu0 0
        %3684 = vmatpush1.bf16.msra.mxu0 %v3623
        %3685 = vmatprep.subr.bf16.mxu0 0
        %3686 = vmatpush1.bf16.msra.mxu0 %v3624
        %3687 = vmatprep.subr.bf16.mxu0 0
        %3688 = vmatpush1.bf16.msra.mxu0 %v3625
        %3689 = vmatprep.subr.bf16.mxu0 0
        %3690 = vmatpush1.bf16.msra.mxu0 %v3626
        %3691 = vmatprep.mubr.bf16.mxu0 %v3504
        %3692 = vmatmul.mubr.bf16.gmra.mrb[0].mxu0 %v3503
        %v3693 = vpop.f32.mrb[0].mxu0
        %v3694 = vadd.f32 %v3489, %v3693
        %v3695 = vpop.f32.mrb[0].mxu0
        %v3696 = vpop.f32.mrb[0].mxu0
        %v3697 = vadd.f32 %v3492, %v3696
        %v3698 = vpop.f32.mrb[0].mxu0
        %3699 = vmatprep.mubr.bf16.mxu0 %v3507
        %3700 = vmatmul.mubr.bf16.gmra.mrb[0].mxu0 %v3506
        %v3701 = vpop.f32.mrb[0].mxu0
        %v3702 = vadd.f32 %v3497, %v3701
        %v3703 = vpop.f32.mrb[0].mxu0
        %v3704 = vpop.f32.mrb[0].mxu0
        %v3705 = vadd.f32 %v3500, %v3704
        %v3706 = vpop.f32.mrb[0].mxu0
        %3707 = vdwg.mxu0
        %3708 = vmatprep.subr.bf16.mxu0 0
        %3709 = vmatpush1.bf16.msra.mxu0 %v3627
        %3710 = vmatprep.subr.bf16.mxu0 0
        %3711 = vmatpush1.bf16.msra.mxu0 %v3628
        %3712 = vmatprep.subr.bf16.mxu0 0
        %3713 = vmatpush1.bf16.msra.mxu0 %v3629
        %3714 = vmatprep.subr.bf16.mxu0 0
        %3715 = vmatpush1.bf16.msra.mxu0 %v3630
        %3716 = vmatprep.subr.bf16.mxu0 0
        %3717 = vmatpush1.bf16.msra.mxu0 %v3631
        %3718 = vmatprep.subr.bf16.mxu0 0
        %3719 = vmatpush1.bf16.msra.mxu0 %v3632
        %3720 = vmatprep.subr.bf16.mxu0 0
        %3721 = vmatpush1.bf16.msra.mxu0 %v3633
        %3722 = vmatprep.subr.bf16.mxu0 0
        %3723 = vmatpush1.bf16.msra.mxu0 %v3634
        %3724 = vmatprep.subr.bf16.mxu0 0
        %3725 = vmatpush1.bf16.msra.mxu0 0
        %3726 = vmatprep.subr.bf16.mxu0 0
        %3727 = vmatpush1.bf16.msra.mxu0 0
        %3728 = vmatprep.subr.bf16.mxu0 0
        %3729 = vmatpush1.bf16.msra.mxu0 0
        %3730 = vmatprep.subr.bf16.mxu0 0
        %3731 = vmatpush1.bf16.msra.mxu0 0
        %3732 = vmatprep.subr.bf16.mxu0 0
        %3733 = vmatpush1.bf16.msra.mxu0 0
        %3734 = vmatprep.subr.bf16.mxu0 0
        %3735 = vmatpush1.bf16.msra.mxu0 0
        %3736 = vmatprep.subr.bf16.mxu0 0
        %3737 = vmatpush1.bf16.msra.mxu0 0
        %3738 = vmatprep.subr.bf16.mxu0 0
        %3739 = vmatpush1.bf16.msra.mxu0 0
        %3740 = vmatprep.mubr.bf16.mxu0 0
        %3741 = vmatmul.mubr.bf16.gmra.mrb[0].mxu0 %v3505
        %v3742 = vpop.f32.mrb[0].mxu0
        %v3743 = vadd.f32 %v3694, %v3742
        %v3744 = vpop.f32.mrb[0].mxu0
        %v3745 = vpop.f32.mrb[0].mxu0
        %v3746 = vadd.f32 %v3697, %v3745
        %v3747 = vpop.f32.mrb[0].mxu0
        %3748 = vmatprep.mubr.bf16.mxu0 0
        %3749 = vmatmul.mubr.bf16.gmra.mrb[0].mxu0 %v3508
        %v3750 = vpop.f32.mrb[0].mxu0
        %v3751 = vadd.f32 %v3702, %v3750
        %v3752 = vpop.f32.mrb[0].mxu0
        %v3753 = vpop.f32.mrb[0].mxu0
        %v3754 = vadd.f32 %v3705, %v3753
        %v3755 = vpop.f32.mrb[0].mxu0
        %3756 = vdwg.mxu0
        %v3760 = vunpack.c.l.b16 %v3119
        %v3761 = vunpack.c.l.b16 %v3120
        %v3762 = vunpack.c.l.b16 %v3121
        %s3763 = scalar_lea.vmem [#allocation8], 384
        %v3764 = vld [vmem:[%s3763] sm:$0xf]
        %v3765 = vld [vmem:[%s3763 + $0x4] sm:$0xf]
        %v3766 = vld [vmem:[%s3763 + $0x8] sm:$0xf]
        %v3767 = vld [vmem:[%s3763 + $0xc] sm:$0xf]
        %v3768 = vld [vmem:[%s3763 + $0x10] sm:$0xf]
        %v3769 = vld [vmem:[%s3763 + $0x14] sm:$0xf]
        %v3770 = vld [vmem:[%s3763 + $0x18] sm:$0xf]
        %v3771 = vld [vmem:[%s3763 + $0x1c] sm:$0xf]
        %v3772 = vld [vmem:[%s3763 + $0x20] sm:$0xf]
        %v3773 = vld [vmem:[%s3763 + $0x24] sm:$0xf]
        %v3774 = vld [vmem:[%s3763 + $0x28] sm:$0xf]
        %v3775 = vld [vmem:[%s3763 + $0x2c] sm:$0xf]
        %v3776 = vld [vmem:[%s3763 + $0x30] sm:$0xf]
        %v3777 = vld [vmem:[%s3763 + $0x34] sm:$0xf]
        %v3778 = vld [vmem:[%s3763 + $0x38] sm:$0xf]
        %v3779 = vld [vmem:[%s3763 + $0x3c] sm:$0xf]
        %v3780 = vld [vmem:[%s3763 + $0x40] sm:$0xf]
        %v3781 = vld [vmem:[%s3763 + $0x44] sm:$0xf]
        %v3782 = vld [vmem:[%s3763 + $0x48] sm:$0xf]
        %v3783 = vld [vmem:[%s3763 + $0x4c] sm:$0xf]
        %v3784 = vld [vmem:[%s3763 + $0x50] sm:$0xf]
        %v3785 = vld [vmem:[%s3763 + $0x54] sm:$0xf]
        %v3786 = vld [vmem:[%s3763 + $0x58] sm:$0xf]
        %v3787 = vld [vmem:[%s3763 + $0x5c] sm:$0xf]
        %v3788 = vld [vmem:[%s3763 + $0x60] sm:$0xf]
        %v3789 = vld [vmem:[%s3763 + $0x64] sm:$0xf]
        %v3790 = vld [vmem:[%s3763 + $0x68] sm:$0xf]
        %v3791 = vld [vmem:[%s3763 + $0x6c] sm:$0xf]
        %v3792 = vld [vmem:[%s3763 + $0x70] sm:$0xf]
        %v3793 = vld [vmem:[%s3763 + $0x74] sm:$0xf]
        %v3794 = vld [vmem:[%s3763 + $0x78] sm:$0xf]
        %v3795 = vld [vmem:[%s3763 + $0x7c] sm:$0xf]
        %v3796 = vld [vmem:[%s3763 + $0x80] sm:$0xf]
        %v3797 = vld [vmem:[%s3763 + $0x84] sm:$0xf]
        %v3798 = vld [vmem:[%s3763 + $0x88] sm:$0xf]
        %v3799 = vld [vmem:[%s3763 + $0x8c] sm:$0xf]
        %v3800 = vld [vmem:[%s3763 + $0x90] sm:$0xf]
        %v3801 = vld [vmem:[%s3763 + $0x94] sm:$0xf]
        %v3802 = vld [vmem:[%s3763 + $0x98] sm:$0xf]
        %v3803 = vld [vmem:[%s3763 + $0x9c] sm:$0xf]
        %v3804 = vld [vmem:[%s3763 + $0xa0] sm:$0xf]
        %v3805 = vld [vmem:[%s3763 + $0xa4] sm:$0xf]
        %v3806 = vld [vmem:[%s3763 + $0xa8] sm:$0xf]
        %v3807 = vld [vmem:[%s3763 + $0xac] sm:$0xf]
        %v3808 = vld [vmem:[%s3763 + $0xb0] sm:$0xf]
        %v3809 = vld [vmem:[%s3763 + $0xb4] sm:$0xf]
        %v3810 = vld [vmem:[%s3763 + $0xb8] sm:$0xf]
        %v3811 = vld [vmem:[%s3763 + $0xbc] sm:$0xf]
        %v3812 = vpack.c.b16 %v3760, %v3197
        %v3813 = vpack.c.b16 %v3761, %v3198
        %v3814 = vpack.c.b16 %v3762, %v3199
        %v3866 = vunpack.c.l.b16 %v3764
        %v3867 = vunpack.c.l.b16 %v3765
        %v3868 = vunpack.c.l.b16 %v3766
        %v3869 = vunpack.c.l.b16 %v3767
        %v3870 = vunpack.c.l.b16 %v3768
        %v3871 = vunpack.c.l.b16 %v3769
        %v3872 = vunpack.c.l.b16 %v3770
        %v3873 = vunpack.c.l.b16 %v3771
        %v3874 = vunpack.c.l.b16 %v3772
        %v3875 = vunpack.c.l.b16 %v3773
        %v3876 = vunpack.c.l.b16 %v3774
        %v3877 = vunpack.c.l.b16 %v3775
        %v3878 = vunpack.c.l.b16 %v3776
        %v3879 = vunpack.c.l.b16 %v3777
        %v3880 = vunpack.c.l.b16 %v3778
        %v3881 = vunpack.c.l.b16 %v3779
        %v3882 = vunpack.c.l.b16 %v3780
        %v3883 = vunpack.c.l.b16 %v3781
        %v3884 = vunpack.c.l.b16 %v3782
        %v3885 = vunpack.c.l.b16 %v3783
        %v3886 = vunpack.c.l.b16 %v3784
        %v3887 = vunpack.c.l.b16 %v3785
        %v3888 = vunpack.c.l.b16 %v3786
        %v3889 = vunpack.c.l.b16 %v3787
        %v3890 = vunpack.c.l.b16 %v3788
        %v3891 = vunpack.c.l.b16 %v3789
        %v3892 = vunpack.c.l.b16 %v3790
        %v3893 = vunpack.c.l.b16 %v3791
        %v3894 = vunpack.c.l.b16 %v3792
        %v3895 = vunpack.c.l.b16 %v3793
        %v3896 = vunpack.c.l.b16 %v3794
        %v3897 = vunpack.c.l.b16 %v3795
        %v3898 = vunpack.c.l.b16 %v3796
        %v3899 = vunpack.c.l.b16 %v3797
        %v3900 = vunpack.c.l.b16 %v3798
        %v3901 = vunpack.c.l.b16 %v3799
        %v3902 = vunpack.c.l.b16 %v3800
        %v3903 = vunpack.c.l.b16 %v3801
        %v3904 = vunpack.c.l.b16 %v3802
        %v3905 = vunpack.c.l.b16 %v3803
        %v3906 = vunpack.c.l.b16 %v3804
        %v3907 = vunpack.c.l.b16 %v3805
        %v3908 = vunpack.c.l.b16 %v3806
        %v3909 = vunpack.c.l.b16 %v3807
        %v3910 = vunpack.c.l.b16 %v3808
        %v3911 = vunpack.c.l.b16 %v3809
        %v3912 = vunpack.c.l.b16 %v3810
        %v3913 = vunpack.c.l.b16 %v3811
        %v3914 = vpack.c.b16 %v3867, %v3866
        %v3915 = vpack.c.b16 %v3869, %v3868
        %v3916 = vpack.c.b16 %v3871, %v3870
        %v3917 = vpack.c.b16 %v3873, %v3872
        %v3918 = vpack.c.b16 %v3875, %v3874
        %v3919 = vpack.c.b16 %v3877, %v3876
        %v3920 = vpack.c.b16 %v3879, %v3878
        %v3921 = vpack.c.b16 %v3881, %v3880
        %v3922 = vpack.c.b16 %v3883, %v3882
        %v3923 = vpack.c.b16 %v3885, %v3884
        %v3924 = vpack.c.b16 %v3887, %v3886
        %v3925 = vpack.c.b16 %v3889, %v3888
        %v3926 = vpack.c.b16 %v3891, %v3890
        %v3927 = vpack.c.b16 %v3893, %v3892
        %v3928 = vpack.c.b16 %v3895, %v3894
        %v3929 = vpack.c.b16 %v3897, %v3896
        %v3930 = vpack.c.b16 %v3899, %v3898
        %v3931 = vpack.c.b16 %v3901, %v3900
        %v3932 = vpack.c.b16 %v3903, %v3902
        %v3933 = vpack.c.b16 %v3905, %v3904
        %v3934 = vpack.c.b16 %v3907, %v3906
        %v3935 = vpack.c.b16 %v3909, %v3908
        %v3936 = vpack.c.b16 %v3911, %v3910
        %v3937 = vpack.c.b16 %v3913, %v3912
        %3962 = vmatprep.subr.bf16.mxu0 0
        %3963 = vmatpush1.bf16.msra.mxu0 %v3914
        %3964 = vmatprep.subr.bf16.mxu0 0
        %3965 = vmatpush1.bf16.msra.mxu0 %v3915
        %3966 = vmatprep.subr.bf16.mxu0 0
        %3967 = vmatpush1.bf16.msra.mxu0 %v3916
        %3968 = vmatprep.subr.bf16.mxu0 0
        %3969 = vmatpush1.bf16.msra.mxu0 %v3917
        %3970 = vmatprep.subr.bf16.mxu0 0
        %3971 = vmatpush1.bf16.msra.mxu0 %v3918
        %3972 = vmatprep.subr.bf16.mxu0 0
        %3973 = vmatpush1.bf16.msra.mxu0 %v3919
        %3974 = vmatprep.subr.bf16.mxu0 0
        %3975 = vmatpush1.bf16.msra.mxu0 %v3920
        %3976 = vmatprep.subr.bf16.mxu0 0
        %3977 = vmatpush1.bf16.msra.mxu0 %v3921
        %3978 = vmatprep.subr.bf16.mxu0 0
        %3979 = vmatpush1.bf16.msra.mxu0 %v3922
        %3980 = vmatprep.subr.bf16.mxu0 0
        %3981 = vmatpush1.bf16.msra.mxu0 %v3923
        %3982 = vmatprep.subr.bf16.mxu0 0
        %3983 = vmatpush1.bf16.msra.mxu0 %v3924
        %3984 = vmatprep.subr.bf16.mxu0 0
        %3985 = vmatpush1.bf16.msra.mxu0 %v3925
        %3986 = vmatprep.subr.bf16.mxu0 0
        %3987 = vmatpush1.bf16.msra.mxu0 %v3926
        %3988 = vmatprep.subr.bf16.mxu0 0
        %3989 = vmatpush1.bf16.msra.mxu0 %v3927
        %3990 = vmatprep.subr.bf16.mxu0 0
        %3991 = vmatpush1.bf16.msra.mxu0 %v3928
        %3992 = vmatprep.subr.bf16.mxu0 0
        %3993 = vmatpush1.bf16.msra.mxu0 %v3929
        %3994 = vmatprep.mubr.bf16.mxu0 %v3507
        %3995 = vmatmul.mubr.bf16.gmra.mrb[0].mxu0 %v3506
        %v3996 = vpop.f32.mrb[0].mxu0
        %v3997 = vadd.f32 0.0, %v3996
        %v3998 = vpop.f32.mrb[0].mxu0
        %v3999 = vpop.f32.mrb[0].mxu0
        %v4000 = vadd.f32 0.0, %v3999
        %v4001 = vpop.f32.mrb[0].mxu0
        %4002 = vmatprep.mubr.bf16.mxu0 %v3813
        %4003 = vmatmul.mubr.bf16.gmra.mrb[0].mxu0 %v3812
        %v4004 = vpop.f32.mrb[0].mxu0
        %v4005 = vadd.f32 0.0, %v4004
        %v4006 = vpop.f32.mrb[0].mxu0
        %v4007 = vpop.f32.mrb[0].mxu0
        %v4008 = vadd.f32 0.0, %v4007
        %v4009 = vpop.f32.mrb[0].mxu0
        %4010 = vdwg.mxu0
        %4011 = vmatprep.subr.bf16.mxu0 0
        %4012 = vmatpush1.bf16.msra.mxu0 %v3930
        %4013 = vmatprep.subr.bf16.mxu0 0
        %4014 = vmatpush1.bf16.msra.mxu0 %v3931
        %4015 = vmatprep.subr.bf16.mxu0 0
        %4016 = vmatpush1.bf16.msra.mxu0 %v3932
        %4017 = vmatprep.subr.bf16.mxu0 0
        %4018 = vmatpush1.bf16.msra.mxu0 %v3933
        %4019 = vmatprep.subr.bf16.mxu0 0
        %4020 = vmatpush1.bf16.msra.mxu0 %v3934
        %4021 = vmatprep.subr.bf16.mxu0 0
        %4022 = vmatpush1.bf16.msra.mxu0 %v3935
        %4023 = vmatprep.subr.bf16.mxu0 0
        %4024 = vmatpush1.bf16.msra.mxu0 %v3936
        %4025 = vmatprep.subr.bf16.mxu0 0
        %4026 = vmatpush1.bf16.msra.mxu0 %v3937
        %4027 = vmatprep.subr.bf16.mxu0 0
        %4028 = vmatpush1.bf16.msra.mxu0 0
        %4029 = vmatprep.subr.bf16.mxu0 0
        %4030 = vmatpush1.bf16.msra.mxu0 0
        %4031 = vmatprep.subr.bf16.mxu0 0
        %4032 = vmatpush1.bf16.msra.mxu0 0
        %4033 = vmatprep.subr.bf16.mxu0 0
        %4034 = vmatpush1.bf16.msra.mxu0 0
        %4035 = vmatprep.subr.bf16.mxu0 0
        %4036 = vmatpush1.bf16.msra.mxu0 0
        %4037 = vmatprep.subr.bf16.mxu0 0
        %4038 = vmatpush1.bf16.msra.mxu0 0
        %4039 = vmatprep.subr.bf16.mxu0 0
        %4040 = vmatpush1.bf16.msra.mxu0 0
        %4041 = vmatprep.subr.bf16.mxu0 0
        %4042 = vmatpush1.bf16.msra.mxu0 0
        %4043 = vmatprep.mubr.bf16.mxu0 0
        %4044 = vmatmul.mubr.bf16.gmra.mrb[0].mxu0 %v3508
        %v4045 = vpop.f32.mrb[0].mxu0
        %v4046 = vadd.f32 %v3997, %v4045
        %v4047 = vpop.f32.mrb[0].mxu0
        %v4048 = vpop.f32.mrb[0].mxu0
        %v4049 = vadd.f32 %v4000, %v4048
        %v4050 = vpop.f32.mrb[0].mxu0
        %4051 = vmatprep.mubr.bf16.mxu0 0
        %4052 = vmatmul.mubr.bf16.gmra.mrb[0].mxu0 %v3814
        %v4053 = vpop.f32.mrb[0].mxu0
        %v4054 = vadd.f32 %v4005, %v4053
        %v4055 = vpop.f32.mrb[0].mxu0
        %v4056 = vpop.f32.mrb[0].mxu0
        %v4057 = vadd.f32 %v4008, %v4056
        %v4058 = vpop.f32.mrb[0].mxu0
        %4059 = vdwg.mxu0
        %v4060 = vadd.f32 %v3743, %v4046
        %v4061 = vadd.f32 %v3746, %v4049
        %v4062 = vadd.f32 %v3751, %v4054
        %v4063 = vadd.f32 %v3754, %v4057
        %v4064 = vld [vmem:[#allocation10] sm:$0x1]
        %v4066 = vlaneseq
        %v4067 = vshrl.u32 %v4066, 7
        %v4068 = vsub.s32 0, %v4067
        %v4069 = vrot.slane %v4064, %v4068
        %v4071 = vadd.f32 %v4060, %v4069
        %v4072 = vadd.f32 %v4061, %v4069
        %v4073 = vadd.f32 %v4062, %v4069
        %v4074 = vadd.f32 %v4063, %v4069
        %vm4075 = vcmp.gt.f32.partialorder %v4071, 0.0
        %vm4076 = vcmp.gt.f32.partialorder %v4072, 0.0
        %vm4077 = vcmp.gt.f32.partialorder %v4073, 0.0
        %vm4078 = vcmp.gt.f32.partialorder %v4074, 0.0
        %v4079 = vmul.f32 %v4071, 0.2
        %v4080 = vmul.f32 %v4072, 0.2
        %v4081 = vmul.f32 %v4073, 0.2
        %v4082 = vmul.f32 %v4074, 0.2
        %v4083 = vsel %vm4075, %v4071, %v4079
        %v4084 = vsel %vm4076, %v4072, %v4080
        %v4085 = vsel %vm4077, %v4073, %v4081
        %v4086 = vsel %vm4078, %v4074, %v4082
        %v4087 = vunpack.c.l.bf16 %v411
        %v4088 = vunpack.c.l.bf16 %v412
        %v4089 = vunpack.c.l.bf16 %v413
        %v4090 = vunpack.c.l.bf16 %v414
        %v4091 = vunpack.c.l.bf16 %v415
        %v4092 = vunpack.c.l.bf16 %v416
        %v4093 = vunpack.c.l.bf16 %v417
        %v4094 = vunpack.c.l.bf16 %v418
        %v4095 = vunpack.c.l.bf16 %v419
        %v4096 = vunpack.c.l.bf16 %v420
        %v4097 = vunpack.c.l.bf16 %v421
        %v4098 = vunpack.c.l.bf16 %v422
        %v4099 = vunpack.c.l.bf16 %v423
        %v4100 = vunpack.c.l.bf16 %v424
        %v4101 = vunpack.c.l.bf16 %v425
        %v4102 = vunpack.c.l.bf16 %v426
        %v4103 = vunpack.c.l.bf16 %v427
        %v4104 = vunpack.c.l.bf16 %v428
        %v4105 = vunpack.c.l.bf16 %v429
        %v4106 = vunpack.c.l.bf16 %v430
        %v4107 = vunpack.c.l.bf16 %v431
        %v4108 = vunpack.c.l.bf16 %v432
        %v4109 = vunpack.c.l.bf16 %v433
        %v4110 = vunpack.c.l.bf16 %v434
        %v4111 = vadd.f32 %v4087, %v4090
        %v4112 = vadd.f32 %v4088, %v4091
        %v4113 = vadd.f32 %v4089, %v4092
        %v4114 = vadd.f32 %v4093, %v4096
        %v4115 = vadd.f32 %v4094, %v4097
        %v4116 = vadd.f32 %v4095, %v4098
        %v4117 = vadd.f32 %v4099, %v4102
        %v4118 = vadd.f32 %v4100, %v4103
        %v4119 = vadd.f32 %v4101, %v4104
        %v4120 = vadd.f32 %v4105, %v4108
        %v4121 = vadd.f32 %v4106, %v4109
        %v4122 = vadd.f32 %v4107, %v4110
        %v4135 = vcombine.high %v4111, %v4111
        %v4137 = vunpack.c.l.s4 1983009808
        %v4138 = vunpack.c.0.s8 %v4137
        %v4139 = vlaneseq
        %v4140 = vshrl.u32 %v4139, 7
        %v4141 = vsub.s32 %v4138, %v4140
        %v4142 = vrot.slane %v4111, %v4141
        %v4144 = vunpack.c.l.s4 1983009808
        %v4145 = vunpack.c.0.s8 %v4144
        %v4146 = vlaneseq
        %v4147 = vshrl.u32 %v4146, 7
        %v4148 = vsub.s32 %v4145, %v4147
        %v4149 = vrot.slane %v4135, %v4148
        %v4150 = vcombine.high %v4142, %v4142
        %v4151 = vcombine.high %v4149, %v4149
        %v4152 = vcombine.high %v4112, %v4112
        %v4154 = vunpack.c.l.s4 1983009808
        %v4155 = vunpack.c.0.s8 %v4154
        %v4156 = vlaneseq
        %v4157 = vshrl.u32 %v4156, 7
        %v4158 = vsub.s32 %v4155, %v4157
        %v4159 = vrot.slane %v4112, %v4158
        %v4161 = vunpack.c.l.s4 1983009808
        %v4162 = vunpack.c.0.s8 %v4161
        %v4163 = vlaneseq
        %v4164 = vshrl.u32 %v4163, 7
        %v4165 = vsub.s32 %v4162, %v4164
        %v4166 = vrot.slane %v4152, %v4165
        %v4167 = vcombine.high %v4159, %v4159
        %v4168 = vcombine.high %v4166, %v4166
        %v4170 = vunpack.c.l.s4 1983009808
        %v4171 = vunpack.c.0.s8 %v4170
        %v4172 = vlaneseq
        %v4173 = vshrl.u32 %v4172, 7
        %v4174 = vsub.s32 %v4171, %v4173
        %v4175 = vrot.slane %v4113, %v4174
        %v4176 = vcombine.high %v4114, %v4114
        %v4178 = vunpack.c.l.s4 1983009808
        %v4179 = vunpack.c.0.s8 %v4178
        %v4180 = vlaneseq
        %v4181 = vshrl.u32 %v4180, 7
        %v4182 = vsub.s32 %v4179, %v4181
        %v4183 = vrot.slane %v4114, %v4182
        %v4185 = vunpack.c.l.s4 1983009808
        %v4186 = vunpack.c.0.s8 %v4185
        %v4187 = vlaneseq
        %v4188 = vshrl.u32 %v4187, 7
        %v4189 = vsub.s32 %v4186, %v4188
        %v4190 = vrot.slane %v4176, %v4189
        %v4191 = vcombine.high %v4183, %v4183
        %v4192 = vcombine.high %v4190, %v4190
        %v4193 = vcombine.high %v4115, %v4115
        %v4195 = vunpack.c.l.s4 1983009808
        %v4196 = vunpack.c.0.s8 %v4195
        %v4197 = vlaneseq
        %v4198 = vshrl.u32 %v4197, 7
        %v4199 = vsub.s32 %v4196, %v4198
        %v4200 = vrot.slane %v4115, %v4199
        %v4202 = vunpack.c.l.s4 1983009808
        %v4203 = vunpack.c.0.s8 %v4202
        %v4204 = vlaneseq
        %v4205 = vshrl.u32 %v4204, 7
        %v4206 = vsub.s32 %v4203, %v4205
        %v4207 = vrot.slane %v4193, %v4206
        %v4208 = vcombine.high %v4200, %v4200
        %v4209 = vcombine.high %v4207, %v4207
        %v4211 = vunpack.c.l.s4 1983009808
        %v4212 = vunpack.c.0.s8 %v4211
        %v4213 = vlaneseq
        %v4214 = vshrl.u32 %v4213, 7
        %v4215 = vsub.s32 %v4212, %v4214
        %v4216 = vrot.slane %v4116, %v4215
        %v4217 = vcombine.high %v4117, %v4117
        %v4219 = vunpack.c.l.s4 1983009808
        %v4220 = vunpack.c.0.s8 %v4219
        %v4221 = vlaneseq
        %v4222 = vshrl.u32 %v4221, 7
        %v4223 = vsub.s32 %v4220, %v4222
        %v4224 = vrot.slane %v4117, %v4223
        %v4226 = vunpack.c.l.s4 1983009808
        %v4227 = vunpack.c.0.s8 %v4226
        %v4228 = vlaneseq
        %v4229 = vshrl.u32 %v4228, 7
        %v4230 = vsub.s32 %v4227, %v4229
        %v4231 = vrot.slane %v4217, %v4230
        %v4232 = vcombine.high %v4224, %v4224
        %v4233 = vcombine.high %v4231, %v4231
        %v4234 = vcombine.high %v4118, %v4118
        %v4236 = vunpack.c.l.s4 1983009808
        %v4237 = vunpack.c.0.s8 %v4236
        %v4238 = vlaneseq
        %v4239 = vshrl.u32 %v4238, 7
        %v4240 = vsub.s32 %v4237, %v4239
        %v4241 = vrot.slane %v4118, %v4240
        %v4243 = vunpack.c.l.s4 1983009808
        %v4244 = vunpack.c.0.s8 %v4243
        %v4245 = vlaneseq
        %v4246 = vshrl.u32 %v4245, 7
        %v4247 = vsub.s32 %v4244, %v4246
        %v4248 = vrot.slane %v4234, %v4247
        %v4249 = vcombine.high %v4241, %v4241
        %v4250 = vcombine.high %v4248, %v4248
        %v4252 = vunpack.c.l.s4 1983009808
        %v4253 = vunpack.c.0.s8 %v4252
        %v4254 = vlaneseq
        %v4255 = vshrl.u32 %v4254, 7
        %v4256 = vsub.s32 %v4253, %v4255
        %v4257 = vrot.slane %v4119, %v4256
        %v4258 = vcombine.high %v4120, %v4120
        %v4260 = vunpack.c.l.s4 1983009808
        %v4261 = vunpack.c.0.s8 %v4260
        %v4262 = vlaneseq
        %v4263 = vshrl.u32 %v4262, 7
        %v4264 = vsub.s32 %v4261, %v4263
        %v4265 = vrot.slane %v4120, %v4264
        %v4267 = vunpack.c.l.s4 1983009808
        %v4268 = vunpack.c.0.s8 %v4267
        %v4269 = vlaneseq
        %v4270 = vshrl.u32 %v4269, 7
        %v4271 = vsub.s32 %v4268, %v4270
        %v4272 = vrot.slane %v4258, %v4271
        %v4273 = vcombine.high %v4265, %v4265
        %v4274 = vcombine.high %v4272, %v4272
        %v4275 = vcombine.high %v4121, %v4121
        %v4277 = vunpack.c.l.s4 1983009808
        %v4278 = vunpack.c.0.s8 %v4277
        %v4279 = vlaneseq
        %v4280 = vshrl.u32 %v4279, 7
        %v4281 = vsub.s32 %v4278, %v4280
        %v4282 = vrot.slane %v4121, %v4281
        %v4284 = vunpack.c.l.s4 1983009808
        %v4285 = vunpack.c.0.s8 %v4284
        %v4286 = vlaneseq
        %v4287 = vshrl.u32 %v4286, 7
        %v4288 = vsub.s32 %v4285, %v4287
        %v4289 = vrot.slane %v4275, %v4288
        %v4290 = vcombine.high %v4282, %v4282
        %v4291 = vcombine.high %v4289, %v4289
        %v4293 = vunpack.c.l.s4 1983009808
        %v4294 = vunpack.c.0.s8 %v4293
        %v4295 = vlaneseq
        %v4296 = vshrl.u32 %v4295, 7
        %v4297 = vsub.s32 %v4294, %v4296
        %v4298 = vrot.slane %v4122, %v4297
        %vm4299 = vcmask 1040384
        %vm4300 = vmor %vm4299, %vm3026
        %vm4301 = vmor %vm4300, %vm3030
        %vm4302 = vmor %vm4301, %vm3034
        %v4303 = vrot.slane %v4142, 7
        %v4304 = vrot.slane %v4303, 2
        %v4305 = vrot.slane %v4150, 7
        %v4306 = vsel %vm4302, %v4304, %v4305
        %v4307 = vrot.slane %v4305, 2
        %v4308 = vrot.slane %v4149, 7
        %v4309 = vsel %vm4302, %v4307, %v4308
        %v4310 = vrot.slane %v4308, 2
        %v4311 = vrot.slane %v4151, 7
        %v4312 = vsel %vm4302, %v4310, %v4311
        %v4313 = vrot.slane %v4311, 2
        %v4314 = vrot.slane %v4159, 7
        %v4315 = vsel %vm4302, %v4313, %v4314
        %v4316 = vrot.slane %v4314, 2
        %v4317 = vrot.slane %v4167, 7
        %v4318 = vsel %vm4302, %v4316, %v4317
        %v4319 = vrot.slane %v4317, 2
        %v4320 = vrot.slane %v4166, 7
        %v4321 = vsel %vm4302, %v4319, %v4320
        %v4322 = vrot.slane %v4320, 2
        %v4323 = vrot.slane %v4168, 7
        %v4324 = vsel %vm4302, %v4322, %v4323
        %v4325 = vrot.slane %v4323, 2
        %v4326 = vrot.slane %v4175, 7
        %v4327 = vsel %vm4302, %v4325, %v4326
        %v4328 = vrot.slane %v4183, 7
        %v4329 = vrot.slane %v4328, 2
        %v4330 = vrot.slane %v4191, 7
        %v4331 = vsel %vm4302, %v4329, %v4330
        %v4332 = vrot.slane %v4330, 2
        %v4333 = vrot.slane %v4190, 7
        %v4334 = vsel %vm4302, %v4332, %v4333
        %v4335 = vrot.slane %v4333, 2
        %v4336 = vrot.slane %v4192, 7
        %v4337 = vsel %vm4302, %v4335, %v4336
        %v4338 = vrot.slane %v4336, 2
        %v4339 = vrot.slane %v4200, 7
        %v4340 = vsel %vm4302, %v4338, %v4339
        %v4341 = vrot.slane %v4339, 2
        %v4342 = vrot.slane %v4208, 7
        %v4343 = vsel %vm4302, %v4341, %v4342
        %v4344 = vrot.slane %v4342, 2
        %v4345 = vrot.slane %v4207, 7
        %v4346 = vsel %vm4302, %v4344, %v4345
        %v4347 = vrot.slane %v4345, 2
        %v4348 = vrot.slane %v4209, 7
        %v4349 = vsel %vm4302, %v4347, %v4348
        %v4350 = vrot.slane %v4348, 2
        %v4351 = vrot.slane %v4216, 7
        %v4352 = vsel %vm4302, %v4350, %v4351
        %v4353 = vrot.slane %v4224, 7
        %v4354 = vrot.slane %v4353, 2
        %v4355 = vrot.slane %v4232, 7
        %v4356 = vsel %vm4302, %v4354, %v4355
        %v4357 = vrot.slane %v4355, 2
        %v4358 = vrot.slane %v4231, 7
        %v4359 = vsel %vm4302, %v4357, %v4358
        %v4360 = vrot.slane %v4358, 2
        %v4361 = vrot.slane %v4233, 7
        %v4362 = vsel %vm4302, %v4360, %v4361
        %v4363 = vrot.slane %v4361, 2
        %v4364 = vrot.slane %v4241, 7
        %v4365 = vsel %vm4302, %v4363, %v4364
        %v4366 = vrot.slane %v4364, 2
        %v4367 = vrot.slane %v4249, 7
        %v4368 = vsel %vm4302, %v4366, %v4367
        %v4369 = vrot.slane %v4367, 2
        %v4370 = vrot.slane %v4248, 7
        %v4371 = vsel %vm4302, %v4369, %v4370
        %v4372 = vrot.slane %v4370, 2
        %v4373 = vrot.slane %v4250, 7
        %v4374 = vsel %vm4302, %v4372, %v4373
        %v4375 = vrot.slane %v4373, 2
        %v4376 = vrot.slane %v4257, 7
        %v4377 = vsel %vm4302, %v4375, %v4376
        %v4378 = vrot.slane %v4265, 7
        %v4379 = vrot.slane %v4378, 2
        %v4380 = vrot.slane %v4273, 7
        %v4381 = vsel %vm4302, %v4379, %v4380
        %v4382 = vrot.slane %v4380, 2
        %v4383 = vrot.slane %v4272, 7
        %v4384 = vsel %vm4302, %v4382, %v4383
        %v4385 = vrot.slane %v4383, 2
        %v4386 = vrot.slane %v4274, 7
        %v4387 = vsel %vm4302, %v4385, %v4386
        %v4388 = vrot.slane %v4386, 2
        %v4389 = vrot.slane %v4282, 7
        %v4390 = vsel %vm4302, %v4388, %v4389
        %v4391 = vrot.slane %v4389, 2
        %v4392 = vrot.slane %v4290, 7
        %v4393 = vsel %vm4302, %v4391, %v4392
        %v4394 = vrot.slane %v4392, 2
        %v4395 = vrot.slane %v4289, 7
        %v4396 = vsel %vm4302, %v4394, %v4395
        %v4397 = vrot.slane %v4395, 2
        %v4398 = vrot.slane %v4291, 7
        %v4399 = vsel %vm4302, %v4397, %v4398
        %v4400 = vrot.slane %v4398, 2
        %v4401 = vrot.slane %v4298, 7
        %v4402 = vsel %vm4302, %v4400, %v4401
        %v4435 = vrot.slane %v4306, 7
        %v4436 = vrot.slane %v4435, 2
        %v4437 = vrot.slane %v4309, 7
        %v4438 = vrot.slane %v4437, 2
        %v4439 = vrot.slane %v4312, 7
        %v4440 = vrot.slane %v4439, 2
        %v4441 = vrot.slane %v4315, 7
        %v4442 = vrot.slane %v4441, 2
        %v4443 = vrot.slane %v4318, 7
        %v4444 = vrot.slane %v4443, 2
        %v4445 = vrot.slane %v4321, 7
        %v4446 = vrot.slane %v4445, 2
        %v4447 = vrot.slane %v4324, 7
        %v4448 = vrot.slane %v4447, 2
        %v4449 = vrot.slane %v4327, 7
        %v4450 = vrot.slane %v4449, 2
        %v4451 = vrot.slane %v4331, 7
        %v4452 = vrot.slane %v4451, 2
        %v4453 = vrot.slane %v4334, 7
        %v4454 = vrot.slane %v4453, 2
        %v4455 = vrot.slane %v4337, 7
        %v4456 = vrot.slane %v4455, 2
        %v4457 = vrot.slane %v4340, 7
        %v4458 = vrot.slane %v4457, 2
        %v4459 = vrot.slane %v4343, 7
        %v4460 = vrot.slane %v4459, 2
        %v4461 = vrot.slane %v4346, 7
        %v4462 = vrot.slane %v4461, 2
        %v4463 = vrot.slane %v4349, 7
        %v4464 = vrot.slane %v4463, 2
        %v4465 = vrot.slane %v4352, 7
        %v4466 = vrot.slane %v4465, 2
        %v4467 = vrot.slane %v4356, 7
        %v4468 = vrot.slane %v4467, 2
        %v4469 = vrot.slane %v4359, 7
        %v4470 = vrot.slane %v4469, 2
        %v4471 = vrot.slane %v4362, 7
        %v4472 = vrot.slane %v4471, 2
        %v4473 = vrot.slane %v4365, 7
        %v4474 = vrot.slane %v4473, 2
        %v4475 = vrot.slane %v4368, 7
        %v4476 = vrot.slane %v4475, 2
        %v4477 = vrot.slane %v4371, 7
        %v4478 = vrot.slane %v4477, 2
        %v4479 = vrot.slane %v4374, 7
        %v4480 = vrot.slane %v4479, 2
        %v4481 = vrot.slane %v4377, 7
        %v4482 = vrot.slane %v4481, 2
        %v4483 = vrot.slane %v4381, 7
        %v4484 = vrot.slane %v4483, 2
        %v4485 = vrot.slane %v4384, 7
        %v4486 = vrot.slane %v4485, 2
        %v4487 = vrot.slane %v4387, 7
        %v4488 = vrot.slane %v4487, 2
        %v4489 = vrot.slane %v4390, 7
        %v4490 = vrot.slane %v4489, 2
        %v4491 = vrot.slane %v4393, 7
        %v4492 = vrot.slane %v4491, 2
        %v4493 = vrot.slane %v4396, 7
        %v4494 = vrot.slane %v4493, 2
        %v4495 = vrot.slane %v4399, 7
        %v4496 = vrot.slane %v4495, 2
        %v4497 = vrot.slane %v4402, 7
        %v4498 = vrot.slane %v4497, 2
        %v4531 = vadd.f32 %v4306, %v4436
        %v4532 = vadd.f32 %v4309, %v4438
        %v4533 = vadd.f32 %v4312, %v4440
        %v4534 = vadd.f32 %v4315, %v4442
        %v4535 = vadd.f32 %v4318, %v4444
        %v4536 = vadd.f32 %v4321, %v4446
        %v4537 = vadd.f32 %v4324, %v4448
        %v4538 = vadd.f32 %v4327, %v4450
        %v4539 = vadd.f32 %v4331, %v4452
        %v4540 = vadd.f32 %v4334, %v4454
        %v4541 = vadd.f32 %v4337, %v4456
        %v4542 = vadd.f32 %v4340, %v4458
        %v4543 = vadd.f32 %v4343, %v4460
        %v4544 = vadd.f32 %v4346, %v4462
        %v4545 = vadd.f32 %v4349, %v4464
        %v4546 = vadd.f32 %v4352, %v4466
        %v4547 = vadd.f32 %v4356, %v4468
        %v4548 = vadd.f32 %v4359, %v4470
        %v4549 = vadd.f32 %v4362, %v4472
        %v4550 = vadd.f32 %v4365, %v4474
        %v4551 = vadd.f32 %v4368, %v4476
        %v4552 = vadd.f32 %v4371, %v4478
        %v4553 = vadd.f32 %v4374, %v4480
        %v4554 = vadd.f32 %v4377, %v4482
        %v4555 = vadd.f32 %v4381, %v4484
        %v4556 = vadd.f32 %v4384, %v4486
        %v4557 = vadd.f32 %v4387, %v4488
        %v4558 = vadd.f32 %v4390, %v4490
        %v4559 = vadd.f32 %v4393, %v4492
        %v4560 = vadd.f32 %v4396, %v4494
        %v4561 = vadd.f32 %v4399, %v4496
        %v4562 = vadd.f32 %v4402, %v4498
        %v4563 = vpack.c.bf16 %v4531, %v4531
        %v4564 = vpack.c.bf16 %v4532, %v4532
        %v4565 = vpack.c.bf16 %v4533, %v4533
        %v4566 = vpack.c.bf16 %v4534, %v4534
        %v4567 = vpack.c.bf16 %v4535, %v4535
        %v4568 = vpack.c.bf16 %v4536, %v4536
        %v4569 = vpack.c.bf16 %v4537, %v4537
        %v4570 = vpack.c.bf16 %v4538, %v4538
        %v4571 = vpack.c.bf16 %v4539, %v4539
        %v4572 = vpack.c.bf16 %v4540, %v4540
        %v4573 = vpack.c.bf16 %v4541, %v4541
        %v4574 = vpack.c.bf16 %v4542, %v4542
        %v4575 = vpack.c.bf16 %v4543, %v4543
        %v4576 = vpack.c.bf16 %v4544, %v4544
        %v4577 = vpack.c.bf16 %v4545, %v4545
        %v4578 = vpack.c.bf16 %v4546, %v4546
        %v4579 = vpack.c.bf16 %v4547, %v4547
        %v4580 = vpack.c.bf16 %v4548, %v4548
        %v4581 = vpack.c.bf16 %v4549, %v4549
        %v4582 = vpack.c.bf16 %v4550, %v4550
        %v4583 = vpack.c.bf16 %v4551, %v4551
        %v4584 = vpack.c.bf16 %v4552, %v4552
        %v4585 = vpack.c.bf16 %v4553, %v4553
        %v4586 = vpack.c.bf16 %v4554, %v4554
        %v4587 = vpack.c.bf16 %v4555, %v4555
        %v4588 = vpack.c.bf16 %v4556, %v4556
        %v4589 = vpack.c.bf16 %v4557, %v4557
        %v4590 = vpack.c.bf16 %v4558, %v4558
        %v4591 = vpack.c.bf16 %v4559, %v4559
        %v4592 = vpack.c.bf16 %v4560, %v4560
        %v4593 = vpack.c.bf16 %v4561, %v4561
        %v4594 = vpack.c.bf16 %v4562, %v4562
        %v4595 = vld [vmem:[#allocation11] sm:$0xf]
        %v4596 = vld [vmem:[#allocation11 + $0x4] sm:$0xf]
        %v4597 = vld [vmem:[#allocation11 + $0x8] sm:$0xf]
        %v4598 = vld [vmem:[#allocation11 + $0xc] sm:$0xf]
        %v4599 = vld [vmem:[#allocation11 + $0x10] sm:$0xf]
        %v4600 = vld [vmem:[#allocation11 + $0x14] sm:$0xf]
        %v4601 = vld [vmem:[#allocation11 + $0x18] sm:$0xf]
        %v4602 = vld [vmem:[#allocation11 + $0x1c] sm:$0xf]
        %v4603 = vld [vmem:[#allocation11 + $0x20] sm:$0xf]
        %v4604 = vld [vmem:[#allocation11 + $0x24] sm:$0xf]
        %v4605 = vld [vmem:[#allocation11 + $0x28] sm:$0xf]
        %v4606 = vld [vmem:[#allocation11 + $0x2c] sm:$0xf]
        %v4607 = vld [vmem:[#allocation11 + $0x30] sm:$0xf]
        %v4608 = vld [vmem:[#allocation11 + $0x34] sm:$0xf]
        %v4609 = vld [vmem:[#allocation11 + $0x38] sm:$0xf]
        %v4610 = vld [vmem:[#allocation11 + $0x3c] sm:$0xf]
        %v4611 = vld [vmem:[#allocation13] sm:$0x1]
        %v4613 = vlaneseq
        %v4614 = vshrl.u32 %v4613, 7
        %v4615 = vsub.s32 0, %v4614
        %v4616 = vrot.slane %v4611, %v4615
        %v4650 = vunpack.c.l.b16 %v4563
        %v4651 = vunpack.c.l.b16 %v4564
        %v4652 = vunpack.c.l.b16 %v4565
        %v4653 = vunpack.c.l.b16 %v4566
        %v4654 = vunpack.c.l.b16 %v4567
        %v4655 = vunpack.c.l.b16 %v4568
        %v4656 = vunpack.c.l.b16 %v4569
        %v4657 = vunpack.c.l.b16 %v4570
        %v4658 = vunpack.c.l.b16 %v4571
        %v4659 = vunpack.c.l.b16 %v4572
        %v4660 = vunpack.c.l.b16 %v4573
        %v4661 = vunpack.c.l.b16 %v4574
        %v4662 = vunpack.c.l.b16 %v4575
        %v4663 = vunpack.c.l.b16 %v4576
        %v4664 = vunpack.c.l.b16 %v4577
        %v4665 = vunpack.c.l.b16 %v4578
        %v4666 = vunpack.c.l.b16 %v4579
        %v4667 = vunpack.c.l.b16 %v4580
        %v4668 = vunpack.c.l.b16 %v4581
        %v4669 = vunpack.c.l.b16 %v4582
        %v4670 = vunpack.c.l.b16 %v4583
        %v4671 = vunpack.c.l.b16 %v4584
        %v4672 = vunpack.c.l.b16 %v4585
        %v4673 = vunpack.c.l.b16 %v4586
        %v4674 = vunpack.c.l.b16 %v4587
        %v4675 = vunpack.c.l.b16 %v4588
        %v4676 = vunpack.c.l.b16 %v4589
        %v4677 = vunpack.c.l.b16 %v4590
        %v4678 = vunpack.c.l.b16 %v4591
        %v4679 = vunpack.c.l.b16 %v4592
        %v4680 = vunpack.c.l.b16 %v4593
        %v4681 = vunpack.c.l.b16 %v4594
        %v4682 = vrot.slane %v4651, 7
        %v4683 = vsel %vm3024, %v4682, %v4650
        %v4684 = vrot.slane %v4652, 6
        %v4685 = vsel %vm3026, %v4684, %v4683
        %v4686 = vrot.slane %v4653, 5
        %v4687 = vsel %vm3028, %v4686, %v4685
        %v4688 = vrot.slane %v4654, 4
        %v4689 = vsel %vm3030, %v4688, %v4687
        %v4690 = vrot.slane %v4655, 3
        %v4691 = vsel %vm3032, %v4690, %v4689
        %v4692 = vrot.slane %v4656, 2
        %v4693 = vsel %vm3034, %v4692, %v4691
        %v4694 = vrot.slane %v4657, 1
        %v4695 = vsel %vm3036, %v4694, %v4693
        %v4696 = vrot.slane %v4659, 7
        %v4697 = vsel %vm3024, %v4696, %v4658
        %v4698 = vrot.slane %v4660, 6
        %v4699 = vsel %vm3026, %v4698, %v4697
        %v4700 = vrot.slane %v4661, 5
        %v4701 = vsel %vm3028, %v4700, %v4699
        %v4702 = vrot.slane %v4662, 4
        %v4703 = vsel %vm3030, %v4702, %v4701
        %v4704 = vrot.slane %v4663, 3
        %v4705 = vsel %vm3032, %v4704, %v4703
        %v4706 = vrot.slane %v4664, 2
        %v4707 = vsel %vm3034, %v4706, %v4705
        %v4708 = vrot.slane %v4665, 1
        %v4709 = vsel %vm3036, %v4708, %v4707
        %v4710 = vrot.slane %v4667, 7
        %v4711 = vsel %vm3024, %v4710, %v4666
        %v4712 = vrot.slane %v4668, 6
        %v4713 = vsel %vm3026, %v4712, %v4711
        %v4714 = vrot.slane %v4669, 5
        %v4715 = vsel %vm3028, %v4714, %v4713
        %v4716 = vrot.slane %v4670, 4
        %v4717 = vsel %vm3030, %v4716, %v4715
        %v4718 = vrot.slane %v4671, 3
        %v4719 = vsel %vm3032, %v4718, %v4717
        %v4720 = vrot.slane %v4672, 2
        %v4721 = vsel %vm3034, %v4720, %v4719
        %v4722 = vrot.slane %v4673, 1
        %v4723 = vsel %vm3036, %v4722, %v4721
        %v4724 = vrot.slane %v4675, 7
        %v4725 = vsel %vm3024, %v4724, %v4674
        %v4726 = vrot.slane %v4676, 6
        %v4727 = vsel %vm3026, %v4726, %v4725
        %v4728 = vrot.slane %v4677, 5
        %v4729 = vsel %vm3028, %v4728, %v4727
        %v4730 = vrot.slane %v4678, 4
        %v4731 = vsel %vm3030, %v4730, %v4729
        %v4732 = vrot.slane %v4679, 3
        %v4733 = vsel %vm3032, %v4732, %v4731
        %v4734 = vrot.slane %v4680, 2
        %v4735 = vsel %vm3034, %v4734, %v4733
        %v4736 = vrot.slane %v4681, 1
        %v4737 = vsel %vm3036, %v4736, %v4735
        %v4738 = vpack.c.b16 %v4709, %v4695
        %v4739 = vpack.c.b16 %v4737, %v4723
        %v4758 = vunpack.c.l.b16 %v4595
        %v4759 = vunpack.c.l.b16 %v4596
        %v4760 = vunpack.c.l.b16 %v4597
        %v4761 = vunpack.c.l.b16 %v4598
        %v4762 = vunpack.c.l.b16 %v4599
        %v4763 = vunpack.c.l.b16 %v4600
        %v4764 = vunpack.c.l.b16 %v4601
        %v4765 = vunpack.c.l.b16 %v4602
        %v4766 = vunpack.c.l.b16 %v4603
        %v4767 = vunpack.c.l.b16 %v4604
        %v4768 = vunpack.c.l.b16 %v4605
        %v4769 = vunpack.c.l.b16 %v4606
        %v4770 = vunpack.c.l.b16 %v4607
        %v4771 = vunpack.c.l.b16 %v4608
        %v4772 = vunpack.c.l.b16 %v4609
        %v4773 = vunpack.c.l.b16 %v4610
        %v4774 = vpack.c.b16 %v4759, %v4758
        %v4775 = vpack.c.b16 %v4761, %v4760
        %v4776 = vpack.c.b16 %v4763, %v4762
        %v4777 = vpack.c.b16 %v4765, %v4764
        %v4778 = vpack.c.b16 %v4767, %v4766
        %v4779 = vpack.c.b16 %v4769, %v4768
        %v4780 = vpack.c.b16 %v4771, %v4770
        %v4781 = vpack.c.b16 %v4773, %v4772
        %4790 = vmatprep.subr.bf16.mxu0 0
        %4791 = vmatpush1.bf16.msra.mxu0 %v4774
        %4792 = vmatprep.subr.bf16.mxu0 0
        %4793 = vmatpush1.bf16.msra.mxu0 %v4775
        %4794 = vmatprep.subr.bf16.mxu0 0
        %4795 = vmatpush1.bf16.msra.mxu0 %v4776
        %4796 = vmatprep.subr.bf16.mxu0 0
        %4797 = vmatpush1.bf16.msra.mxu0 %v4777
        %4798 = vmatprep.subr.bf16.mxu0 0
        %4799 = vmatpush1.bf16.msra.mxu0 %v4778
        %4800 = vmatprep.subr.bf16.mxu0 0
        %4801 = vmatpush1.bf16.msra.mxu0 %v4779
        %4802 = vmatprep.subr.bf16.mxu0 0
        %4803 = vmatpush1.bf16.msra.mxu0 %v4780
        %4804 = vmatprep.subr.bf16.mxu0 0
        %4805 = vmatpush1.bf16.msra.mxu0 %v4781
        %4806 = vmatprep.subr.bf16.mxu0 0
        %4807 = vmatpush1.bf16.msra.mxu0 0
        %4808 = vmatprep.subr.bf16.mxu0 0
        %4809 = vmatpush1.bf16.msra.mxu0 0
        %4810 = vmatprep.subr.bf16.mxu0 0
        %4811 = vmatpush1.bf16.msra.mxu0 0
        %4812 = vmatprep.subr.bf16.mxu0 0
        %4813 = vmatpush1.bf16.msra.mxu0 0
        %4814 = vmatprep.subr.bf16.mxu0 0
        %4815 = vmatpush1.bf16.msra.mxu0 0
        %4816 = vmatprep.subr.bf16.mxu0 0
        %4817 = vmatpush1.bf16.msra.mxu0 0
        %4818 = vmatprep.subr.bf16.mxu0 0
        %4819 = vmatpush1.bf16.msra.mxu0 0
        %4820 = vmatprep.subr.bf16.mxu0 0
        %4821 = vmatpush1.bf16.msra.mxu0 0
        %4822 = vmatprep.mubr.bf16.mxu0 0
        %4823 = vmatmul.mubr.bf16.gmra.mrb[0].mxu0 %v4738
        %v4824 = vpop.f32.mrb[0].mxu0
        %v4825 = vadd.f32 %v4616, %v4824
        %v4826 = vpop.f32.mrb[0].mxu0
        %v4827 = vpop.f32.mrb[0].mxu0
        %v4828 = vadd.f32 %v4616, %v4827
        %v4829 = vpop.f32.mrb[0].mxu0
        %4830 = vmatprep.mubr.bf16.mxu0 0
        %4831 = vmatmul.mubr.bf16.gmra.mrb[0].mxu0 %v4739
        %v4832 = vpop.f32.mrb[0].mxu0
        %v4833 = vadd.f32 %v4616, %v4832
        %v4834 = vpop.f32.mrb[0].mxu0
        %v4835 = vpop.f32.mrb[0].mxu0
        %v4836 = vadd.f32 %v4616, %v4835
        %v4837 = vpop.f32.mrb[0].mxu0
        %4838 = vdwg.mxu0
        %v4839 = vadd.f32 %v4083, %v4825
        %v4840 = vadd.f32 %v4084, %v4828
        %v4841 = vadd.f32 %v4085, %v4833
        %v4842 = vadd.f32 %v4086, %v4836
        %v4843 = vpack.c.bf16 %v4839, %v4839
        %v4844 = vpack.c.bf16 %v4840, %v4840
        %v4845 = vpack.c.bf16 %v4841, %v4841
        %v4846 = vpack.c.bf16 %v4842, %v4842
        %4847 = vst [vmem:[%s397] sm:$0xf] %v4843
        %4848 = vst [vmem:[%s397 + $0x4] sm:$0xf] %v4844
        %4849 = vst [vmem:[%s397 + $0x8] sm:$0xf] %v4845
        %4850 = vst [vmem:[%s397 + $0xc] sm:$0xf] %v4846
        %s4851 = sand.u32 %s205, 1
        %s4852 = scalar_lea.sflag [#allocation4], %s4851
        %s4853 = sand.u32 %s205, 1
        %s4854 = smul.addr %s4853, 16
        %s4855 = scalar_lea.vmem [#allocation14], %s4854
        // Predicated region
        $region77: #{resblock_forward.1} parent=47 // pred_check
          %p4856 = pneg %p215
        $region78: #{resblock_forward.1} parent=47 // pred_check_branch
          %4858 = sbr.rel (%p4856) target = $region80
        $region79: #{resblock_forward.1} parent=47 // pred_region
          %s4859 = smul.u32 4, %s32
          %s4861 = ssub.s32 256, 256
          %4862 = vsyncadd %s4852, %s4861
          %s4863 = smul.addr %s31, 8
          %s4864 = sadd.s32 %s4859, %s4863
          %s4865 = smul.addr %s4864, 64
          %s4866 = scalar_lea.hbm %s7, %s4865
          %s4867 = sshll.u32 %s4855, 4
          %s4868 = int_to_ptr.vmem [resolvable:$true] %s4867
          %4873 = dma.vmem_to_hbm [thread:$0]  %s4868, 256, %s4866, %s4852, 64, 64, 4
        $region80: #{resblock_forward.1} parent=47 // pred_fallthru
          _
      $region48: #{resblock_forward.1} parent=5 // pred_fallthru
        _
      %p4874 = scmp.le.s32.totalorder 2, %s22
      // Predicated region
      $region81: #{resblock_forward.1} parent=5 // pred_check
        %p4875 = pneg %p4874
      $region82: #{resblock_forward.1} parent=5 // pred_check_branch
        %4877 = sbr.rel (%p4875) target = $region84
      $region83: #{resblock_forward.1} parent=5 // pred_region
        %s4878 = ssub.s32 %s22, 2
        // Predicated region
        $region85: #{resblock_forward.1} parent=83 // pred_check
          %p4879 = pneg %p221
        $region86: #{resblock_forward.1} parent=83 // pred_check_branch
          %4881 = sbr.rel (%p4879) target = $region88
        $region87: #{resblock_forward.1} parent=83 // pred_region
          %s4882 = sand.u32 %s206, 1
          %s4883 = scalar_lea.sflag [#allocation4], %s4882
          %s4884 = sand.u32 %s206, 1
          %s4885 = smul.addr %s4884, 16
          %s4886 = scalar_lea.vmem [#allocation14], %s4885
          %4887 = dma.done %s4883, 256
        $region88: #{resblock_forward.1} parent=83 // pred_fallthru
          _
      $region84: #{resblock_forward.1} parent=5 // pred_fallthru
        _
    $region6: #{resblock_forward.1} parent=1 // loop_footer
      %s26 = sadd.s32 1, %s22
    $region7: #{resblock_forward.1} parent=1 // loop_footer_branch
      %21 = sbr.rel target = $region3
    $region8: #{resblock_forward.1} parent=1 // loop_exit
      _
    %4888 = vsyncpa [#allocation3], 1
    %s4889 = scalar_lea.sflag [#allocation3], 1
    %4890 = vsyncpa %s4889, 1
    %4891 = vsyncpa [#allocation6], 1
    %4892 = vsyncpa [#allocation9], 1
    %4893 = vsyncpa [#allocation12], 1
    %4894 = vsyncpa [#allocation4], 1
    %s4895 = scalar_lea.sflag [#allocation4], 1
    %4896 = vsyncpa %s4895, 1

</llo_original>
